<compile_context>
chip_gen: v6e
topology: v6e:2x2x1
jax: 0.10.0
libtpu: 0.0.40
codegen_flags: <defaults>
</compile_context>

<pallas_src>
import functools

import jax
import jax.numpy as jnp
from jax import lax
from jax.experimental import pallas as pl
from jax.experimental.pallas import tpu as pltpu

NEG_SLOPE = 0.01  # nn.LeakyReLU(0.01)


# ----------------------- host-side weight preparation ------------------------
def _banded_conv_weight(w_oihw, wo):
    """(Cout, Cin, 4, 4) -> (4, W*Cin, Wo*Cout) banded matrices, W = 2*wo.

    B[ky, w*Cin + c, j*Cout + o] = W[o, c, ky, w - 2j + 1] when that kernel
    column index lies in [0, 4), else 0.  Multiplying a channel-minor flattened
    activation row (length W*Cin) by B[ky] performs the width-direction part of
    the 4x4/stride-2/pad-1 convolution for kernel row ky (width-padding taps
    fall on the zero band and vanish).
    """
    cout, cin, kh, kw = w_oihw.shape
    w_in = 2 * wo
    wt = jnp.transpose(w_oihw, (2, 3, 1, 0))                              # (ky, kx, c, o)
    kx = jnp.arange(w_in)[:, None] - 2 * jnp.arange(wo)[None, :] + 1      # (W, Wo)
    valid = (kx >= 0) & (kx < kw)
    kxc = jnp.clip(kx, 0, kw - 1)
    b = wt[:, kxc, :, :]                                                  # (ky, W, Wo, c, o)
    b = jnp.where(valid[None, :, :, None, None], b, 0.0)
    b = jnp.transpose(b, (0, 1, 3, 2, 4)).reshape(kh, w_in * cin, wo * cout)
    return b


# ------------------------------- Pallas kernel --------------------------------
def _even_odd_pad_split(v):
    """Row-parity planes of the zero-row-padded activation.

    v: (R, L) value, R even.  Returns (ve, vo), each (R//2 + 1, L):
      ve[p] = vpad[2p]     = 0 if p == 0      else v[2p - 1]
      vo[p] = vpad[2p + 1] = 0 if p == R//2   else v[2p]
    Implemented as two exact 0/1 selector matmuls (no strided access, no
    transposes, no lane-dim reshapes).
    """
    r, _ = v.shape
    p = r // 2 + 1
    pi = lax.broadcasted_iota(jnp.int32, (p, r), 0)
    ri = lax.broadcasted_iota(jnp.int32, (p, r), 1)
    se = jnp.where((pi >= 1) & (ri == 2 * pi - 1), 1.0, 0.0).astype(v.dtype)
    so = jnp.where((pi < r // 2) & (ri == 2 * pi), 1.0, 0.0).astype(v.dtype)
    ve = jnp.dot(se, v, preferred_element_type=jnp.float32).astype(v.dtype)
    vo = jnp.dot(so, v, preferred_element_type=jnp.float32).astype(v.dtype)
    return ve, vo


def _disc_kernel(*refs, layer_meta, k0):
    """Full Discriminator forward for one sample; everything stays in VMEM.

    refs = (x, bw_1..bw_L, bias_1..bias_L, w_heads, out).
    layer_meta[l] = (Ho_l, Wo_l*Cout_l).
    """
    n_layers = len(layer_meta)
    x_ref = refs[0]
    bw_refs = refs[1:1 + n_layers]
    bias_refs = refs[1 + n_layers:1 + 2 * n_layers]
    wh_ref = refs[1 + 2 * n_layers]
    out_ref = refs[2 + 2 * n_layers]

    # Parity planes of the (implicitly padded) input image, f32 in VMEM.
    xe, xo = _even_odd_pad_split(x_ref[...])                  # (H/2 + 1, W*Cin)

    h = None
    for l, (ho, n_out) in enumerate(layer_meta):
        acc = jnp.zeros((ho, n_out), jnp.float32)
        for ky in range(4):                                   # kernel rows
            src = xe if ky % 2 == 0 else xo
            a = ky // 2
            lhs = src[a:a + ho, :].astype(jnp.bfloat16)       # contiguous row slice
            acc = acc + jnp.dot(lhs, bw_refs[l][ky],
                                preferred_element_type=jnp.float32)
        acc = acc + bias_refs[l][...]                         # (1, n_out) f32 broadcast
        h = jnp.where(acc > 0, acc, NEG_SLOPE * acc)          # LeakyReLU(0.01), f32
        if l + 1 < n_layers:
            xe, xo = _even_odd_pad_split(h)                   # planes for next layer

    # Heads (conv_dis + conv_clf_spks fused): out[n] = sum_kh h[kh, :] @ WH[kh].
    out = jnp.dot(h[0:1, :].astype(jnp.bfloat16), wh_ref[0],
                  preferred_element_type=jnp.float32)
    for kh in range(1, k0):
        out = out + jnp.dot(h[kh:kh + 1, :].astype(jnp.bfloat16), wh_ref[kh],
                            preferred_element_type=jnp.float32)
    out_ref[...] = out                                        # (1, 1 + num_speakers)


# ------------------------------- full model ----------------------------------
def discriminator_forward(x_nchw, params):
    """Pallas-backed forward.  Input NCHW (B, 1, H, W) like PyTorch."""
    B, cin, H, W = x_nchw.shape
    assert cin == 1, "Discriminator expects a single input channel"
    n_layers = len(params["main"])
    assert H % (1 << n_layers) == 0 and W % (1 << n_layers) == 0, (
        "input spatial dims must be divisible by 2**repeat_num")

    x = x_nchw[:, 0, :, :].astype(jnp.float32)                # (B, H, W)

    bw_list, bias_list, meta = [], [], []
    h_l, w_l, c_l = H, W, 1
    flops = 0
    for (w, b) in params["main"]:
        cout = w.shape[0]
        ho, wo = h_l // 2, w_l // 2
        bw_list.append(_banded_conv_weight(w, wo).astype(jnp.bfloat16))
        bias_list.append(jnp.tile(b.astype(jnp.float32), wo).reshape(1, wo * cout))
        meta.append((ho, wo * cout))
        flops += 2 * B * 4 * ho * (w_l * c_l) * (wo * cout)
        h_l, w_l, c_l = ho, wo, cout

    w_dis, w_clf = params["w_dis"], params["w_clf"]
    k0, k1 = w_dis.shape[2], w_dis.shape[3]
    assert (k0, k1) == (h_l, w_l), "head kernel must match the final feature map"
    S = w_clf.shape[0]
    wh = jnp.concatenate([w_dis, w_clf], axis=0)              # (1+S, C, k0, k1)
    wh = jnp.transpose(wh, (2, 3, 1, 0)).reshape(k0, k1 * c_l, 1 + S).astype(jnp.bfloat16)
    flops += 2 * B * k0 * (k1 * c_l) * (1 + S)

    kernel = functools.partial(_disc_kernel, layer_meta=tuple(meta), k0=k0)

    in_specs = [pl.BlockSpec((None, H, W), lambda i: (i, 0, 0))]
    in_specs += [pl.BlockSpec(bw.shape, lambda i: (0, 0, 0)) for bw in bw_list]
    in_specs += [pl.BlockSpec(bb.shape, lambda i: (0, 0)) for bb in bias_list]
    in_specs += [pl.BlockSpec(wh.shape, lambda i: (0, 0, 0))]

    bytes_accessed = (x.size * 4 + wh.size * 2 + B * (1 + S) * 4
                      + sum(bw.size * 2 for bw in bw_list)
                      + sum(bb.size * 4 for bb in bias_list))
    cost = pl.CostEstimate(flops=flops, transcendentals=0,
                           bytes_accessed=bytes_accessed)

    y = pl.pallas_call(
        kernel,
        out_shape=jax.ShapeDtypeStruct((B, 1, 1 + S), jnp.float32),
        grid=(B,),
        in_specs=in_specs,
        out_specs=pl.BlockSpec((None, 1, 1 + S), lambda i: (i, 0, 0)),
        compiler_params=pltpu.CompilerParams(dimension_semantics=("parallel",)),
        cost_estimate=cost,
    )(x, *bw_list, *bias_list, wh)

    out_src = y[:, 0, 0:1].reshape(B, 1, 1, 1)                # like PyTorch (B,1,1,1)
    out_cls = y[:, 0, 1:]                                     # (B, num_speakers)
    return out_src, out_cls


# ------------------------------ params / reference ----------------------------
def init_params(key, conv_dim, repeat_num, num_speakers, input_size):
    params = {"main": []}
    cin, cout = 1, conv_dim
    for _ in range(repeat_num):
        key, kw_, kb_ = jax.random.split(key, 3)
        w = jax.random.normal(kw_, (cout, cin, 4, 4), jnp.float32) * 0.05
        b = jax.random.normal(kb_, (cout,), jnp.float32) * 0.05
        params["main"].append((w, b))
        cin, cout = cout, cout * 2
    curr_dim = cin
    k0 = input_size[0] // (2 ** repeat_num)
    k1 = input_size[1] // (2 ** repeat_num)
    key, kd, kc = jax.random.split(key, 3)
    params["w_dis"] = jax.random.normal(kd, (1, curr_dim, k0, k1), jnp.float32) * 0.05
    params["w_clf"] = jax.random.normal(kc, (num_speakers, curr_dim, k0, k1), jnp.float32) * 0.05
    return params


def reference_forward(x_nchw, params):
    dn = ("NCHW", "OIHW", "NCHW")
    h = x_nchw
    for (w, b) in params["main"]:
        h = lax.conv_general_dilated(h, w, window_strides=(2, 2),
                                     padding=((1, 1), (1, 1)), dimension_numbers=dn)
        h = h + b[None, :, None, None]
        h = jnp.where(h > 0, h, NEG_SLOPE * h)
    out_src = lax.conv_general_dilated(h, params["w_dis"], (1, 1), "VALID",
                                       dimension_numbers=dn)
    out_cls = lax.conv_general_dilated(h, params["w_clf"], (1, 1), "VALID",
                                       dimension_numbers=dn)
    return out_src, out_cls.reshape(out_cls.shape[0], out_cls.shape[1])


# ----------------------------------- main -------------------------------------
if __name__ == "__main__":
    INPUT_SIZE = (32, 64)     # divisible by 2**repeat_num
    CONV_DIM = 8
    REPEAT_NUM = 5
    NUM_SPEAKERS = 10
    BATCH = 2

    key = jax.random.PRNGKey(0)
    key, kx = jax.random.split(key)
    x = jax.random.normal(kx, (BATCH, 1, INPUT_SIZE[0], INPUT_SIZE[1]), jnp.float32)
    params = init_params(key, CONV_DIM, REPEAT_NUM, NUM_SPEAKERS, INPUT_SIZE)

    fwd = jax.jit(discriminator_forward)
    out_src, out_cls = jax.block_until_ready(fwd(x, params))
    ref_src, ref_cls = jax.block_until_ready(reference_forward(x, params))

    assert out_src.shape == (BATCH, 1, 1, 1), out_src.shape
    assert out_cls.shape == (BATCH, NUM_SPEAKERS), out_cls.shape
    # bf16 MXU operands with f32 accumulation -> loosened tolerance vs f32 reference.
    assert jnp.allclose(out_src, ref_src, atol=2e-2, rtol=2e-2)
    assert jnp.allclose(out_cls, ref_cls, atol=2e-2, rtol=2e-2)

    print("KERNEL_OK")
</pallas_src>

<mosaic_0001>
module attributes {stable_mosaic.version = 11 : i64} {
  func.func @_disc_kernel(%arg0: i32, %arg1: memref<1x32x64xf32, #tpu.memory_space<vmem>>, %arg2: memref<4x64x256xbf16, #tpu.memory_space<vmem>>, %arg3: memref<4x256x256xbf16, #tpu.memory_space<vmem>>, %arg4: memref<4x256x256xbf16, #tpu.memory_space<vmem>>, %arg5: memref<4x256x256xbf16, #tpu.memory_space<vmem>>, %arg6: memref<4x256x256xbf16, #tpu.memory_space<vmem>>, %arg7: memref<1x256xf32, #tpu.memory_space<vmem>>, %arg8: memref<1x256xf32, #tpu.memory_space<vmem>>, %arg9: memref<1x256xf32, #tpu.memory_space<vmem>>, %arg10: memref<1x256xf32, #tpu.memory_space<vmem>>, %arg11: memref<1x256xf32, #tpu.memory_space<vmem>>, %arg12: memref<1x256x11xbf16, #tpu.memory_space<vmem>>, %arg13: memref<1x1x11xf32, #tpu.memory_space<vmem>>) attributes {dimension_semantics = [#tpu.dimension_semantics<parallel>], iteration_bounds = array<i64: 2>, scalar_prefetch = 0 : i64, scratch_operands = 0 : i64, tpu.core_type = #tpu.core_type<tc>, window_params = [{transform_indices = @transform_0, window_bounds = array<i64: 1, 32, 64>}, {pipeline_mode = #tpu.pipeline_mode<synchronous>, transform_indices = @transform_1, window_bounds = array<i64: 4, 64, 256>}, {pipeline_mode = #tpu.pipeline_mode<synchronous>, transform_indices = @transform_2, window_bounds = array<i64: 4, 256, 256>}, {pipeline_mode = #tpu.pipeline_mode<synchronous>, transform_indices = @transform_3, window_bounds = array<i64: 4, 256, 256>}, {pipeline_mode = #tpu.pipeline_mode<synchronous>, transform_indices = @transform_4, window_bounds = array<i64: 4, 256, 256>}, {pipeline_mode = #tpu.pipeline_mode<synchronous>, transform_indices = @transform_5, window_bounds = array<i64: 4, 256, 256>}, {pipeline_mode = #tpu.pipeline_mode<synchronous>, transform_indices = @transform_6, window_bounds = array<i64: 1, 256>}, {pipeline_mode = #tpu.pipeline_mode<synchronous>, transform_indices = @transform_7, window_bounds = array<i64: 1, 256>}, {pipeline_mode = #tpu.pipeline_mode<synchronous>, transform_indices = @transform_8, window_bounds = array<i64: 1, 256>}, {pipeline_mode = #tpu.pipeline_mode<synchronous>, transform_indices = @transform_9, window_bounds = array<i64: 1, 256>}, {pipeline_mode = #tpu.pipeline_mode<synchronous>, transform_indices = @transform_10, window_bounds = array<i64: 1, 256>}, {pipeline_mode = #tpu.pipeline_mode<synchronous>, transform_indices = @transform_11, window_bounds = array<i64: 1, 256, 11>}, {transform_indices = @transform_12, window_bounds = array<i64: 1, 1, 11>}]} {
    %c0 = arith.constant 0 : index
    %c0_0 = arith.constant 0 : index
    %c0_1 = arith.constant 0 : index
    %0 = vector.load %arg1[%c0, %c0_0, %c0_1] : memref<1x32x64xf32, #tpu.memory_space<vmem>>, vector<1x32x64xf32>
    %1 = vector.shape_cast %0 : vector<1x32x64xf32> to vector<32x64xf32>
    %2 = tpu.iota {dimensions = array<i32: 0>} : vector<17x32xi32>
    %3 = tpu.iota {dimensions = array<i32: 1>} : vector<17x32xi32>
    %c1_i32 = arith.constant 1 : i32
    %4 = vector.broadcast %c1_i32 : i32 to vector<17x32xi32>
    %5 = arith.cmpi sge, %2, %4 : vector<17x32xi32>
    %c2_i32 = arith.constant 2 : i32
    %6 = vector.broadcast %c2_i32 : i32 to vector<17x32xi32>
    %7 = arith.muli %6, %2 : vector<17x32xi32>
    %c1_i32_2 = arith.constant 1 : i32
    %8 = vector.broadcast %c1_i32_2 : i32 to vector<17x32xi32>
    %9 = arith.subi %7, %8 : vector<17x32xi32>
    %10 = arith.cmpi eq, %3, %9 : vector<17x32xi32>
    %11 = arith.andi %5, %10 : vector<17x32xi1>
    %cst = arith.constant 1.000000e+00 : f32
    %cst_3 = arith.constant 0.000000e+00 : f32
    %12 = vector.broadcast %cst : f32 to vector<17x32xf32>
    %13 = vector.broadcast %cst_3 : f32 to vector<17x32xf32>
    %14 = arith.select %11, %12, %13 : vector<17x32xi1>, vector<17x32xf32>
    %c16_i32 = arith.constant 16 : i32
    %15 = vector.broadcast %c16_i32 : i32 to vector<17x32xi32>
    %16 = arith.cmpi slt, %2, %15 : vector<17x32xi32>
    %c2_i32_4 = arith.constant 2 : i32
    %17 = vector.broadcast %c2_i32_4 : i32 to vector<17x32xi32>
    %18 = arith.muli %17, %2 : vector<17x32xi32>
    %19 = arith.cmpi eq, %3, %18 : vector<17x32xi32>
    %20 = arith.andi %16, %19 : vector<17x32xi1>
    %cst_5 = arith.constant 1.000000e+00 : f32
    %cst_6 = arith.constant 0.000000e+00 : f32
    %21 = vector.broadcast %cst_5 : f32 to vector<17x32xf32>
    %22 = vector.broadcast %cst_6 : f32 to vector<17x32xf32>
    %23 = arith.select %20, %21, %22 : vector<17x32xi1>, vector<17x32xf32>
    %cst_7 = arith.constant dense<0.000000e+00> : vector<17x64xf32>
    %24 = tpu.matmul %14, %1, %cst_7 {dimension_numbers = #tpu.dot_dimension_numbers<[1], [0], [0], [1], [0, 0, 1, 1], [], []>} : vector<17x32xf32>, vector<32x64xf32>, vector<17x64xf32> -> vector<17x64xf32>
    %cst_8 = arith.constant dense<0.000000e+00> : vector<17x64xf32>
    %25 = tpu.matmul %23, %1, %cst_8 {dimension_numbers = #tpu.dot_dimension_numbers<[1], [0], [0], [1], [0, 0, 1, 1], [], []>} : vector<17x32xf32>, vector<32x64xf32>, vector<17x64xf32> -> vector<17x64xf32>
    %cst_9 = arith.constant 0.000000e+00 : f32
    %26 = vector.broadcast %cst_9 : f32 to vector<16x256xf32>
    %27 = vector.extract_strided_slice %24 {offsets = [0, 0], sizes = [16, 64], strides = [1, 1]} : vector<17x64xf32> to vector<16x64xf32>
    %28 = arith.truncf %27 : vector<16x64xf32> to vector<16x64xbf16>
    %c0_10 = arith.constant 0 : index
    %c0_11 = arith.constant 0 : index
    %c0_12 = arith.constant 0 : index
    %29 = vector.load %arg2[%c0_10, %c0_11, %c0_12] : memref<4x64x256xbf16, #tpu.memory_space<vmem>>, vector<1x64x256xbf16>
    %30 = vector.shape_cast %29 : vector<1x64x256xbf16> to vector<64x256xbf16>
    %cst_13 = arith.constant dense<0.000000e+00> : vector<16x256xf32>
    %31 = tpu.matmul %28, %30, %cst_13 {dimension_numbers = #tpu.dot_dimension_numbers<[1], [0], [0], [1], [0, 0, 1, 1], [], []>} : vector<16x64xbf16>, vector<64x256xbf16>, vector<16x256xf32> -> vector<16x256xf32>
    %32 = arith.addf %26, %31 : vector<16x256xf32>
    %33 = vector.extract_strided_slice %25 {offsets = [0, 0], sizes = [16, 64], strides = [1, 1]} : vector<17x64xf32> to vector<16x64xf32>
    %34 = arith.truncf %33 : vector<16x64xf32> to vector<16x64xbf16>
    %c1 = arith.constant 1 : index
    %c0_14 = arith.constant 0 : index
    %c0_15 = arith.constant 0 : index
    %35 = vector.load %arg2[%c1, %c0_14, %c0_15] : memref<4x64x256xbf16, #tpu.memory_space<vmem>>, vector<1x64x256xbf16>
    %36 = vector.shape_cast %35 : vector<1x64x256xbf16> to vector<64x256xbf16>
    %cst_16 = arith.constant dense<0.000000e+00> : vector<16x256xf32>
    %37 = tpu.matmul %34, %36, %cst_16 {dimension_numbers = #tpu.dot_dimension_numbers<[1], [0], [0], [1], [0, 0, 1, 1], [], []>} : vector<16x64xbf16>, vector<64x256xbf16>, vector<16x256xf32> -> vector<16x256xf32>
    %38 = arith.addf %32, %37 : vector<16x256xf32>
    %39 = vector.extract_strided_slice %24 {offsets = [1, 0], sizes = [16, 64], strides = [1, 1]} : vector<17x64xf32> to vector<16x64xf32>
    %40 = arith.truncf %39 : vector<16x64xf32> to vector<16x64xbf16>
    %c2 = arith.constant 2 : index
    %c0_17 = arith.constant 0 : index
    %c0_18 = arith.constant 0 : index
    %41 = vector.load %arg2[%c2, %c0_17, %c0_18] : memref<4x64x256xbf16, #tpu.memory_space<vmem>>, vector<1x64x256xbf16>
    %42 = vector.shape_cast %41 : vector<1x64x256xbf16> to vector<64x256xbf16>
    %cst_19 = arith.constant dense<0.000000e+00> : vector<16x256xf32>
    %43 = tpu.matmul %40, %42, %cst_19 {dimension_numbers = #tpu.dot_dimension_numbers<[1], [0], [0], [1], [0, 0, 1, 1], [], []>} : vector<16x64xbf16>, vector<64x256xbf16>, vector<16x256xf32> -> vector<16x256xf32>
    %44 = arith.addf %38, %43 : vector<16x256xf32>
    %45 = vector.extract_strided_slice %25 {offsets = [1, 0], sizes = [16, 64], strides = [1, 1]} : vector<17x64xf32> to vector<16x64xf32>
    %46 = arith.truncf %45 : vector<16x64xf32> to vector<16x64xbf16>
    %c3 = arith.constant 3 : index
    %c0_20 = arith.constant 0 : index
    %c0_21 = arith.constant 0 : index
    %47 = vector.load %arg2[%c3, %c0_20, %c0_21] : memref<4x64x256xbf16, #tpu.memory_space<vmem>>, vector<1x64x256xbf16>
    %48 = vector.shape_cast %47 : vector<1x64x256xbf16> to vector<64x256xbf16>
    %cst_22 = arith.constant dense<0.000000e+00> : vector<16x256xf32>
    %49 = tpu.matmul %46, %48, %cst_22 {dimension_numbers = #tpu.dot_dimension_numbers<[1], [0], [0], [1], [0, 0, 1, 1], [], []>} : vector<16x64xbf16>, vector<64x256xbf16>, vector<16x256xf32> -> vector<16x256xf32>
    %50 = arith.addf %44, %49 : vector<16x256xf32>
    %c0_23 = arith.constant 0 : index
    %c0_24 = arith.constant 0 : index
    %51 = vector.load %arg7[%c0_23, %c0_24] : memref<1x256xf32, #tpu.memory_space<vmem>>, vector<1x256xf32>
    %52 = vector.broadcast %51 : vector<1x256xf32> to vector<16x256xf32>
    %53 = arith.addf %50, %52 : vector<16x256xf32>
    %cst_25 = arith.constant 0.000000e+00 : f32
    %54 = vector.broadcast %cst_25 : f32 to vector<16x256xf32>
    %55 = arith.cmpf ogt, %53, %54 : vector<16x256xf32>
    %cst_26 = arith.constant 0.00999999977 : f32
    %56 = vector.broadcast %cst_26 : f32 to vector<16x256xf32>
    %57 = arith.mulf %56, %53 : vector<16x256xf32>
    %58 = arith.select %55, %53, %57 : vector<16x256xi1>, vector<16x256xf32>
    %59 = tpu.iota {dimensions = array<i32: 0>} : vector<9x16xi32>
    %60 = tpu.iota {dimensions = array<i32: 1>} : vector<9x16xi32>
    %c1_i32_27 = arith.constant 1 : i32
    %61 = vector.broadcast %c1_i32_27 : i32 to vector<9x16xi32>
    %62 = arith.cmpi sge, %59, %61 : vector<9x16xi32>
    %c2_i32_28 = arith.constant 2 : i32
    %63 = vector.broadcast %c2_i32_28 : i32 to vector<9x16xi32>
    %64 = arith.muli %63, %59 : vector<9x16xi32>
    %c1_i32_29 = arith.constant 1 : i32
    %65 = vector.broadcast %c1_i32_29 : i32 to vector<9x16xi32>
    %66 = arith.subi %64, %65 : vector<9x16xi32>
    %67 = arith.cmpi eq, %60, %66 : vector<9x16xi32>
    %68 = arith.andi %62, %67 : vector<9x16xi1>
    %cst_30 = arith.constant 1.000000e+00 : f32
    %cst_31 = arith.constant 0.000000e+00 : f32
    %69 = vector.broadcast %cst_30 : f32 to vector<9x16xf32>
    %70 = vector.broadcast %cst_31 : f32 to vector<9x16xf32>
    %71 = arith.select %68, %69, %70 : vector<9x16xi1>, vector<9x16xf32>
    %c8_i32 = arith.constant 8 : i32
    %72 = vector.broadcast %c8_i32 : i32 to vector<9x16xi32>
    %73 = arith.cmpi slt, %59, %72 : vector<9x16xi32>
    %c2_i32_32 = arith.constant 2 : i32
    %74 = vector.broadcast %c2_i32_32 : i32 to vector<9x16xi32>
    %75 = arith.muli %74, %59 : vector<9x16xi32>
    %76 = arith.cmpi eq, %60, %75 : vector<9x16xi32>
    %77 = arith.andi %73, %76 : vector<9x16xi1>
    %cst_33 = arith.constant 1.000000e+00 : f32
    %cst_34 = arith.constant 0.000000e+00 : f32
    %78 = vector.broadcast %cst_33 : f32 to vector<9x16xf32>
    %79 = vector.broadcast %cst_34 : f32 to vector<9x16xf32>
    %80 = arith.select %77, %78, %79 : vector<9x16xi1>, vector<9x16xf32>
    %cst_35 = arith.constant dense<0.000000e+00> : vector<9x256xf32>
    %81 = tpu.matmul %71, %58, %cst_35 {dimension_numbers = #tpu.dot_dimension_numbers<[1], [0], [0], [1], [0, 0, 1, 1], [], []>} : vector<9x16xf32>, vector<16x256xf32>, vector<9x256xf32> -> vector<9x256xf32>
    %cst_36 = arith.constant dense<0.000000e+00> : vector<9x256xf32>
    %82 = tpu.matmul %80, %58, %cst_36 {dimension_numbers = #tpu.dot_dimension_numbers<[1], [0], [0], [1], [0, 0, 1, 1], [], []>} : vector<9x16xf32>, vector<16x256xf32>, vector<9x256xf32> -> vector<9x256xf32>
    %cst_37 = arith.constant 0.000000e+00 : f32
    %83 = vector.broadcast %cst_37 : f32 to vector<8x256xf32>
    %84 = vector.extract_strided_slice %81 {offsets = [0, 0], sizes = [8, 256], strides = [1, 1]} : vector<9x256xf32> to vector<8x256xf32>
    %85 = arith.truncf %84 : vector<8x256xf32> to vector<8x256xbf16>
    %c0_38 = arith.constant 0 : index
    %c0_39 = arith.constant 0 : index
    %c0_40 = arith.constant 0 : index
    %86 = vector.load %arg3[%c0_38, %c0_39, %c0_40] : memref<4x256x256xbf16, #tpu.memory_space<vmem>>, vector<1x256x256xbf16>
    %87 = vector.shape_cast %86 : vector<1x256x256xbf16> to vector<256x256xbf16>
    %cst_41 = arith.constant dense<0.000000e+00> : vector<8x256xf32>
    %88 = tpu.matmul %85, %87, %cst_41 {dimension_numbers = #tpu.dot_dimension_numbers<[1], [0], [0], [1], [0, 0, 1, 1], [], []>} : vector<8x256xbf16>, vector<256x256xbf16>, vector<8x256xf32> -> vector<8x256xf32>
    %89 = arith.addf %83, %88 : vector<8x256xf32>
    %90 = vector.extract_strided_slice %82 {offsets = [0, 0], sizes = [8, 256], strides = [1, 1]} : vector<9x256xf32> to vector<8x256xf32>
    %91 = arith.truncf %90 : vector<8x256xf32> to vector<8x256xbf16>
    %c1_42 = arith.constant 1 : index
    %c0_43 = arith.constant 0 : index
    %c0_44 = arith.constant 0 : index
    %92 = vector.load %arg3[%c1_42, %c0_43, %c0_44] : memref<4x256x256xbf16, #tpu.memory_space<vmem>>, vector<1x256x256xbf16>
    %93 = vector.shape_cast %92 : vector<1x256x256xbf16> to vector<256x256xbf16>
    %cst_45 = arith.constant dense<0.000000e+00> : vector<8x256xf32>
    %94 = tpu.matmul %91, %93, %cst_45 {dimension_numbers = #tpu.dot_dimension_numbers<[1], [0], [0], [1], [0, 0, 1, 1], [], []>} : vector<8x256xbf16>, vector<256x256xbf16>, vector<8x256xf32> -> vector<8x256xf32>
    %95 = arith.addf %89, %94 : vector<8x256xf32>
    %96 = vector.extract_strided_slice %81 {offsets = [1, 0], sizes = [8, 256], strides = [1, 1]} : vector<9x256xf32> to vector<8x256xf32>
    %97 = arith.truncf %96 : vector<8x256xf32> to vector<8x256xbf16>
    %c2_46 = arith.constant 2 : index
    %c0_47 = arith.constant 0 : index
    %c0_48 = arith.constant 0 : index
    %98 = vector.load %arg3[%c2_46, %c0_47, %c0_48] : memref<4x256x256xbf16, #tpu.memory_space<vmem>>, vector<1x256x256xbf16>
    %99 = vector.shape_cast %98 : vector<1x256x256xbf16> to vector<256x256xbf16>
    %cst_49 = arith.constant dense<0.000000e+00> : vector<8x256xf32>
    %100 = tpu.matmul %97, %99, %cst_49 {dimension_numbers = #tpu.dot_dimension_numbers<[1], [0], [0], [1], [0, 0, 1, 1], [], []>} : vector<8x256xbf16>, vector<256x256xbf16>, vector<8x256xf32> -> vector<8x256xf32>
    %101 = arith.addf %95, %100 : vector<8x256xf32>
    %102 = vector.extract_strided_slice %82 {offsets = [1, 0], sizes = [8, 256], strides = [1, 1]} : vector<9x256xf32> to vector<8x256xf32>
    %103 = arith.truncf %102 : vector<8x256xf32> to vector<8x256xbf16>
    %c3_50 = arith.constant 3 : index
    %c0_51 = arith.constant 0 : index
    %c0_52 = arith.constant 0 : index
    %104 = vector.load %arg3[%c3_50, %c0_51, %c0_52] : memref<4x256x256xbf16, #tpu.memory_space<vmem>>, vector<1x256x256xbf16>
    %105 = vector.shape_cast %104 : vector<1x256x256xbf16> to vector<256x256xbf16>
    %cst_53 = arith.constant dense<0.000000e+00> : vector<8x256xf32>
    %106 = tpu.matmul %103, %105, %cst_53 {dimension_numbers = #tpu.dot_dimension_numbers<[1], [0], [0], [1], [0, 0, 1, 1], [], []>} : vector<8x256xbf16>, vector<256x256xbf16>, vector<8x256xf32> -> vector<8x256xf32>
    %107 = arith.addf %101, %106 : vector<8x256xf32>
    %c0_54 = arith.constant 0 : index
    %c0_55 = arith.constant 0 : index
    %108 = vector.load %arg8[%c0_54, %c0_55] : memref<1x256xf32, #tpu.memory_space<vmem>>, vector<1x256xf32>
    %109 = vector.broadcast %108 : vector<1x256xf32> to vector<8x256xf32>
    %110 = arith.addf %107, %109 : vector<8x256xf32>
    %cst_56 = arith.constant 0.000000e+00 : f32
    %111 = vector.broadcast %cst_56 : f32 to vector<8x256xf32>
    %112 = arith.cmpf ogt, %110, %111 : vector<8x256xf32>
    %cst_57 = arith.constant 0.00999999977 : f32
    %113 = vector.broadcast %cst_57 : f32 to vector<8x256xf32>
    %114 = arith.mulf %113, %110 : vector<8x256xf32>
    %115 = arith.select %112, %110, %114 : vector<8x256xi1>, vector<8x256xf32>
    %116 = tpu.iota {dimensions = array<i32: 0>} : vector<5x8xi32>
    %117 = tpu.iota {dimensions = array<i32: 1>} : vector<5x8xi32>
    %c1_i32_58 = arith.constant 1 : i32
    %118 = vector.broadcast %c1_i32_58 : i32 to vector<5x8xi32>
    %119 = arith.cmpi sge, %116, %118 : vector<5x8xi32>
    %c2_i32_59 = arith.constant 2 : i32
    %120 = vector.broadcast %c2_i32_59 : i32 to vector<5x8xi32>
    %121 = arith.muli %120, %116 : vector<5x8xi32>
    %c1_i32_60 = arith.constant 1 : i32
    %122 = vector.broadcast %c1_i32_60 : i32 to vector<5x8xi32>
    %123 = arith.subi %121, %122 : vector<5x8xi32>
    %124 = arith.cmpi eq, %117, %123 : vector<5x8xi32>
    %125 = arith.andi %119, %124 : vector<5x8xi1>
    %cst_61 = arith.constant 1.000000e+00 : f32
    %cst_62 = arith.constant 0.000000e+00 : f32
    %126 = vector.broadcast %cst_61 : f32 to vector<5x8xf32>
    %127 = vector.broadcast %cst_62 : f32 to vector<5x8xf32>
    %128 = arith.select %125, %126, %127 : vector<5x8xi1>, vector<5x8xf32>
    %c4_i32 = arith.constant 4 : i32
    %129 = vector.broadcast %c4_i32 : i32 to vector<5x8xi32>
    %130 = arith.cmpi slt, %116, %129 : vector<5x8xi32>
    %c2_i32_63 = arith.constant 2 : i32
    %131 = vector.broadcast %c2_i32_63 : i32 to vector<5x8xi32>
    %132 = arith.muli %131, %116 : vector<5x8xi32>
    %133 = arith.cmpi eq, %117, %132 : vector<5x8xi32>
    %134 = arith.andi %130, %133 : vector<5x8xi1>
    %cst_64 = arith.constant 1.000000e+00 : f32
    %cst_65 = arith.constant 0.000000e+00 : f32
    %135 = vector.broadcast %cst_64 : f32 to vector<5x8xf32>
    %136 = vector.broadcast %cst_65 : f32 to vector<5x8xf32>
    %137 = arith.select %134, %135, %136 : vector<5x8xi1>, vector<5x8xf32>
    %cst_66 = arith.constant dense<0.000000e+00> : vector<5x256xf32>
    %138 = tpu.matmul %128, %115, %cst_66 {dimension_numbers = #tpu.dot_dimension_numbers<[1], [0], [0], [1], [0, 0, 1, 1], [], []>} : vector<5x8xf32>, vector<8x256xf32>, vector<5x256xf32> -> vector<5x256xf32>
    %cst_67 = arith.constant dense<0.000000e+00> : vector<5x256xf32>
    %139 = tpu.matmul %137, %115, %cst_67 {dimension_numbers = #tpu.dot_dimension_numbers<[1], [0], [0], [1], [0, 0, 1, 1], [], []>} : vector<5x8xf32>, vector<8x256xf32>, vector<5x256xf32> -> vector<5x256xf32>
    %cst_68 = arith.constant 0.000000e+00 : f32
    %140 = vector.broadcast %cst_68 : f32 to vector<4x256xf32>
    %141 = vector.extract_strided_slice %138 {offsets = [0, 0], sizes = [4, 256], strides = [1, 1]} : vector<5x256xf32> to vector<4x256xf32>
    %142 = arith.truncf %141 : vector<4x256xf32> to vector<4x256xbf16>
    %c0_69 = arith.constant 0 : index
    %c0_70 = arith.constant 0 : index
    %c0_71 = arith.constant 0 : index
    %143 = vector.load %arg4[%c0_69, %c0_70, %c0_71] : memref<4x256x256xbf16, #tpu.memory_space<vmem>>, vector<1x256x256xbf16>
    %144 = vector.shape_cast %143 : vector<1x256x256xbf16> to vector<256x256xbf16>
    %cst_72 = arith.constant dense<0.000000e+00> : vector<4x256xf32>
    %145 = tpu.matmul %142, %144, %cst_72 {dimension_numbers = #tpu.dot_dimension_numbers<[1], [0], [0], [1], [0, 0, 1, 1], [], []>} : vector<4x256xbf16>, vector<256x256xbf16>, vector<4x256xf32> -> vector<4x256xf32>
    %146 = arith.addf %140, %145 : vector<4x256xf32>
    %147 = vector.extract_strided_slice %139 {offsets = [0, 0], sizes = [4, 256], strides = [1, 1]} : vector<5x256xf32> to vector<4x256xf32>
    %148 = arith.truncf %147 : vector<4x256xf32> to vector<4x256xbf16>
    %c1_73 = arith.constant 1 : index
    %c0_74 = arith.constant 0 : index
    %c0_75 = arith.constant 0 : index
    %149 = vector.load %arg4[%c1_73, %c0_74, %c0_75] : memref<4x256x256xbf16, #tpu.memory_space<vmem>>, vector<1x256x256xbf16>
    %150 = vector.shape_cast %149 : vector<1x256x256xbf16> to vector<256x256xbf16>
    %cst_76 = arith.constant dense<0.000000e+00> : vector<4x256xf32>
    %151 = tpu.matmul %148, %150, %cst_76 {dimension_numbers = #tpu.dot_dimension_numbers<[1], [0], [0], [1], [0, 0, 1, 1], [], []>} : vector<4x256xbf16>, vector<256x256xbf16>, vector<4x256xf32> -> vector<4x256xf32>
    %152 = arith.addf %146, %151 : vector<4x256xf32>
    %153 = vector.extract_strided_slice %138 {offsets = [1, 0], sizes = [4, 256], strides = [1, 1]} : vector<5x256xf32> to vector<4x256xf32>
    %154 = arith.truncf %153 : vector<4x256xf32> to vector<4x256xbf16>
    %c2_77 = arith.constant 2 : index
    %c0_78 = arith.constant 0 : index
    %c0_79 = arith.constant 0 : index
    %155 = vector.load %arg4[%c2_77, %c0_78, %c0_79] : memref<4x256x256xbf16, #tpu.memory_space<vmem>>, vector<1x256x256xbf16>
    %156 = vector.shape_cast %155 : vector<1x256x256xbf16> to vector<256x256xbf16>
    %cst_80 = arith.constant dense<0.000000e+00> : vector<4x256xf32>
    %157 = tpu.matmul %154, %156, %cst_80 {dimension_numbers = #tpu.dot_dimension_numbers<[1], [0], [0], [1], [0, 0, 1, 1], [], []>} : vector<4x256xbf16>, vector<256x256xbf16>, vector<4x256xf32> -> vector<4x256xf32>
    %158 = arith.addf %152, %157 : vector<4x256xf32>
    %159 = vector.extract_strided_slice %139 {offsets = [1, 0], sizes = [4, 256], strides = [1, 1]} : vector<5x256xf32> to vector<4x256xf32>
    %160 = arith.truncf %159 : vector<4x256xf32> to vector<4x256xbf16>
    %c3_81 = arith.constant 3 : index
    %c0_82 = arith.constant 0 : index
    %c0_83 = arith.constant 0 : index
    %161 = vector.load %arg4[%c3_81, %c0_82, %c0_83] : memref<4x256x256xbf16, #tpu.memory_space<vmem>>, vector<1x256x256xbf16>
    %162 = vector.shape_cast %161 : vector<1x256x256xbf16> to vector<256x256xbf16>
    %cst_84 = arith.constant dense<0.000000e+00> : vector<4x256xf32>
    %163 = tpu.matmul %160, %162, %cst_84 {dimension_numbers = #tpu.dot_dimension_numbers<[1], [0], [0], [1], [0, 0, 1, 1], [], []>} : vector<4x256xbf16>, vector<256x256xbf16>, vector<4x256xf32> -> vector<4x256xf32>
    %164 = arith.addf %158, %163 : vector<4x256xf32>
    %c0_85 = arith.constant 0 : index
    %c0_86 = arith.constant 0 : index
    %165 = vector.load %arg9[%c0_85, %c0_86] : memref<1x256xf32, #tpu.memory_space<vmem>>, vector<1x256xf32>
    %166 = vector.broadcast %165 : vector<1x256xf32> to vector<4x256xf32>
    %167 = arith.addf %164, %166 : vector<4x256xf32>
    %cst_87 = arith.constant 0.000000e+00 : f32
    %168 = vector.broadcast %cst_87 : f32 to vector<4x256xf32>
    %169 = arith.cmpf ogt, %167, %168 : vector<4x256xf32>
    %cst_88 = arith.constant 0.00999999977 : f32
    %170 = vector.broadcast %cst_88 : f32 to vector<4x256xf32>
    %171 = arith.mulf %170, %167 : vector<4x256xf32>
    %172 = arith.select %169, %167, %171 : vector<4x256xi1>, vector<4x256xf32>
    %173 = tpu.iota {dimensions = array<i32: 0>} : vector<3x4xi32>
    %174 = tpu.iota {dimensions = array<i32: 1>} : vector<3x4xi32>
    %c1_i32_89 = arith.constant 1 : i32
    %175 = vector.broadcast %c1_i32_89 : i32 to vector<3x4xi32>
    %176 = arith.cmpi sge, %173, %175 : vector<3x4xi32>
    %c2_i32_90 = arith.constant 2 : i32
    %177 = vector.broadcast %c2_i32_90 : i32 to vector<3x4xi32>
    %178 = arith.muli %177, %173 : vector<3x4xi32>
    %c1_i32_91 = arith.constant 1 : i32
    %179 = vector.broadcast %c1_i32_91 : i32 to vector<3x4xi32>
    %180 = arith.subi %178, %179 : vector<3x4xi32>
    %181 = arith.cmpi eq, %174, %180 : vector<3x4xi32>
    %182 = arith.andi %176, %181 : vector<3x4xi1>
    %cst_92 = arith.constant 1.000000e+00 : f32
    %cst_93 = arith.constant 0.000000e+00 : f32
    %183 = vector.broadcast %cst_92 : f32 to vector<3x4xf32>
    %184 = vector.broadcast %cst_93 : f32 to vector<3x4xf32>
    %185 = arith.select %182, %183, %184 : vector<3x4xi1>, vector<3x4xf32>
    %c2_i32_94 = arith.constant 2 : i32
    %186 = vector.broadcast %c2_i32_94 : i32 to vector<3x4xi32>
    %187 = arith.cmpi slt, %173, %186 : vector<3x4xi32>
    %c2_i32_95 = arith.constant 2 : i32
    %188 = vector.broadcast %c2_i32_95 : i32 to vector<3x4xi32>
    %189 = arith.muli %188, %173 : vector<3x4xi32>
    %190 = arith.cmpi eq, %174, %189 : vector<3x4xi32>
    %191 = arith.andi %187, %190 : vector<3x4xi1>
    %cst_96 = arith.constant 1.000000e+00 : f32
    %cst_97 = arith.constant 0.000000e+00 : f32
    %192 = vector.broadcast %cst_96 : f32 to vector<3x4xf32>
    %193 = vector.broadcast %cst_97 : f32 to vector<3x4xf32>
    %194 = arith.select %191, %192, %193 : vector<3x4xi1>, vector<3x4xf32>
    %cst_98 = arith.constant dense<0.000000e+00> : vector<3x256xf32>
    %195 = tpu.matmul %185, %172, %cst_98 {dimension_numbers = #tpu.dot_dimension_numbers<[1], [0], [0], [1], [0, 0, 1, 1], [], []>} : vector<3x4xf32>, vector<4x256xf32>, vector<3x256xf32> -> vector<3x256xf32>
    %cst_99 = arith.constant dense<0.000000e+00> : vector<3x256xf32>
    %196 = tpu.matmul %194, %172, %cst_99 {dimension_numbers = #tpu.dot_dimension_numbers<[1], [0], [0], [1], [0, 0, 1, 1], [], []>} : vector<3x4xf32>, vector<4x256xf32>, vector<3x256xf32> -> vector<3x256xf32>
    %cst_100 = arith.constant 0.000000e+00 : f32
    %197 = vector.broadcast %cst_100 : f32 to vector<2x256xf32>
    %198 = vector.extract_strided_slice %195 {offsets = [0, 0], sizes = [2, 256], strides = [1, 1]} : vector<3x256xf32> to vector<2x256xf32>
    %199 = arith.truncf %198 : vector<2x256xf32> to vector<2x256xbf16>
    %c0_101 = arith.constant 0 : index
    %c0_102 = arith.constant 0 : index
    %c0_103 = arith.constant 0 : index
    %200 = vector.load %arg5[%c0_101, %c0_102, %c0_103] : memref<4x256x256xbf16, #tpu.memory_space<vmem>>, vector<1x256x256xbf16>
    %201 = vector.shape_cast %200 : vector<1x256x256xbf16> to vector<256x256xbf16>
    %cst_104 = arith.constant dense<0.000000e+00> : vector<2x256xf32>
    %202 = tpu.matmul %199, %201, %cst_104 {dimension_numbers = #tpu.dot_dimension_numbers<[1], [0], [0], [1], [0, 0, 1, 1], [], []>} : vector<2x256xbf16>, vector<256x256xbf16>, vector<2x256xf32> -> vector<2x256xf32>
    %203 = arith.addf %197, %202 : vector<2x256xf32>
    %204 = vector.extract_strided_slice %196 {offsets = [0, 0], sizes = [2, 256], strides = [1, 1]} : vector<3x256xf32> to vector<2x256xf32>
    %205 = arith.truncf %204 : vector<2x256xf32> to vector<2x256xbf16>
    %c1_105 = arith.constant 1 : index
    %c0_106 = arith.constant 0 : index
    %c0_107 = arith.constant 0 : index
    %206 = vector.load %arg5[%c1_105, %c0_106, %c0_107] : memref<4x256x256xbf16, #tpu.memory_space<vmem>>, vector<1x256x256xbf16>
    %207 = vector.shape_cast %206 : vector<1x256x256xbf16> to vector<256x256xbf16>
    %cst_108 = arith.constant dense<0.000000e+00> : vector<2x256xf32>
    %208 = tpu.matmul %205, %207, %cst_108 {dimension_numbers = #tpu.dot_dimension_numbers<[1], [0], [0], [1], [0, 0, 1, 1], [], []>} : vector<2x256xbf16>, vector<256x256xbf16>, vector<2x256xf32> -> vector<2x256xf32>
    %209 = arith.addf %203, %208 : vector<2x256xf32>
    %210 = vector.extract_strided_slice %195 {offsets = [1, 0], sizes = [2, 256], strides = [1, 1]} : vector<3x256xf32> to vector<2x256xf32>
    %211 = arith.truncf %210 : vector<2x256xf32> to vector<2x256xbf16>
    %c2_109 = arith.constant 2 : index
    %c0_110 = arith.constant 0 : index
    %c0_111 = arith.constant 0 : index
    %212 = vector.load %arg5[%c2_109, %c0_110, %c0_111] : memref<4x256x256xbf16, #tpu.memory_space<vmem>>, vector<1x256x256xbf16>
    %213 = vector.shape_cast %212 : vector<1x256x256xbf16> to vector<256x256xbf16>
    %cst_112 = arith.constant dense<0.000000e+00> : vector<2x256xf32>
    %214 = tpu.matmul %211, %213, %cst_112 {dimension_numbers = #tpu.dot_dimension_numbers<[1], [0], [0], [1], [0, 0, 1, 1], [], []>} : vector<2x256xbf16>, vector<256x256xbf16>, vector<2x256xf32> -> vector<2x256xf32>
    %215 = arith.addf %209, %214 : vector<2x256xf32>
    %216 = vector.extract_strided_slice %196 {offsets = [1, 0], sizes = [2, 256], strides = [1, 1]} : vector<3x256xf32> to vector<2x256xf32>
    %217 = arith.truncf %216 : vector<2x256xf32> to vector<2x256xbf16>
    %c3_113 = arith.constant 3 : index
    %c0_114 = arith.constant 0 : index
    %c0_115 = arith.constant 0 : index
    %218 = vector.load %arg5[%c3_113, %c0_114, %c0_115] : memref<4x256x256xbf16, #tpu.memory_space<vmem>>, vector<1x256x256xbf16>
    %219 = vector.shape_cast %218 : vector<1x256x256xbf16> to vector<256x256xbf16>
    %cst_116 = arith.constant dense<0.000000e+00> : vector<2x256xf32>
    %220 = tpu.matmul %217, %219, %cst_116 {dimension_numbers = #tpu.dot_dimension_numbers<[1], [0], [0], [1], [0, 0, 1, 1], [], []>} : vector<2x256xbf16>, vector<256x256xbf16>, vector<2x256xf32> -> vector<2x256xf32>
    %221 = arith.addf %215, %220 : vector<2x256xf32>
    %c0_117 = arith.constant 0 : index
    %c0_118 = arith.constant 0 : index
    %222 = vector.load %arg10[%c0_117, %c0_118] : memref<1x256xf32, #tpu.memory_space<vmem>>, vector<1x256xf32>
    %223 = vector.broadcast %222 : vector<1x256xf32> to vector<2x256xf32>
    %224 = arith.addf %221, %223 : vector<2x256xf32>
    %cst_119 = arith.constant 0.000000e+00 : f32
    %225 = vector.broadcast %cst_119 : f32 to vector<2x256xf32>
    %226 = arith.cmpf ogt, %224, %225 : vector<2x256xf32>
    %cst_120 = arith.constant 0.00999999977 : f32
    %227 = vector.broadcast %cst_120 : f32 to vector<2x256xf32>
    %228 = arith.mulf %227, %224 : vector<2x256xf32>
    %229 = arith.select %226, %224, %228 : vector<2x256xi1>, vector<2x256xf32>
    %230 = tpu.iota {dimensions = array<i32: 0>} : vector<2x2xi32>
    %231 = tpu.iota {dimensions = array<i32: 1>} : vector<2x2xi32>
    %c1_i32_121 = arith.constant 1 : i32
    %232 = vector.broadcast %c1_i32_121 : i32 to vector<2x2xi32>
    %233 = arith.cmpi sge, %230, %232 : vector<2x2xi32>
    %c2_i32_122 = arith.constant 2 : i32
    %234 = vector.broadcast %c2_i32_122 : i32 to vector<2x2xi32>
    %235 = arith.muli %234, %230 : vector<2x2xi32>
    %c1_i32_123 = arith.constant 1 : i32
    %236 = vector.broadcast %c1_i32_123 : i32 to vector<2x2xi32>
    %237 = arith.subi %235, %236 : vector<2x2xi32>
    %238 = arith.cmpi eq, %231, %237 : vector<2x2xi32>
    %239 = arith.andi %233, %238 : vector<2x2xi1>
    %cst_124 = arith.constant 1.000000e+00 : f32
    %cst_125 = arith.constant 0.000000e+00 : f32
    %240 = vector.broadcast %cst_124 : f32 to vector<2x2xf32>
    %241 = vector.broadcast %cst_125 : f32 to vector<2x2xf32>
    %242 = arith.select %239, %240, %241 : vector<2x2xi1>, vector<2x2xf32>
    %c1_i32_126 = arith.constant 1 : i32
    %243 = vector.broadcast %c1_i32_126 : i32 to vector<2x2xi32>
    %244 = arith.cmpi slt, %230, %243 : vector<2x2xi32>
    %c2_i32_127 = arith.constant 2 : i32
    %245 = vector.broadcast %c2_i32_127 : i32 to vector<2x2xi32>
    %246 = arith.muli %245, %230 : vector<2x2xi32>
    %247 = arith.cmpi eq, %231, %246 : vector<2x2xi32>
    %248 = arith.andi %244, %247 : vector<2x2xi1>
    %cst_128 = arith.constant 1.000000e+00 : f32
    %cst_129 = arith.constant 0.000000e+00 : f32
    %249 = vector.broadcast %cst_128 : f32 to vector<2x2xf32>
    %250 = vector.broadcast %cst_129 : f32 to vector<2x2xf32>
    %251 = arith.select %248, %249, %250 : vector<2x2xi1>, vector<2x2xf32>
    %cst_130 = arith.constant dense<0.000000e+00> : vector<2x256xf32>
    %252 = tpu.matmul %242, %229, %cst_130 {dimension_numbers = #tpu.dot_dimension_numbers<[1], [0], [0], [1], [0, 0, 1, 1], [], []>} : vector<2x2xf32>, vector<2x256xf32>, vector<2x256xf32> -> vector<2x256xf32>
    %cst_131 = arith.constant dense<0.000000e+00> : vector<2x256xf32>
    %253 = tpu.matmul %251, %229, %cst_131 {dimension_numbers = #tpu.dot_dimension_numbers<[1], [0], [0], [1], [0, 0, 1, 1], [], []>} : vector<2x2xf32>, vector<2x256xf32>, vector<2x256xf32> -> vector<2x256xf32>
    %cst_132 = arith.constant 0.000000e+00 : f32
    %254 = vector.broadcast %cst_132 : f32 to vector<1x256xf32>
    %255 = vector.extract_strided_slice %252 {offsets = [0, 0], sizes = [1, 256], strides = [1, 1]} : vector<2x256xf32> to vector<1x256xf32>
    %256 = arith.truncf %255 : vector<1x256xf32> to vector<1x256xbf16>
    %c0_133 = arith.constant 0 : index
    %c0_134 = arith.constant 0 : index
    %c0_135 = arith.constant 0 : index
    %257 = vector.load %arg6[%c0_133, %c0_134, %c0_135] : memref<4x256x256xbf16, #tpu.memory_space<vmem>>, vector<1x256x256xbf16>
    %258 = vector.shape_cast %257 : vector<1x256x256xbf16> to vector<256x256xbf16>
    %cst_136 = arith.constant dense<0.000000e+00> : vector<1x256xf32>
    %259 = tpu.matmul %256, %258, %cst_136 {dimension_numbers = #tpu.dot_dimension_numbers<[1], [0], [0], [1], [0, 0, 1, 1], [], []>} : vector<1x256xbf16>, vector<256x256xbf16>, vector<1x256xf32> -> vector<1x256xf32>
    %260 = arith.addf %254, %259 : vector<1x256xf32>
    %261 = vector.extract_strided_slice %253 {offsets = [0, 0], sizes = [1, 256], strides = [1, 1]} : vector<2x256xf32> to vector<1x256xf32>
    %262 = arith.truncf %261 : vector<1x256xf32> to vector<1x256xbf16>
    %c1_137 = arith.constant 1 : index
    %c0_138 = arith.constant 0 : index
    %c0_139 = arith.constant 0 : index
    %263 = vector.load %arg6[%c1_137, %c0_138, %c0_139] : memref<4x256x256xbf16, #tpu.memory_space<vmem>>, vector<1x256x256xbf16>
    %264 = vector.shape_cast %263 : vector<1x256x256xbf16> to vector<256x256xbf16>
    %cst_140 = arith.constant dense<0.000000e+00> : vector<1x256xf32>
    %265 = tpu.matmul %262, %264, %cst_140 {dimension_numbers = #tpu.dot_dimension_numbers<[1], [0], [0], [1], [0, 0, 1, 1], [], []>} : vector<1x256xbf16>, vector<256x256xbf16>, vector<1x256xf32> -> vector<1x256xf32>
    %266 = arith.addf %260, %265 : vector<1x256xf32>
    %267 = vector.extract_strided_slice %252 {offsets = [1, 0], sizes = [1, 256], strides = [1, 1]} : vector<2x256xf32> to vector<1x256xf32>
    %268 = arith.truncf %267 : vector<1x256xf32> to vector<1x256xbf16>
    %c2_141 = arith.constant 2 : index
    %c0_142 = arith.constant 0 : index
    %c0_143 = arith.constant 0 : index
    %269 = vector.load %arg6[%c2_141, %c0_142, %c0_143] : memref<4x256x256xbf16, #tpu.memory_space<vmem>>, vector<1x256x256xbf16>
    %270 = vector.shape_cast %269 : vector<1x256x256xbf16> to vector<256x256xbf16>
    %cst_144 = arith.constant dense<0.000000e+00> : vector<1x256xf32>
    %271 = tpu.matmul %268, %270, %cst_144 {dimension_numbers = #tpu.dot_dimension_numbers<[1], [0], [0], [1], [0, 0, 1, 1], [], []>} : vector<1x256xbf16>, vector<256x256xbf16>, vector<1x256xf32> -> vector<1x256xf32>
    %272 = arith.addf %266, %271 : vector<1x256xf32>
    %273 = vector.extract_strided_slice %253 {offsets = [1, 0], sizes = [1, 256], strides = [1, 1]} : vector<2x256xf32> to vector<1x256xf32>
    %274 = arith.truncf %273 : vector<1x256xf32> to vector<1x256xbf16>
    %c3_145 = arith.constant 3 : index
    %c0_146 = arith.constant 0 : index
    %c0_147 = arith.constant 0 : index
    %275 = vector.load %arg6[%c3_145, %c0_146, %c0_147] : memref<4x256x256xbf16, #tpu.memory_space<vmem>>, vector<1x256x256xbf16>
    %276 = vector.shape_cast %275 : vector<1x256x256xbf16> to vector<256x256xbf16>
    %cst_148 = arith.constant dense<0.000000e+00> : vector<1x256xf32>
    %277 = tpu.matmul %274, %276, %cst_148 {dimension_numbers = #tpu.dot_dimension_numbers<[1], [0], [0], [1], [0, 0, 1, 1], [], []>} : vector<1x256xbf16>, vector<256x256xbf16>, vector<1x256xf32> -> vector<1x256xf32>
    %278 = arith.addf %272, %277 : vector<1x256xf32>
    %c0_149 = arith.constant 0 : index
    %c0_150 = arith.constant 0 : index
    %279 = vector.load %arg11[%c0_149, %c0_150] : memref<1x256xf32, #tpu.memory_space<vmem>>, vector<1x256xf32>
    %280 = arith.addf %278, %279 : vector<1x256xf32>
    %cst_151 = arith.constant 0.000000e+00 : f32
    %281 = vector.broadcast %cst_151 : f32 to vector<1x256xf32>
    %282 = arith.cmpf ogt, %280, %281 : vector<1x256xf32>
    %cst_152 = arith.constant 0.00999999977 : f32
    %283 = vector.broadcast %cst_152 : f32 to vector<1x256xf32>
    %284 = arith.mulf %283, %280 : vector<1x256xf32>
    %285 = arith.select %282, %280, %284 : vector<1x256xi1>, vector<1x256xf32>
    %286 = arith.truncf %285 : vector<1x256xf32> to vector<1x256xbf16>
    %c0_153 = arith.constant 0 : index
    %c0_154 = arith.constant 0 : index
    %c0_155 = arith.constant 0 : index
    %287 = vector.load %arg12[%c0_153, %c0_154, %c0_155] : memref<1x256x11xbf16, #tpu.memory_space<vmem>>, vector<1x256x11xbf16>
    %288 = vector.shape_cast %287 : vector<1x256x11xbf16> to vector<256x11xbf16>
    %cst_156 = arith.constant dense<0.000000e+00> : vector<1x11xf32>
    %289 = tpu.matmul %286, %288, %cst_156 {dimension_numbers = #tpu.dot_dimension_numbers<[1], [0], [0], [1], [0, 0, 1, 1], [], []>} : vector<1x256xbf16>, vector<256x11xbf16>, vector<1x11xf32> -> vector<1x11xf32>
    %c0_157 = arith.constant 0 : index
    %c0_158 = arith.constant 0 : index
    %c0_159 = arith.constant 0 : index
    %290 = vector.load %arg13[%c0_157, %c0_158, %c0_159] : memref<1x1x11xf32, #tpu.memory_space<vmem>>, vector<1x1x11xf32>
    %291 = vector.shape_cast %290 : vector<1x1x11xf32> to vector<1x11xf32>
    %292 = vector.shape_cast %289 : vector<1x11xf32> to vector<1x1x11xf32>
    tpu.vector_store %arg13[%c0_157, %c0_158, %c0_159], %292 {strides = array<i32>} : memref<1x1x11xf32, #tpu.memory_space<vmem>>, vector<1x1x11xf32>,
    return
  }
  func.func @transform_0(%arg0: i32) -> (i32, i32, i32) {
    %c0_i32 = arith.constant 0 : i32
    %c0_i32_0 = arith.constant 0 : i32
    %c0_i32_1 = arith.constant 0 : i32
    return %arg0, %c0_i32, %c0_i32_0 : i32, i32, i32
  }
  func.func @transform_1(%arg0: i32) -> (i32, i32, i32) {
    %c0_i32 = arith.constant 0 : i32
    %c0_i32_0 = arith.constant 0 : i32
    %c0_i32_1 = arith.constant 0 : i32
    %c0_i32_2 = arith.constant 0 : i32
    return %c0_i32, %c0_i32_0, %c0_i32_1 : i32, i32, i32
  }
  func.func @transform_2(%arg0: i32) -> (i32, i32, i32) {
    %c0_i32 = arith.constant 0 : i32
    %c0_i32_0 = arith.constant 0 : i32
    %c0_i32_1 = arith.constant 0 : i32
    %c0_i32_2 = arith.constant 0 : i32
    return %c0_i32, %c0_i32_0, %c0_i32_1 : i32, i32, i32
  }
  func.func @transform_3(%arg0: i32) -> (i32, i32, i32) {
    %c0_i32 = arith.constant 0 : i32
    %c0_i32_0 = arith.constant 0 : i32
    %c0_i32_1 = arith.constant 0 : i32
    %c0_i32_2 = arith.constant 0 : i32
    return %c0_i32, %c0_i32_0, %c0_i32_1 : i32, i32, i32
  }
  func.func @transform_4(%arg0: i32) -> (i32, i32, i32) {
    %c0_i32 = arith.constant 0 : i32
    %c0_i32_0 = arith.constant 0 : i32
    %c0_i32_1 = arith.constant 0 : i32
    %c0_i32_2 = arith.constant 0 : i32
    return %c0_i32, %c0_i32_0, %c0_i32_1 : i32, i32, i32
  }
  func.func @transform_5(%arg0: i32) -> (i32, i32, i32) {
    %c0_i32 = arith.constant 0 : i32
    %c0_i32_0 = arith.constant 0 : i32
    %c0_i32_1 = arith.constant 0 : i32
    %c0_i32_2 = arith.constant 0 : i32
    return %c0_i32, %c0_i32_0, %c0_i32_1 : i32, i32, i32
  }
  func.func @transform_6(%arg0: i32) -> (i32, i32) {
    %c0_i32 = arith.constant 0 : i32
    %c0_i32_0 = arith.constant 0 : i32
    %c0_i32_1 = arith.constant 0 : i32
    return %c0_i32, %c0_i32_0 : i32, i32
  }
  func.func @transform_7(%arg0: i32) -> (i32, i32) {
    %c0_i32 = arith.constant 0 : i32
    %c0_i32_0 = arith.constant 0 : i32
    %c0_i32_1 = arith.constant 0 : i32
    return %c0_i32, %c0_i32_0 : i32, i32
  }
  func.func @transform_8(%arg0: i32) -> (i32, i32) {
    %c0_i32 = arith.constant 0 : i32
    %c0_i32_0 = arith.constant 0 : i32
    %c0_i32_1 = arith.constant 0 : i32
    return %c0_i32, %c0_i32_0 : i32, i32
  }
  func.func @transform_9(%arg0: i32) -> (i32, i32) {
    %c0_i32 = arith.constant 0 : i32
    %c0_i32_0 = arith.constant 0 : i32
    %c0_i32_1 = arith.constant 0 : i32
    return %c0_i32, %c0_i32_0 : i32, i32
  }
  func.func @transform_10(%arg0: i32) -> (i32, i32) {
    %c0_i32 = arith.constant 0 : i32
    %c0_i32_0 = arith.constant 0 : i32
    %c0_i32_1 = arith.constant 0 : i32
    return %c0_i32, %c0_i32_0 : i32, i32
  }
  func.func @transform_11(%arg0: i32) -> (i32, i32, i32) {
    %c0_i32 = arith.constant 0 : i32
    %c0_i32_0 = arith.constant 0 : i32
    %c0_i32_1 = arith.constant 0 : i32
    %c0_i32_2 = arith.constant 0 : i32
    return %c0_i32, %c0_i32_0, %c0_i32_1 : i32, i32, i32
  }
  func.func @transform_12(%arg0: i32) -> (i32, i32, i32) {
    %c0_i32 = arith.constant 0 : i32
    %c0_i32_0 = arith.constant 0 : i32
    %c0_i32_1 = arith.constant 0 : i32
    return %arg0, %c0_i32, %c0_i32_0 : i32, i32, i32
  }
}

</mosaic_0001>

<llo_original>
// kernel: tile.28
$region0: #{tile.28}
  #allocation0 [shape = 's32[1]{0}', space=sflag, size = 0x4, scoped, tag = 'scoped memory for tile.28']
  %s0 = inlined_call_operand.vmem [shape: f32[8], index: 0, kind: input, shape index: {}]
  %s1 = inlined_call_operand.vmem [shape: f32[32,8], index: 1, kind: output, shape index: {}]
  // Predicated region
  $region2: #{tile.28} parent=0 // pred_check
    _
  $region3: #{tile.28} parent=0 // pred_check_branch
    %3 = sbr.rel (0) target = $region5
  $region4: #{tile.28} parent=0 // pred_region
    _
  $region5: #{tile.28} parent=0 // pred_fallthru
    _
  %v4 = vld [vmem:[%s0] ss:$0 sm:$0xff]
  %5 = vst [vmem:[%s1] sm:$0xff] %v4
  %s6 = scalar_lea.vmem %s1, 8
  %7 = vst [vmem:[%s6] sm:$0xff] %v4
  %s8 = scalar_lea.vmem %s1, 16
  %9 = vst [vmem:[%s8] sm:$0xff] %v4
  %s10 = scalar_lea.vmem %s1, 24
  %11 = vst [vmem:[%s10] sm:$0xff] %v4

// kernel: tile.29
$region0: #{tile.29}
  %s0 = inlined_call_operand.vmem [shape: f32[32,8], index: 0, kind: input, shape index: {}]
  %s1 = inlined_call_operand.vmem [shape: f32[1,256], index: 1, kind: output, shape index: {}]
  $region1: #{tile.29} parent=0
    #allocation0 [shape = 'u8[8192]{0}', space=vmem, size = 0x2000, scoped, tag = 'scoped mem for output reshape']
    %s2 = smov 3
    %v3 = vld [vmem:[%s0] ss:$16 sm:%s2]
    %vm4 = vcmask 64512
    %5 = vst.msk [vmem:[#allocation0] ss:$8 sm:$0x3] %vm4, %v3
    %s6 = scalar_lea.vmem %s0, 15
    %s7 = smov 3
    %v8 = vld [vmem:[%s6] ss:$16 sm:%s7]
    %9 = vrot.lane.b32.xlu0 %v8, 120
    %v10 = vpop.permute.xlu0 %9
    %vm11 = vcmask 1048512
    %12 = vst.msk [vmem:[#allocation0] ss:$8 sm:$0x3] %vm11, %v10
    %s13 = scalar_lea.vmem %s0, 14
    %s14 = smov 3
    %v15 = vld [vmem:[%s13] ss:$16 sm:%s14]
    %16 = vrot.lane.b32.xlu0 %v15, 112
    %v17 = vpop.permute.xlu0 %16
    %vm18 = vcmask 982912
    %19 = vst.msk [vmem:[#allocation0] ss:$8 sm:$0x3] %vm18, %v17
    %s20 = scalar_lea.vmem %s0, 13
    %s21 = smov 3
    %v22 = vld [vmem:[%s20] ss:$16 sm:%s21]
    %23 = vrot.lane.b32.xlu0 %v22, 104
    %v24 = vpop.permute.xlu0 %23
    %vm25 = vcmask 917312
    %26 = vst.msk [vmem:[#allocation0] ss:$8 sm:$0x3] %vm25, %v24
    %s27 = scalar_lea.vmem %s0, 12
    %s28 = smov 3
    %v29 = vld [vmem:[%s27] ss:$16 sm:%s28]
    %30 = vrot.lane.b32.xlu0 %v29, 96
    %v31 = vpop.permute.xlu0 %30
    %vm32 = vcmask 851712
    %33 = vst.msk [vmem:[#allocation0] ss:$8 sm:$0x3] %vm32, %v31
    %s34 = scalar_lea.vmem %s0, 11
    %s35 = smov 3
    %v36 = vld [vmem:[%s34] ss:$16 sm:%s35]
    %37 = vrot.lane.b32.xlu0 %v36, 88
    %v38 = vpop.permute.xlu0 %37
    %vm39 = vcmask 786112
    %40 = vst.msk [vmem:[#allocation0] ss:$8 sm:$0x3] %vm39, %v38
    %s41 = scalar_lea.vmem %s0, 10
    %s42 = smov 3
    %v43 = vld [vmem:[%s41] ss:$16 sm:%s42]
    %44 = vrot.lane.b32.xlu0 %v43, 80
    %v45 = vpop.permute.xlu0 %44
    %vm46 = vcmask 720512
    %47 = vst.msk [vmem:[#allocation0] ss:$8 sm:$0x3] %vm46, %v45
    %s48 = scalar_lea.vmem %s0, 9
    %s49 = smov 3
    %v50 = vld [vmem:[%s48] ss:$16 sm:%s49]
    %51 = vrot.lane.b32.xlu0 %v50, 72
    %v52 = vpop.permute.xlu0 %51
    %vm53 = vcmask 654912
    %54 = vst.msk [vmem:[#allocation0] ss:$8 sm:$0x3] %vm53, %v52
    %s55 = scalar_lea.vmem %s0, 8
    %s56 = smov 3
    %v57 = vld [vmem:[%s55] ss:$16 sm:%s56]
    %58 = vrot.lane.b32.xlu0 %v57, 64
    %v59 = vpop.permute.xlu0 %58
    %vm60 = vcmask 589312
    %61 = vst.msk [vmem:[#allocation0] ss:$8 sm:$0x3] %vm60, %v59
    %s62 = scalar_lea.vmem %s0, 7
    %s63 = smov 3
    %v64 = vld [vmem:[%s62] ss:$16 sm:%s63]
    %65 = vrot.lane.b32.xlu0 %v64, 56
    %v66 = vpop.permute.xlu0 %65
    %vm67 = vcmask 523712
    %68 = vst.msk [vmem:[#allocation0] ss:$8 sm:$0x3] %vm67, %v66
    %s69 = scalar_lea.vmem %s0, 6
    %s70 = smov 3
    %v71 = vld [vmem:[%s69] ss:$16 sm:%s70]
    %72 = vrot.lane.b32.xlu0 %v71, 48
    %v73 = vpop.permute.xlu0 %72
    %vm74 = vcmask 458112
    %75 = vst.msk [vmem:[#allocation0] ss:$8 sm:$0x3] %vm74, %v73
    %s76 = scalar_lea.vmem %s0, 5
    %s77 = smov 3
    %v78 = vld [vmem:[%s76] ss:$16 sm:%s77]
    %79 = vrot.lane.b32.xlu0 %v78, 40
    %v80 = vpop.permute.xlu0 %79
    %vm81 = vcmask 392512
    %82 = vst.msk [vmem:[#allocation0] ss:$8 sm:$0x3] %vm81, %v80
    %s83 = scalar_lea.vmem %s0, 4
    %s84 = smov 3
    %v85 = vld [vmem:[%s83] ss:$16 sm:%s84]
    %86 = vrot.lane.b32.xlu0 %v85, 32
    %v87 = vpop.permute.xlu0 %86
    %vm88 = vcmask 326912
    %89 = vst.msk [vmem:[#allocation0] ss:$8 sm:$0x3] %vm88, %v87
    %s90 = scalar_lea.vmem %s0, 3
    %s91 = smov 3
    %v92 = vld [vmem:[%s90] ss:$16 sm:%s91]
    %93 = vrot.lane.b32.xlu0 %v92, 24
    %v94 = vpop.permute.xlu0 %93
    %vm95 = vcmask 261312
    %96 = vst.msk [vmem:[#allocation0] ss:$8 sm:$0x3] %vm95, %v94
    %s97 = scalar_lea.vmem %s0, 2
    %s98 = smov 3
    %v99 = vld [vmem:[%s97] ss:$16 sm:%s98]
    %100 = vrot.lane.b32.xlu0 %v99, 16
    %v101 = vpop.permute.xlu0 %100
    %vm102 = vcmask 195712
    %103 = vst.msk [vmem:[#allocation0] ss:$8 sm:$0x3] %vm102, %v101
    %s104 = scalar_lea.vmem %s0, 1
    %s105 = smov 3
    %v106 = vld [vmem:[%s104] ss:$16 sm:%s105]
    %107 = vrot.lane.b32.xlu0 %v106, 8
    %v108 = vpop.permute.xlu0 %107
    %vm109 = vcmask 130112
    %110 = vst.msk [vmem:[#allocation0] ss:$8 sm:$0x3] %vm109, %v108
    %s112 = sshll.u32 1, 1
    %s113 = ssub.s32 %s112, 1
    %v115 = vld [vmem:[#allocation0] sm:%s113]
    %s116 = sshll.u32 1, 1
    %s117 = ssub.s32 %s116, 1
    %118 = vst [vmem:[%s1] sm:%s117] %v115
    %s119 = scalar_lea.vmem [#allocation0], 8
    %v120 = vld [vmem:[%s119] sm:%s113]
    %s121 = sshll.u32 1, 1
    %s122 = ssub.s32 %s121, 1
    %s123 = scalar_lea.vmem %s1, 1
    %124 = vst [vmem:[%s123] sm:%s122] %v120

// kernel: tile.33
$region0: #{tile.33}
  #allocation0 [shape = 's32[1]{0}', space=sflag, size = 0x4, scoped, tag = 'scoped memory for tile.33']
  %s0 = inlined_call_operand.vmem [shape: f32[16], index: 0, kind: input, shape index: {}]
  %s1 = inlined_call_operand.vmem [shape: f32[16,16], index: 1, kind: output, shape index: {}]
  // Predicated region
  $region2: #{tile.33} parent=0 // pred_check
    _
  $region3: #{tile.33} parent=0 // pred_check_branch
    %3 = sbr.rel (0) target = $region5
  $region4: #{tile.33} parent=0 // pred_region
    _
  $region5: #{tile.33} parent=0 // pred_fallthru
    _
  %v4 = vld [vmem:[%s0] ss:$0 sm:$0xff]
  %5 = vst [vmem:[%s1] sm:$0xff] %v4
  %s6 = scalar_lea.vmem %s1, 8
  %7 = vst [vmem:[%s6] sm:$0xff] %v4

// kernel: tile.34
$region0: #{tile.34}
  %s0 = inlined_call_operand.vmem [shape: f32[16,16], index: 0, kind: input, shape index: {}]
  %s1 = inlined_call_operand.vmem [shape: f32[1,256], index: 1, kind: output, shape index: {}]
  $region1: #{tile.34} parent=0
    #allocation0 [shape = 'u8[8192]{0}', space=vmem, size = 0x2000, scoped, tag = 'scoped mem for output reshape']
    %s2 = smov 3
    %v3 = vld [vmem:[%s0] ss:$8 sm:%s2]
    %vm4 = vcmask 130048
    %5 = vst.msk [vmem:[#allocation0] ss:$8 sm:$0x3] %vm4, %v3
    %s6 = scalar_lea.vmem %s0, 7
    %s7 = smov 3
    %v8 = vld [vmem:[%s6] ss:$8 sm:%s7]
    %9 = vrot.lane.b32.xlu0 %v8, 112
    %v10 = vpop.permute.xlu0 %9
    %vm11 = vcmask 1048448
    %12 = vst.msk [vmem:[#allocation0] ss:$8 sm:$0x3] %vm11, %v10
    %s13 = scalar_lea.vmem %s0, 6
    %s14 = smov 3
    %v15 = vld [vmem:[%s13] ss:$8 sm:%s14]
    %16 = vrot.lane.b32.xlu0 %v15, 96
    %v17 = vpop.permute.xlu0 %16
    %vm18 = vcmask 917248
    %19 = vst.msk [vmem:[#allocation0] ss:$8 sm:$0x3] %vm18, %v17
    %s20 = scalar_lea.vmem %s0, 5
    %s21 = smov 3
    %v22 = vld [vmem:[%s20] ss:$8 sm:%s21]
    %23 = vrot.lane.b32.xlu0 %v22, 80
    %v24 = vpop.permute.xlu0 %23
    %vm25 = vcmask 786048
    %26 = vst.msk [vmem:[#allocation0] ss:$8 sm:$0x3] %vm25, %v24
    %s27 = scalar_lea.vmem %s0, 4
    %s28 = smov 3
    %v29 = vld [vmem:[%s27] ss:$8 sm:%s28]
    %30 = vrot.lane.b32.xlu0 %v29, 64
    %v31 = vpop.permute.xlu0 %30
    %vm32 = vcmask 654848
    %33 = vst.msk [vmem:[#allocation0] ss:$8 sm:$0x3] %vm32, %v31
    %s34 = scalar_lea.vmem %s0, 3
    %s35 = smov 3
    %v36 = vld [vmem:[%s34] ss:$8 sm:%s35]
    %37 = vrot.lane.b32.xlu0 %v36, 48
    %v38 = vpop.permute.xlu0 %37
    %vm39 = vcmask 523648
    %40 = vst.msk [vmem:[#allocation0] ss:$8 sm:$0x3] %vm39, %v38
    %s41 = scalar_lea.vmem %s0, 2
    %s42 = smov 3
    %v43 = vld [vmem:[%s41] ss:$8 sm:%s42]
    %44 = vrot.lane.b32.xlu0 %v43, 32
    %v45 = vpop.permute.xlu0 %44
    %vm46 = vcmask 392448
    %47 = vst.msk [vmem:[#allocation0] ss:$8 sm:$0x3] %vm46, %v45
    %s48 = scalar_lea.vmem %s0, 1
    %s49 = smov 3
    %v50 = vld [vmem:[%s48] ss:$8 sm:%s49]
    %51 = vrot.lane.b32.xlu0 %v50, 16
    %v52 = vpop.permute.xlu0 %51
    %vm53 = vcmask 261248
    %54 = vst.msk [vmem:[#allocation0] ss:$8 sm:$0x3] %vm53, %v52
    %s56 = sshll.u32 1, 1
    %s57 = ssub.s32 %s56, 1
    %v59 = vld [vmem:[#allocation0] sm:%s57]
    %s60 = sshll.u32 1, 1
    %s61 = ssub.s32 %s60, 1
    %62 = vst [vmem:[%s1] sm:%s61] %v59
    %s63 = scalar_lea.vmem [#allocation0], 8
    %v64 = vld [vmem:[%s63] sm:%s57]
    %s65 = sshll.u32 1, 1
    %s66 = ssub.s32 %s65, 1
    %s67 = scalar_lea.vmem %s1, 1
    %68 = vst [vmem:[%s67] sm:%s66] %v64

// kernel: tile.38
$region0: #{tile.38}
  #allocation0 [shape = 's32[1]{0}', space=sflag, size = 0x4, scoped, tag = 'scoped memory for tile.38']
  %s0 = inlined_call_operand.vmem [shape: f32[32], index: 0, kind: input, shape index: {}]
  %s1 = inlined_call_operand.vmem [shape: f32[8,32], index: 1, kind: output, shape index: {}]
  // Predicated region
  $region2: #{tile.38} parent=0 // pred_check
    _
  $region3: #{tile.38} parent=0 // pred_check_branch
    %3 = sbr.rel (0) target = $region5
  $region4: #{tile.38} parent=0 // pred_region
    _
  $region5: #{tile.38} parent=0 // pred_fallthru
    _
  %v4 = vld [vmem:[%s0] ss:$0 sm:$0xff]
  %5 = vst [vmem:[%s1] sm:$0xff] %v4

// kernel: tile.39
$region0: #{tile.39}
  %s0 = inlined_call_operand.vmem [shape: f32[8,32], index: 0, kind: input, shape index: {}]
  %s1 = inlined_call_operand.vmem [shape: f32[1,256], index: 1, kind: output, shape index: {}]
  $region1: #{tile.39} parent=0
    #allocation0 [shape = 'u8[8192]{0}', space=vmem, size = 0x2000, scoped, tag = 'scoped mem for output reshape']
    %s2 = smov 3
    %v3 = vld [vmem:[%s0] ss:$4 sm:%s2]
    %vm4 = vcmask 261120
    %5 = vst.msk [vmem:[#allocation0] ss:$8 sm:$0x3] %vm4, %v3
    %s6 = scalar_lea.vmem %s0, 3
    %s7 = smov 3
    %v8 = vld [vmem:[%s6] ss:$4 sm:%s7]
    %9 = vrot.lane.b32.xlu0 %v8, 96
    %v10 = vpop.permute.xlu0 %9
    %vm11 = vcmask 1048320
    %12 = vst.msk [vmem:[#allocation0] ss:$8 sm:$0x3] %vm11, %v10
    %s13 = scalar_lea.vmem %s0, 2
    %s14 = smov 3
    %v15 = vld [vmem:[%s13] ss:$4 sm:%s14]
    %16 = vrot.lane.b32.xlu0 %v15, 64
    %v17 = vpop.permute.xlu0 %16
    %vm18 = vcmask 785920
    %19 = vst.msk [vmem:[#allocation0] ss:$8 sm:$0x3] %vm18, %v17
    %s20 = scalar_lea.vmem %s0, 1
    %s21 = smov 3
    %v22 = vld [vmem:[%s20] ss:$4 sm:%s21]
    %23 = vrot.lane.b32.xlu0 %v22, 32
    %v24 = vpop.permute.xlu0 %23
    %vm25 = vcmask 523520
    %26 = vst.msk [vmem:[#allocation0] ss:$8 sm:$0x3] %vm25, %v24
    %s28 = sshll.u32 1, 1
    %s29 = ssub.s32 %s28, 1
    %v31 = vld [vmem:[#allocation0] sm:%s29]
    %s32 = sshll.u32 1, 1
    %s33 = ssub.s32 %s32, 1
    %34 = vst [vmem:[%s1] sm:%s33] %v31
    %s35 = scalar_lea.vmem [#allocation0], 8
    %v36 = vld [vmem:[%s35] sm:%s29]
    %s37 = sshll.u32 1, 1
    %s38 = ssub.s32 %s37, 1
    %s39 = scalar_lea.vmem %s1, 1
    %40 = vst [vmem:[%s39] sm:%s38] %v36

// kernel: tile.43
$region0: #{tile.43}
  #allocation0 [shape = 's32[1]{0}', space=sflag, size = 0x4, scoped, tag = 'scoped memory for tile.43']
  %s0 = inlined_call_operand.vmem [shape: f32[64], index: 0, kind: input, shape index: {}]
  %s1 = inlined_call_operand.vmem [shape: f32[4,64], index: 1, kind: output, shape index: {}]
  // Predicated region
  $region2: #{tile.43} parent=0 // pred_check
    _
  $region3: #{tile.43} parent=0 // pred_check_branch
    %3 = sbr.rel (0) target = $region5
  $region4: #{tile.43} parent=0 // pred_region
    _
  $region5: #{tile.43} parent=0 // pred_fallthru
    _
  %v4 = vld [vmem:[%s0] ss:$0 sm:$0xff]
  %5 = vst [vmem:[%s1] sm:$0xf] %v4

// kernel: tile.44
$region0: #{tile.44}
  %s0 = inlined_call_operand.vmem [shape: f32[4,64], index: 0, kind: input, shape index: {}]
  %s1 = inlined_call_operand.vmem [shape: f32[1,256], index: 1, kind: output, shape index: {}]
  $region1: #{tile.44} parent=0
    #allocation0 [shape = 'u8[8192]{0}', space=vmem, size = 0x2000, scoped, tag = 'scoped mem for output reshape']
    #allocation1 [shape = 'u8[4096]{0}', space=vmem, size = 0x1000, scoped, tag = 'scoped mem for input reshape']
    %s3 = sshll.u32 1, 4
    %s4 = ssub.s32 %s3, 1
    %v5 = vld [vmem:[%s0] sm:%s4]
    %6 = vst [vmem:[#allocation1] sm:%s4] %v5
    %s7 = smov 3
    %v8 = vld [vmem:[#allocation1] ss:$2 sm:%s7]
    %vm9 = vcmask 523264
    %10 = vst.msk [vmem:[#allocation0] ss:$8 sm:$0x3] %vm9, %v8
    %s11 = scalar_lea.vmem [#allocation1], 1
    %s12 = smov 3
    %v13 = vld [vmem:[%s11] ss:$2 sm:%s12]
    %14 = vrot.lane.b32.xlu0 %v13, 64
    %v15 = vpop.permute.xlu0 %14
    %vm16 = vcmask 1048064
    %17 = vst.msk [vmem:[#allocation0] ss:$8 sm:$0x3] %vm16, %v15
    %s19 = sshll.u32 1, 1
    %s20 = ssub.s32 %s19, 1
    %v22 = vld [vmem:[#allocation0] sm:%s20]
    %s23 = sshll.u32 1, 1
    %s24 = ssub.s32 %s23, 1
    %25 = vst [vmem:[%s1] sm:%s24] %v22
    %s26 = scalar_lea.vmem [#allocation0], 8
    %v27 = vld [vmem:[%s26] sm:%s20]
    %s28 = sshll.u32 1, 1
    %s29 = ssub.s32 %s28, 1
    %s30 = scalar_lea.vmem %s1, 1
    %31 = vst [vmem:[%s30] sm:%s29] %v27

// kernel: tile.48
$region0: #{tile.48}
  #allocation0 [shape = 's32[1]{0}', space=sflag, size = 0x4, scoped, tag = 'scoped memory for tile.48']
  %s0 = inlined_call_operand.vmem [shape: f32[128], index: 0, kind: input, shape index: {}]
  %s1 = inlined_call_operand.vmem [shape: f32[2,128], index: 1, kind: output, shape index: {}]
  // Predicated region
  $region2: #{tile.48} parent=0 // pred_check
    _
  $region3: #{tile.48} parent=0 // pred_check_branch
    %3 = sbr.rel (0) target = $region5
  $region4: #{tile.48} parent=0 // pred_region
    _
  $region5: #{tile.48} parent=0 // pred_fallthru
    _
  %v4 = vld [vmem:[%s0] ss:$0 sm:$0xff]
  %5 = vst [vmem:[%s1] sm:$0x3] %v4

// kernel: discriminator_forward.1
$region0: #{discriminator_forward.1}
  #allocation0 [shape = 'u32[]', space=smem, size = 0x4, offset = 0x4, fixed_abs, tag = 'smem constant byte address 0x4 - core index']
  #allocation1 [shape = 'u32[144,128]{1,0:T(1,128)}', space=vmem, size = 0x12000, scoped, tag = 'internal scratch']
  %s0 = inlined_call_operand.vmem [shape: f32[2,32,64], index: 0, kind: input, shape index: {}]
  %s1 = inlined_call_operand.vmem [shape: bf16[4,64,256], index: 1, kind: input, shape index: {}]
  %s2 = inlined_call_operand.vmem [shape: bf16[4,256,256], index: 2, kind: input, shape index: {}]
  %s3 = inlined_call_operand.vmem [shape: bf16[4,256,256], index: 3, kind: input, shape index: {}]
  %s4 = inlined_call_operand.vmem [shape: bf16[4,256,256], index: 4, kind: input, shape index: {}]
  %s5 = inlined_call_operand.vmem [shape: bf16[4,256,256], index: 5, kind: input, shape index: {}]
  %s6 = inlined_call_operand.vmem [shape: f32[1,256], index: 6, kind: input, shape index: {}]
  %s7 = inlined_call_operand.vmem [shape: f32[1,256], index: 7, kind: input, shape index: {}]
  %s8 = inlined_call_operand.vmem [shape: f32[1,256], index: 8, kind: input, shape index: {}]
  %s9 = inlined_call_operand.vmem [shape: f32[1,256], index: 9, kind: input, shape index: {}]
  %s10 = inlined_call_operand.vmem [shape: f32[1,256], index: 10, kind: input, shape index: {}]
  %s11 = inlined_call_operand.vmem [shape: bf16[1,256,11], index: 11, kind: input, shape index: {}]
  %s12 = inlined_call_operand.vmem [shape: f32[2,1,11], index: 12, kind: output, shape index: {}]
  %s13 = sld [smem:[#allocation0]]
  $region81: #{discriminator_forward.1} parent=0
    _
  %s15 = ssub.s32 1, %s13
  %s16 = scalar_select 0, %s15, %s13
  loop: start=0, step=1, limit=4
  $region2: #{discriminator_forward.1} parent=0 // loop_pre_header
    _
  $region3: #{discriminator_forward.1} parent=0 // loop_header
    %s18 = sphi 0, %s22
    %p19 = scmp.ge.s32.totalorder %s18, 4
    %s28 = sphi 0, %s30
    %s31 = sphi 0, %s28
    %s32 = sphi 0, %s31
    %s48 = sphi 0, %s32
    %s52 = sphi 0, %s52
    %s54 = sphi 0, %s52
    %s55 = sphi 0, %s54
    %s69 = sphi 0, %s55
    %s73 = sphi 0, %s73
    %s75 = sphi 0, %s73
    %s76 = sphi 0, %s75
    %s90 = sphi 0, %s76
    %s94 = sphi 0, %s94
    %s96 = sphi 0, %s94
    %s97 = sphi 0, %s96
    %s111 = sphi 0, %s97
    %s115 = sphi 0, %s115
    %s117 = sphi 0, %s115
    %s118 = sphi 0, %s117
    %s132 = sphi 0, %s118
    %s136 = sphi 0, %s136
    %s138 = sphi 0, %s136
    %s139 = sphi 0, %s138
    %s153 = sphi 0, %s139
    %s157 = sphi 0, %s157
    %s159 = sphi 0, %s157
    %s160 = sphi 0, %s159
    %s174 = sphi 0, %s160
    %s178 = sphi 0, %s178
    %s180 = sphi 0, %s178
    %s181 = sphi 0, %s180
    %s195 = sphi 0, %s181
    %s199 = sphi 0, %s199
    %s201 = sphi 0, %s199
    %s202 = sphi 0, %s201
    %s216 = sphi 0, %s202
    %s220 = sphi 0, %s220
    %s222 = sphi 0, %s220
    %s223 = sphi 0, %s222
    %s237 = sphi 0, %s223
    %s241 = sphi 0, %s241
    %s243 = sphi 0, %s241
    %s244 = sphi 0, %s243
    %s258 = sphi 0, %s244
    %s262 = sphi 0, %s262
    %s264 = sphi 0, %s262
    %s265 = sphi 0, %s264
    %s279 = sphi 0, %s265
    %s285 = sphi 0, %s287
    %s288 = sphi 0, %s285
    %s289 = sphi 0, %s288
    %s305 = sphi 0, %s289
  $region4: #{discriminator_forward.1} parent=0 // loop_header_branch
    %21 = sbr.rel (%p19) target = $region8
  $region5: #{discriminator_forward.1} parent=0 // loop_body
    %s23 = ssub.s32 %s18, 1
    %s24 = ssub.s32 %s18, 2
    %s25 = sadd.s32 %s18, 1
    %s26 = ssub.s32 %s18, %s25
    %p27 = scmp.eq.s32.totalorder %s26, 0
    %s29 = sadd.s32 %s28, 1
    %s30 = scalar_select %p27, %s28, %s29
    %p33 = pneg %p27
    %p34 = scmp.eq.s32.totalorder %s18, 1
    %p35 = por %p33, %p34
    %p36 = scmp.ne.s32.totalorder %s28, %s31
    %p37 = scmp.eq.s32.totalorder %s18, 0
    %p38 = por %p36, %p37
    %p39 = scmp.ne.s32.totalorder %s28, %s31
    %p40 = scmp.eq.s32.totalorder %s23, 1
    %p41 = por %p39, %p40
    %p42 = scmp.ne.s32.totalorder %s31, %s32
    %p43 = scmp.eq.s32.totalorder %s23, 0
    %p44 = por %p42, %p43
    %p45 = scmp.ne.s32.totalorder %s31, %s32
    %p46 = scmp.eq.s32.totalorder %s24, 1
    %p47 = por %p45, %p46
    %p49 = scmp.ne.s32.totalorder %s32, %s48
    %p50 = scmp.eq.s32.totalorder %s24, 0
    %p51 = por %p49, %p50
    %s53 = sadd.s32 %s52, 1
    %p56 = scmp.eq.s32.totalorder %s18, 1
    %p57 = scmp.ne.s32.totalorder %s52, %s54
    %p58 = scmp.eq.s32.totalorder %s18, 0
    %p59 = por %p57, %p58
    %p60 = scmp.ne.s32.totalorder %s52, %s54
    %p61 = scmp.eq.s32.totalorder %s23, 1
    %p62 = por %p60, %p61
    %p63 = scmp.ne.s32.totalorder %s54, %s55
    %p64 = scmp.eq.s32.totalorder %s23, 0
    %p65 = por %p63, %p64
    %p66 = scmp.ne.s32.totalorder %s54, %s55
    %p67 = scmp.eq.s32.totalorder %s24, 1
    %p68 = por %p66, %p67
    %p70 = scmp.ne.s32.totalorder %s55, %s69
    %p71 = scmp.eq.s32.totalorder %s24, 0
    %p72 = por %p70, %p71
    %s74 = sadd.s32 %s73, 1
    %p77 = scmp.eq.s32.totalorder %s18, 1
    %p78 = scmp.ne.s32.totalorder %s73, %s75
    %p79 = scmp.eq.s32.totalorder %s18, 0
    %p80 = por %p78, %p79
    %p81 = scmp.ne.s32.totalorder %s73, %s75
    %p82 = scmp.eq.s32.totalorder %s23, 1
    %p83 = por %p81, %p82
    %p84 = scmp.ne.s32.totalorder %s75, %s76
    %p85 = scmp.eq.s32.totalorder %s23, 0
    %p86 = por %p84, %p85
    %p87 = scmp.ne.s32.totalorder %s75, %s76
    %p88 = scmp.eq.s32.totalorder %s24, 1
    %p89 = por %p87, %p88
    %p91 = scmp.ne.s32.totalorder %s76, %s90
    %p92 = scmp.eq.s32.totalorder %s24, 0
    %p93 = por %p91, %p92
    %s95 = sadd.s32 %s94, 1
    %p98 = scmp.eq.s32.totalorder %s18, 1
    %p99 = scmp.ne.s32.totalorder %s94, %s96
    %p100 = scmp.eq.s32.totalorder %s18, 0
    %p101 = por %p99, %p100
    %p102 = scmp.ne.s32.totalorder %s94, %s96
    %p103 = scmp.eq.s32.totalorder %s23, 1
    %p104 = por %p102, %p103
    %p105 = scmp.ne.s32.totalorder %s96, %s97
    %p106 = scmp.eq.s32.totalorder %s23, 0
    %p107 = por %p105, %p106
    %p108 = scmp.ne.s32.totalorder %s96, %s97
    %p109 = scmp.eq.s32.totalorder %s24, 1
    %p110 = por %p108, %p109
    %p112 = scmp.ne.s32.totalorder %s97, %s111
    %p113 = scmp.eq.s32.totalorder %s24, 0
    %p114 = por %p112, %p113
    %s116 = sadd.s32 %s115, 1
    %p119 = scmp.eq.s32.totalorder %s18, 1
    %p120 = scmp.ne.s32.totalorder %s115, %s117
    %p121 = scmp.eq.s32.totalorder %s18, 0
    %p122 = por %p120, %p121
    %p123 = scmp.ne.s32.totalorder %s115, %s117
    %p124 = scmp.eq.s32.totalorder %s23, 1
    %p125 = por %p123, %p124
    %p126 = scmp.ne.s32.totalorder %s117, %s118
    %p127 = scmp.eq.s32.totalorder %s23, 0
    %p128 = por %p126, %p127
    %p129 = scmp.ne.s32.totalorder %s117, %s118
    %p130 = scmp.eq.s32.totalorder %s24, 1
    %p131 = por %p129, %p130
    %p133 = scmp.ne.s32.totalorder %s118, %s132
    %p134 = scmp.eq.s32.totalorder %s24, 0
    %p135 = por %p133, %p134
    %s137 = sadd.s32 %s136, 1
    %p140 = scmp.eq.s32.totalorder %s18, 1
    %p141 = scmp.ne.s32.totalorder %s136, %s138
    %p142 = scmp.eq.s32.totalorder %s18, 0
    %p143 = por %p141, %p142
    %p144 = scmp.ne.s32.totalorder %s136, %s138
    %p145 = scmp.eq.s32.totalorder %s23, 1
    %p146 = por %p144, %p145
    %p147 = scmp.ne.s32.totalorder %s138, %s139
    %p148 = scmp.eq.s32.totalorder %s23, 0
    %p149 = por %p147, %p148
    %p150 = scmp.ne.s32.totalorder %s138, %s139
    %p151 = scmp.eq.s32.totalorder %s24, 1
    %p152 = por %p150, %p151
    %p154 = scmp.ne.s32.totalorder %s139, %s153
    %p155 = scmp.eq.s32.totalorder %s24, 0
    %p156 = por %p154, %p155
    %s158 = sadd.s32 %s157, 1
    %p161 = scmp.eq.s32.totalorder %s18, 1
    %p162 = scmp.ne.s32.totalorder %s157, %s159
    %p163 = scmp.eq.s32.totalorder %s18, 0
    %p164 = por %p162, %p163
    %p165 = scmp.ne.s32.totalorder %s157, %s159
    %p166 = scmp.eq.s32.totalorder %s23, 1
    %p167 = por %p165, %p166
    %p168 = scmp.ne.s32.totalorder %s159, %s160
    %p169 = scmp.eq.s32.totalorder %s23, 0
    %p170 = por %p168, %p169
    %p171 = scmp.ne.s32.totalorder %s159, %s160
    %p172 = scmp.eq.s32.totalorder %s24, 1
    %p173 = por %p171, %p172
    %p175 = scmp.ne.s32.totalorder %s160, %s174
    %p176 = scmp.eq.s32.totalorder %s24, 0
    %p177 = por %p175, %p176
    %s179 = sadd.s32 %s178, 1
    %p182 = scmp.eq.s32.totalorder %s18, 1
    %p183 = scmp.ne.s32.totalorder %s178, %s180
    %p184 = scmp.eq.s32.totalorder %s18, 0
    %p185 = por %p183, %p184
    %p186 = scmp.ne.s32.totalorder %s178, %s180
    %p187 = scmp.eq.s32.totalorder %s23, 1
    %p188 = por %p186, %p187
    %p189 = scmp.ne.s32.totalorder %s180, %s181
    %p190 = scmp.eq.s32.totalorder %s23, 0
    %p191 = por %p189, %p190
    %p192 = scmp.ne.s32.totalorder %s180, %s181
    %p193 = scmp.eq.s32.totalorder %s24, 1
    %p194 = por %p192, %p193
    %p196 = scmp.ne.s32.totalorder %s181, %s195
    %p197 = scmp.eq.s32.totalorder %s24, 0
    %p198 = por %p196, %p197
    %s200 = sadd.s32 %s199, 1
    %p203 = scmp.eq.s32.totalorder %s18, 1
    %p204 = scmp.ne.s32.totalorder %s199, %s201
    %p205 = scmp.eq.s32.totalorder %s18, 0
    %p206 = por %p204, %p205
    %p207 = scmp.ne.s32.totalorder %s199, %s201
    %p208 = scmp.eq.s32.totalorder %s23, 1
    %p209 = por %p207, %p208
    %p210 = scmp.ne.s32.totalorder %s201, %s202
    %p211 = scmp.eq.s32.totalorder %s23, 0
    %p212 = por %p210, %p211
    %p213 = scmp.ne.s32.totalorder %s201, %s202
    %p214 = scmp.eq.s32.totalorder %s24, 1
    %p215 = por %p213, %p214
    %p217 = scmp.ne.s32.totalorder %s202, %s216
    %p218 = scmp.eq.s32.totalorder %s24, 0
    %p219 = por %p217, %p218
    %s221 = sadd.s32 %s220, 1
    %p224 = scmp.eq.s32.totalorder %s18, 1
    %p225 = scmp.ne.s32.totalorder %s220, %s222
    %p226 = scmp.eq.s32.totalorder %s18, 0
    %p227 = por %p225, %p226
    %p228 = scmp.ne.s32.totalorder %s220, %s222
    %p229 = scmp.eq.s32.totalorder %s23, 1
    %p230 = por %p228, %p229
    %p231 = scmp.ne.s32.totalorder %s222, %s223
    %p232 = scmp.eq.s32.totalorder %s23, 0
    %p233 = por %p231, %p232
    %p234 = scmp.ne.s32.totalorder %s222, %s223
    %p235 = scmp.eq.s32.totalorder %s24, 1
    %p236 = por %p234, %p235
    %p238 = scmp.ne.s32.totalorder %s223, %s237
    %p239 = scmp.eq.s32.totalorder %s24, 0
    %p240 = por %p238, %p239
    %s242 = sadd.s32 %s241, 1
    %p245 = scmp.eq.s32.totalorder %s18, 1
    %p246 = scmp.ne.s32.totalorder %s241, %s243
    %p247 = scmp.eq.s32.totalorder %s18, 0
    %p248 = por %p246, %p247
    %p249 = scmp.ne.s32.totalorder %s241, %s243
    %p250 = scmp.eq.s32.totalorder %s23, 1
    %p251 = por %p249, %p250
    %p252 = scmp.ne.s32.totalorder %s243, %s244
    %p253 = scmp.eq.s32.totalorder %s23, 0
    %p254 = por %p252, %p253
    %p255 = scmp.ne.s32.totalorder %s243, %s244
    %p256 = scmp.eq.s32.totalorder %s24, 1
    %p257 = por %p255, %p256
    %p259 = scmp.ne.s32.totalorder %s244, %s258
    %p260 = scmp.eq.s32.totalorder %s24, 0
    %p261 = por %p259, %p260
    %s263 = sadd.s32 %s262, 1
    %p266 = scmp.eq.s32.totalorder %s18, 1
    %p267 = scmp.ne.s32.totalorder %s262, %s264
    %p268 = scmp.eq.s32.totalorder %s18, 0
    %p269 = por %p267, %p268
    %p270 = scmp.ne.s32.totalorder %s262, %s264
    %p271 = scmp.eq.s32.totalorder %s23, 1
    %p272 = por %p270, %p271
    %p273 = scmp.ne.s32.totalorder %s264, %s265
    %p274 = scmp.eq.s32.totalorder %s23, 0
    %p275 = por %p273, %p274
    %p276 = scmp.ne.s32.totalorder %s264, %s265
    %p277 = scmp.eq.s32.totalorder %s24, 1
    %p278 = por %p276, %p277
    %p280 = scmp.ne.s32.totalorder %s265, %s279
    %p281 = scmp.eq.s32.totalorder %s24, 0
    %p282 = por %p280, %p281
    %s283 = ssub.s32 %s18, %s25
    %p284 = scmp.eq.s32.totalorder %s283, 0
    %s286 = sadd.s32 %s285, 1
    %s287 = scalar_select %p284, %s285, %s286
    %p290 = pneg %p284
    %p291 = scmp.eq.s32.totalorder %s18, 1
    %p292 = por %p290, %p291
    %p293 = scmp.ne.s32.totalorder %s285, %s288
    %p294 = scmp.eq.s32.totalorder %s18, 0
    %p295 = por %p293, %p294
    %p296 = scmp.ne.s32.totalorder %s285, %s288
    %p297 = scmp.eq.s32.totalorder %s23, 1
    %p298 = por %p296, %p297
    %p299 = scmp.ne.s32.totalorder %s288, %s289
    %p300 = scmp.eq.s32.totalorder %s23, 0
    %p301 = por %p299, %p300
    %p302 = scmp.ne.s32.totalorder %s288, %s289
    %p303 = scmp.eq.s32.totalorder %s24, 1
    %p304 = por %p302, %p303
    %p306 = scmp.ne.s32.totalorder %s289, %s305
    %p307 = scmp.eq.s32.totalorder %s24, 0
    %p308 = por %p306, %p307
    %p309 = scmp.le.s32.totalorder 1, %s18
    %p310 = scmp.lt.s32.totalorder %s18, 3
    %p311 = pnand %p309, %p310
    %p312 = pneg %p311
    // Predicated region
    $region9: #{discriminator_forward.1} parent=5 // pred_check
      _
    $region10: #{discriminator_forward.1} parent=5 // pred_check_branch
      %314 = sbr.rel (%p311) target = $region12
    $region11: #{discriminator_forward.1} parent=5 // pred_region
      %s315 = ssub.s32 %s18, 1
      // Predicated region
      $region13: #{discriminator_forward.1} parent=11 // pred_check
        %p316 = pneg %p65
      $region14: #{discriminator_forward.1} parent=11 // pred_check_branch
        %318 = sbr.rel (%p316) target = $region16
      $region15: #{discriminator_forward.1} parent=11 // pred_region
        _
      $region16: #{discriminator_forward.1} parent=11 // pred_fallthru
        _
      // Predicated region
      $region17: #{discriminator_forward.1} parent=11 // pred_check
        %p319 = pneg %p86
      $region18: #{discriminator_forward.1} parent=11 // pred_check_branch
        %321 = sbr.rel (%p319) target = $region20
      $region19: #{discriminator_forward.1} parent=11 // pred_region
        _
      $region20: #{discriminator_forward.1} parent=11 // pred_fallthru
        _
      // Predicated region
      $region21: #{discriminator_forward.1} parent=11 // pred_check
        %p322 = pneg %p107
      $region22: #{discriminator_forward.1} parent=11 // pred_check_branch
        %324 = sbr.rel (%p322) target = $region24
      $region23: #{discriminator_forward.1} parent=11 // pred_region
        _
      $region24: #{discriminator_forward.1} parent=11 // pred_fallthru
        _
      // Predicated region
      $region25: #{discriminator_forward.1} parent=11 // pred_check
        %p325 = pneg %p128
      $region26: #{discriminator_forward.1} parent=11 // pred_check_branch
        %327 = sbr.rel (%p325) target = $region28
      $region27: #{discriminator_forward.1} parent=11 // pred_region
        _
      $region28: #{discriminator_forward.1} parent=11 // pred_fallthru
        _
      // Predicated region
      $region29: #{discriminator_forward.1} parent=11 // pred_check
        %p328 = pneg %p149
      $region30: #{discriminator_forward.1} parent=11 // pred_check_branch
        %330 = sbr.rel (%p328) target = $region32
      $region31: #{discriminator_forward.1} parent=11 // pred_region
        _
      $region32: #{discriminator_forward.1} parent=11 // pred_fallthru
        _
      // Predicated region
      $region33: #{discriminator_forward.1} parent=11 // pred_check
        %p331 = pneg %p170
      $region34: #{discriminator_forward.1} parent=11 // pred_check_branch
        %333 = sbr.rel (%p331) target = $region36
      $region35: #{discriminator_forward.1} parent=11 // pred_region
        _
      $region36: #{discriminator_forward.1} parent=11 // pred_fallthru
        _
      // Predicated region
      $region37: #{discriminator_forward.1} parent=11 // pred_check
        %p334 = pneg %p191
      $region38: #{discriminator_forward.1} parent=11 // pred_check_branch
        %336 = sbr.rel (%p334) target = $region40
      $region39: #{discriminator_forward.1} parent=11 // pred_region
        _
      $region40: #{discriminator_forward.1} parent=11 // pred_fallthru
        _
      // Predicated region
      $region41: #{discriminator_forward.1} parent=11 // pred_check
        %p337 = pneg %p212
      $region42: #{discriminator_forward.1} parent=11 // pred_check_branch
        %339 = sbr.rel (%p337) target = $region44
      $region43: #{discriminator_forward.1} parent=11 // pred_region
        _
      $region44: #{discriminator_forward.1} parent=11 // pred_fallthru
        _
      // Predicated region
      $region45: #{discriminator_forward.1} parent=11 // pred_check
        %p340 = pneg %p233
      $region46: #{discriminator_forward.1} parent=11 // pred_check_branch
        %342 = sbr.rel (%p340) target = $region48
      $region47: #{discriminator_forward.1} parent=11 // pred_region
        _
      $region48: #{discriminator_forward.1} parent=11 // pred_fallthru
        _
      // Predicated region
      $region49: #{discriminator_forward.1} parent=11 // pred_check
        %p343 = pneg %p254
      $region50: #{discriminator_forward.1} parent=11 // pred_check_branch
        %345 = sbr.rel (%p343) target = $region52
      $region51: #{discriminator_forward.1} parent=11 // pred_region
        _
      $region52: #{discriminator_forward.1} parent=11 // pred_fallthru
        _
      // Predicated region
      $region53: #{discriminator_forward.1} parent=11 // pred_check
        %p346 = pneg %p275
      $region54: #{discriminator_forward.1} parent=11 // pred_check_branch
        %348 = sbr.rel (%p346) target = $region56
      $region55: #{discriminator_forward.1} parent=11 // pred_region
        _
      $region56: #{discriminator_forward.1} parent=11 // pred_fallthru
        _
    $region12: #{discriminator_forward.1} parent=5 // pred_fallthru
      _
    %p349 = scmp.lt.s32.totalorder %s18, 2
    // Predicated region
    $region57: #{discriminator_forward.1} parent=5 // pred_check
      %p350 = pneg %p349
    $region58: #{discriminator_forward.1} parent=5 // pred_check_branch
      %352 = sbr.rel (%p350) target = $region60
    $region59: #{discriminator_forward.1} parent=5 // pred_region
      // Predicated region
      $region61: #{discriminator_forward.1} parent=59 // pred_check
        %p353 = pneg %p38
      $region62: #{discriminator_forward.1} parent=59 // pred_check_branch
        %355 = sbr.rel (%p353) target = $region64
      $region63: #{discriminator_forward.1} parent=59 // pred_region
        %p356 = scmp.lt.s32.totalorder %s18, 1
        %s357 = scalar_select %p356, %s18, 1
        %s358 = smul.addr %s357, 4
        %s359 = smul.addr %s358, 8
        %s360 = scalar_lea.vmem %s0, %s359
      $region64: #{discriminator_forward.1} parent=59 // pred_fallthru
        _
    $region60: #{discriminator_forward.1} parent=5 // pred_fallthru
      _
    %p361 = scmp.le.s32.totalorder 1, %s18
    %p362 = scmp.lt.s32.totalorder %s18, 3
    %p363 = pnand %p361, %p362
    %p364 = pneg %p363
    // Predicated region
    $region65: #{discriminator_forward.1} parent=5 // pred_check
      _
    $region66: #{discriminator_forward.1} parent=5 // pred_check_branch
      %366 = sbr.rel (%p363) target = $region68
    $region67: #{discriminator_forward.1} parent=5 // pred_region
      %s367 = ssub.s32 %s18, 1
      %p368 = scmp.lt.s32.totalorder %s23, 1
      %s369 = scalar_select %p368, %s23, 1
      %s370 = smul.addr %s369, 4
      %s371 = smul.addr %s370, 8
      %s372 = scalar_lea.vmem %s0, %s371
      %p373 = pneg %p44
      %p374 = pneg %p41
      %p375 = pneg %p65
      %p376 = pneg %p62
      %p377 = pneg %p86
      %p378 = pneg %p83
      %p379 = pneg %p107
      %p380 = pneg %p104
      %p381 = pneg %p128
      %p382 = pneg %p125
      %p383 = pneg %p149
      %p384 = pneg %p146
      %p385 = pneg %p170
      %p386 = pneg %p167
      %p387 = pneg %p191
      %p388 = pneg %p188
      %p389 = pneg %p212
      %p390 = pneg %p209
      %p391 = pneg %p233
      %p392 = pneg %p230
      %p393 = pneg %p254
      %p394 = pneg %p251
      %p395 = pneg %p275
      %p396 = pneg %p272
      %p397 = pneg %p301
      %p398 = pneg %p298
      %p399 = scmp.lt.s32.totalorder %s23, 1
      %s400 = scalar_select %p399, %s23, 1
      %s401 = scalar_lea.vmem %s12, %s400
      %p402 = scmp.lt.s32.totalorder %s23, 1
      %s403 = scalar_select %p402, %s23, 1
      %s404 = smul.addr %s403, 4
      %s405 = smul.addr %s404, 8
      %s406 = scalar_lea.vmem %s0, %s405
      %p407 = scmp.lt.s32.totalorder %s23, 1
      %s408 = scalar_select %p407, %s23, 1
      %s409 = scalar_lea.vmem %s12, %s408
      %v411 = vld [vmem:[%s406] sm:$0xff]
      %v412 = vld [vmem:[%s406 + $0x8] sm:$0xff]
      %v413 = vld [vmem:[%s406 + $0x10] sm:$0xff]
      %v414 = vld [vmem:[%s406 + $0x18] sm:$0xff]
      %v415 = vlaneseq
      %v416 = vshrl.u32 %v415, 7
      %v417 = vadd.s32 %v416, 8
      %v418 = vadd.s32 %v416, 16
      %v419 = vlaneseq
      %v420 = vand.u32 %v419, 127
      %vm421 = vcmp.ge.s32.totalorder %v416, 1
      %vm422 = vcmp.ge.s32.totalorder %v417, 1
      %vm423 = vcmp.ge.s32.totalorder %v418, 1
      %v424 = vmul.u32 %v416, 2
      %v425 = vmul.u32 %v417, 2
      %v426 = vmul.u32 %v418, 2
      %v427 = vsub.s32 %v424, 1
      %v428 = vsub.s32 %v425, 1
      %v429 = vsub.s32 %v426, 1
      %vm430 = vcmp.eq.s32.totalorder %v420, %v427
      %vm431 = vcmp.eq.s32.totalorder %v420, %v428
      %vm432 = vcmp.eq.s32.totalorder %v420, %v429
      %vm433 = vmand %vm421, %vm430
      %vm434 = vmand %vm422, %vm431
      %vm435 = vmand %vm423, %vm432
      %v436 = vsel %vm433, 1.0, 0.0
      %v437 = vsel %vm434, 1.0, 0.0
      %v438 = vsel %vm435, 1.0, 0.0
      %vm439 = vcmp.lt.s32.totalorder %v416, 16
      %vm440 = vcmp.lt.s32.totalorder %v417, 16
      %vm441 = vcmp.lt.s32.totalorder %v418, 16
      %vm442 = vcmp.eq.s32.totalorder %v420, %v424
      %vm443 = vcmp.eq.s32.totalorder %v420, %v425
      %vm444 = vcmp.eq.s32.totalorder %v420, %v426
      %vm445 = vmand %vm439, %vm442
      %vm446 = vmand %vm440, %vm443
      %vm447 = vmand %vm441, %vm444
      %v448 = vsel %vm445, 1.0, 0.0
      %v449 = vsel %vm446, 1.0, 0.0
      %v450 = vsel %vm447, 1.0, 0.0
      %vm451 = vcmask 261120
      %v453 = vsel %vm451, %v436, 0
      %v456 = vsel %vm451, %v437, 0
      %v459 = vsel %vm451, %v438, 0
      %461 = vmatprep.subr.mxu0 0.0
      %462 = vmatpush1.msra.mxu0 0.0
      %463 = vmatprep.subr.mxu0 0.0
      %464 = vmatpush1.msra.mxu0 0.0
      %465 = vmatprep.subr.mxu0 0.0
      %466 = vmatpush1.msra.mxu0 0.0
      %467 = vmatprep.subr.mxu0 0.0
      %468 = vmatpush1.msra.mxu0 0.0
      %469 = vmatprep.subr.mxu0 0.0
      %470 = vmatpush1.msra.mxu0 0.0
      %471 = vmatprep.subr.mxu0 0.0
      %472 = vmatpush1.msra.mxu0 0.0
      %473 = vmatprep.subr.mxu0 0.0
      %474 = vmatpush1.msra.mxu0 0.0
      %475 = vmatprep.subr.mxu0 0.0
      %476 = vmatpush1.msra.mxu0 0.0
      %477 = vmatprep.subr.mxu0 0.0
      %478 = vmatpush1.msra.mxu0 0.0
      %479 = vmatprep.subr.mxu0 0.0
      %480 = vmatpush1.msra.mxu0 0.0
      %481 = vmatprep.subr.mxu0 0.0
      %482 = vmatpush1.msra.mxu0 0.0
      %483 = vmatprep.subr.mxu0 0.0
      %484 = vmatpush1.msra.mxu0 0.0
      %485 = vmatprep.subr.mxu0 0.0
      %486 = vmatpush1.msra.mxu0 %v414
      %487 = vmatprep.subr.mxu0 0.0
      %488 = vmatpush1.msra.mxu0 %v413
      %489 = vmatprep.subr.mxu0 0.0
      %490 = vmatpush1.msra.mxu0 %v412
      %491 = vmatprep.subr.mxu0 0.0
      %492 = vmatpush1.msra.mxu0 %v411
      %493 = vmatprep.subr.mxu0 0.0
      %494 = vmatpush2.msra.mxu0 0.0
      %495 = vmatprep.subr.mxu0 0.0
      %496 = vmatpush2.msra.mxu0 0.0
      %497 = vmatprep.subr.mxu0 0.0
      %498 = vmatpush2.msra.mxu0 0.0
      %499 = vmatprep.subr.mxu0 0.0
      %500 = vmatpush2.msra.mxu0 0.0
      %501 = vmatprep.subr.mxu0 0.0
      %502 = vmatpush2.msra.mxu0 0.0
      %503 = vmatprep.subr.mxu0 0.0
      %504 = vmatpush2.msra.mxu0 0.0
      %505 = vmatprep.subr.mxu0 0.0
      %506 = vmatpush2.msra.mxu0 0.0
      %507 = vmatprep.subr.mxu0 0.0
      %508 = vmatpush2.msra.mxu0 0.0
      %509 = vmatprep.subr.mxu0 0.0
      %510 = vmatpush2.msra.mxu0 0.0
      %511 = vmatprep.subr.mxu0 0.0
      %512 = vmatpush2.msra.mxu0 0.0
      %513 = vmatprep.subr.mxu0 0.0
      %514 = vmatpush2.msra.mxu0 0.0
      %515 = vmatprep.subr.mxu0 0.0
      %516 = vmatpush2.msra.mxu0 0.0
      %517 = vmatprep.subr.mxu0 0.0
      %518 = vmatpush2.msra.mxu0 0.0
      %519 = vmatprep.subr.mxu0 0.0
      %520 = vmatpush2.msra.mxu0 0.0
      %521 = vmatprep.subr.mxu0 0.0
      %522 = vmatpush2.msra.mxu0 0.0
      %523 = vmatprep.subr.mxu0 0.0
      %524 = vmatpush2.msra.mxu0 0.0
      %525 = vmatprep.mubr.f32.mxu0 0.0
      %526 = vmatmul.mubr.f32.gmra.mxu0 %v453
      %v527 = vpop.f32.mrf.mxu0
      %v528 = vadd.f32 0.0, %v527
      %v529 = vpop.f32.mrf.mxu0
      %530 = vmatprep.mubr.f32.mxu0 0.0
      %531 = vmatmul.mubr.f32.gmra.mxu0 %v456
      %v532 = vpop.f32.mrf.mxu0
      %v533 = vadd.f32 0.0, %v532
      %v534 = vpop.f32.mrf.mxu0
      %535 = vmatprep.mubr.f32.mxu0 0.0
      %536 = vmatmul.mubr.f32.gmra.mxu0 %v459
      %v537 = vpop.f32.mrf.mxu0
      %v538 = vadd.f32 0.0, %v537
      %v539 = vpop.f32.mrf.mxu0
      %540 = vdwg.mxu0
      %v542 = vsel %vm451, %v448, 0
      %v545 = vsel %vm451, %v449, 0
      %v548 = vsel %vm451, %v450, 0
      %550 = vmatprep.subr.mxu0 0.0
      %551 = vmatpush1.msra.mxu0 0.0
      %552 = vmatprep.subr.mxu0 0.0
      %553 = vmatpush1.msra.mxu0 0.0
      %554 = vmatprep.subr.mxu0 0.0
      %555 = vmatpush1.msra.mxu0 0.0
      %556 = vmatprep.subr.mxu0 0.0
      %557 = vmatpush1.msra.mxu0 0.0
      %558 = vmatprep.subr.mxu0 0.0
      %559 = vmatpush1.msra.mxu0 0.0
      %560 = vmatprep.subr.mxu0 0.0
      %561 = vmatpush1.msra.mxu0 0.0
      %562 = vmatprep.subr.mxu0 0.0
      %563 = vmatpush1.msra.mxu0 0.0
      %564 = vmatprep.subr.mxu0 0.0
      %565 = vmatpush1.msra.mxu0 0.0
      %566 = vmatprep.subr.mxu0 0.0
      %567 = vmatpush1.msra.mxu0 0.0
      %568 = vmatprep.subr.mxu0 0.0
      %569 = vmatpush1.msra.mxu0 0.0
      %570 = vmatprep.subr.mxu0 0.0
      %571 = vmatpush1.msra.mxu0 0.0
      %572 = vmatprep.subr.mxu0 0.0
      %573 = vmatpush1.msra.mxu0 0.0
      %574 = vmatprep.subr.mxu0 0.0
      %575 = vmatpush1.msra.mxu0 %v414
      %576 = vmatprep.subr.mxu0 0.0
      %577 = vmatpush1.msra.mxu0 %v413
      %578 = vmatprep.subr.mxu0 0.0
      %579 = vmatpush1.msra.mxu0 %v412
      %580 = vmatprep.subr.mxu0 0.0
      %581 = vmatpush1.msra.mxu0 %v411
      %582 = vmatprep.subr.mxu0 0.0
      %583 = vmatpush2.msra.mxu0 0.0
      %584 = vmatprep.subr.mxu0 0.0
      %585 = vmatpush2.msra.mxu0 0.0
      %586 = vmatprep.subr.mxu0 0.0
      %587 = vmatpush2.msra.mxu0 0.0
      %588 = vmatprep.subr.mxu0 0.0
      %589 = vmatpush2.msra.mxu0 0.0
      %590 = vmatprep.subr.mxu0 0.0
      %591 = vmatpush2.msra.mxu0 0.0
      %592 = vmatprep.subr.mxu0 0.0
      %593 = vmatpush2.msra.mxu0 0.0
      %594 = vmatprep.subr.mxu0 0.0
      %595 = vmatpush2.msra.mxu0 0.0
      %596 = vmatprep.subr.mxu0 0.0
      %597 = vmatpush2.msra.mxu0 0.0
      %598 = vmatprep.subr.mxu0 0.0
      %599 = vmatpush2.msra.mxu0 0.0
      %600 = vmatprep.subr.mxu0 0.0
      %601 = vmatpush2.msra.mxu0 0.0
      %602 = vmatprep.subr.mxu0 0.0
      %603 = vmatpush2.msra.mxu0 0.0
      %604 = vmatprep.subr.mxu0 0.0
      %605 = vmatpush2.msra.mxu0 0.0
      %606 = vmatprep.subr.mxu0 0.0
      %607 = vmatpush2.msra.mxu0 0.0
      %608 = vmatprep.subr.mxu0 0.0
      %609 = vmatpush2.msra.mxu0 0.0
      %610 = vmatprep.subr.mxu0 0.0
      %611 = vmatpush2.msra.mxu0 0.0
      %612 = vmatprep.subr.mxu0 0.0
      %613 = vmatpush2.msra.mxu0 0.0
      %614 = vmatprep.mubr.f32.mxu0 0.0
      %615 = vmatmul.mubr.f32.gmra.mxu0 %v542
      %v616 = vpop.f32.mrf.mxu0
      %v617 = vadd.f32 0.0, %v616
      %v618 = vpop.f32.mrf.mxu0
      %619 = vmatprep.mubr.f32.mxu0 0.0
      %620 = vmatmul.mubr.f32.gmra.mxu0 %v545
      %v621 = vpop.f32.mrf.mxu0
      %v622 = vadd.f32 0.0, %v621
      %v623 = vpop.f32.mrf.mxu0
      %624 = vmatprep.mubr.f32.mxu0 0.0
      %625 = vmatmul.mubr.f32.gmra.mxu0 %v548
      %v626 = vpop.f32.mrf.mxu0
      %v627 = vadd.f32 0.0, %v626
      %v628 = vpop.f32.mrf.mxu0
      %629 = vdwg.mxu0
      %v630 = vpack.c.bf16 %v533, %v528
      %v631 = vld [vmem:[%s1] sm:$0xff]
      %v632 = vld [vmem:[%s1 + $0x8] sm:$0xff]
      %v633 = vld [vmem:[%s1 + $0x10] sm:$0xff]
      %v634 = vld [vmem:[%s1 + $0x18] sm:$0xff]
      %v635 = vld [vmem:[%s1 + $0x20] sm:$0xff]
      %v636 = vld [vmem:[%s1 + $0x28] sm:$0xff]
      %v637 = vld [vmem:[%s1 + $0x30] sm:$0xff]
      %v638 = vld [vmem:[%s1 + $0x38] sm:$0xff]
      %v639 = vpack.c.bf16 %v622, %v617
      %s640 = scalar_lea.vmem %s1, 64
      %v641 = vld [vmem:[%s640] sm:$0xff]
      %v642 = vld [vmem:[%s640 + $0x8] sm:$0xff]
      %v643 = vld [vmem:[%s640 + $0x10] sm:$0xff]
      %v644 = vld [vmem:[%s640 + $0x18] sm:$0xff]
      %v645 = vld [vmem:[%s640 + $0x20] sm:$0xff]
      %v646 = vld [vmem:[%s640 + $0x28] sm:$0xff]
      %v647 = vld [vmem:[%s640 + $0x30] sm:$0xff]
      %v648 = vld [vmem:[%s640 + $0x38] sm:$0xff]
      %v657 = vunpack.c.l.b16 %v641
      %v658 = vunpack.c.h.b16 %v641
      %v659 = vunpack.c.l.b16 %v642
      %v660 = vunpack.c.h.b16 %v642
      %v661 = vunpack.c.l.b16 %v643
      %v662 = vunpack.c.h.b16 %v643
      %v663 = vunpack.c.l.b16 %v644
      %v664 = vunpack.c.h.b16 %v644
      %v665 = vunpack.c.l.b16 %v645
      %v666 = vunpack.c.h.b16 %v645
      %v667 = vunpack.c.l.b16 %v646
      %v668 = vunpack.c.h.b16 %v646
      %v669 = vunpack.c.l.b16 %v647
      %v670 = vunpack.c.h.b16 %v647
      %v671 = vunpack.c.l.b16 %v648
      %v672 = vunpack.c.h.b16 %v648
      %v673 = vpack.c.b16 %v659, %v657
      %v674 = vpack.c.b16 %v660, %v658
      %v675 = vpack.c.b16 %v663, %v661
      %v676 = vpack.c.b16 %v664, %v662
      %v677 = vpack.c.b16 %v667, %v665
      %v678 = vpack.c.b16 %v668, %v666
      %v679 = vpack.c.b16 %v671, %v669
      %v680 = vpack.c.b16 %v672, %v670
      %vm689 = vcmask 523264
      %v691 = vsel %vm689, %v639, 0
      %693 = vmatprep.subr.bf16.mxu0 0
      %694 = vmatpush1.bf16.msra.mxu0 0
      %695 = vmatprep.subr.bf16.mxu0 0
      %696 = vmatpush1.bf16.msra.mxu0 0
      %697 = vmatprep.subr.bf16.mxu0 0
      %698 = vmatpush1.bf16.msra.mxu0 0
      %699 = vmatprep.subr.bf16.mxu0 0
      %700 = vmatpush1.bf16.msra.mxu0 0
      %701 = vmatprep.subr.bf16.mxu0 %v680
      %702 = vmatpush1.bf16.msra.mxu0 %v679
      %703 = vmatprep.subr.bf16.mxu0 %v678
      %704 = vmatpush1.bf16.msra.mxu0 %v677
      %705 = vmatprep.subr.bf16.mxu0 %v676
      %706 = vmatpush1.bf16.msra.mxu0 %v675
      %707 = vmatprep.subr.bf16.mxu0 %v674
      %708 = vmatpush1.bf16.msra.mxu0 %v673
      %709 = vmatprep.subr.bf16.mxu0 0
      %710 = vmatpush2.bf16.msra.mxu0 0
      %711 = vmatprep.subr.bf16.mxu0 0
      %712 = vmatpush2.bf16.msra.mxu0 0
      %713 = vmatprep.subr.bf16.mxu0 0
      %714 = vmatpush2.bf16.msra.mxu0 0
      %715 = vmatprep.subr.bf16.mxu0 0
      %716 = vmatpush2.bf16.msra.mxu0 0
      %717 = vmatprep.subr.bf16.mxu0 0
      %718 = vmatpush2.bf16.msra.mxu0 0
      %719 = vmatprep.subr.bf16.mxu0 0
      %720 = vmatpush2.bf16.msra.mxu0 0
      %721 = vmatprep.subr.bf16.mxu0 0
      %722 = vmatpush2.bf16.msra.mxu0 0
      %723 = vmatprep.subr.bf16.mxu0 0
      %724 = vmatpush2.bf16.msra.mxu0 0
      %725 = vmatprep.mubr.bf16.mxu0 0
      %726 = vmatmul.mubr.bf16.gmra.mxu0 %v691
      %v727 = vpop.f32.mrf.mxu0
      %v728 = vadd.f32 0.0, %v727
      %v729 = vpop.f32.mrf.mxu0
      %v730 = vadd.f32 0.0, %v729
      %v731 = vpop.f32.mrf.mxu0
      %v732 = vadd.f32 0.0, %v731
      %v733 = vpop.f32.mrf.mxu0
      %v734 = vadd.f32 0.0, %v733
      %735 = vdwg.mxu0
      %v744 = vunpack.c.l.b16 %v631
      %v745 = vunpack.c.h.b16 %v631
      %v746 = vunpack.c.l.b16 %v632
      %v747 = vunpack.c.h.b16 %v632
      %v748 = vunpack.c.l.b16 %v633
      %v749 = vunpack.c.h.b16 %v633
      %v750 = vunpack.c.l.b16 %v634
      %v751 = vunpack.c.h.b16 %v634
      %v752 = vunpack.c.l.b16 %v635
      %v753 = vunpack.c.h.b16 %v635
      %v754 = vunpack.c.l.b16 %v636
      %v755 = vunpack.c.h.b16 %v636
      %v756 = vunpack.c.l.b16 %v637
      %v757 = vunpack.c.h.b16 %v637
      %v758 = vunpack.c.l.b16 %v638
      %v759 = vunpack.c.h.b16 %v638
      %v760 = vpack.c.b16 %v746, %v744
      %v761 = vpack.c.b16 %v747, %v745
      %v762 = vpack.c.b16 %v750, %v748
      %v763 = vpack.c.b16 %v751, %v749
      %v764 = vpack.c.b16 %v754, %v752
      %v765 = vpack.c.b16 %v755, %v753
      %v766 = vpack.c.b16 %v758, %v756
      %v767 = vpack.c.b16 %v759, %v757
      %v777 = vsel %vm689, %v630, 0
      %779 = vmatprep.subr.bf16.mxu0 0
      %780 = vmatpush1.bf16.msra.mxu0 0
      %781 = vmatprep.subr.bf16.mxu0 0
      %782 = vmatpush1.bf16.msra.mxu0 0
      %783 = vmatprep.subr.bf16.mxu0 0
      %784 = vmatpush1.bf16.msra.mxu0 0
      %785 = vmatprep.subr.bf16.mxu0 0
      %786 = vmatpush1.bf16.msra.mxu0 0
      %787 = vmatprep.subr.bf16.mxu0 %v767
      %788 = vmatpush1.bf16.msra.mxu0 %v766
      %789 = vmatprep.subr.bf16.mxu0 %v765
      %790 = vmatpush1.bf16.msra.mxu0 %v764
      %791 = vmatprep.subr.bf16.mxu0 %v763
      %792 = vmatpush1.bf16.msra.mxu0 %v762
      %793 = vmatprep.subr.bf16.mxu0 %v761
      %794 = vmatpush1.bf16.msra.mxu0 %v760
      %795 = vmatprep.subr.bf16.mxu0 0
      %796 = vmatpush2.bf16.msra.mxu0 0
      %797 = vmatprep.subr.bf16.mxu0 0
      %798 = vmatpush2.bf16.msra.mxu0 0
      %799 = vmatprep.subr.bf16.mxu0 0
      %800 = vmatpush2.bf16.msra.mxu0 0
      %801 = vmatprep.subr.bf16.mxu0 0
      %802 = vmatpush2.bf16.msra.mxu0 0
      %803 = vmatprep.subr.bf16.mxu0 0
      %804 = vmatpush2.bf16.msra.mxu0 0
      %805 = vmatprep.subr.bf16.mxu0 0
      %806 = vmatpush2.bf16.msra.mxu0 0
      %807 = vmatprep.subr.bf16.mxu0 0
      %808 = vmatpush2.bf16.msra.mxu0 0
      %809 = vmatprep.subr.bf16.mxu0 0
      %810 = vmatpush2.bf16.msra.mxu0 0
      %811 = vmatprep.mubr.bf16.mxu0 0
      %812 = vmatmul.mubr.bf16.gmra.mxu0 %v777
      %v813 = vpop.f32.mrf.mxu0
      %v814 = vadd.f32 %v728, %v813
      %v815 = vpop.f32.mrf.mxu0
      %v816 = vadd.f32 %v730, %v815
      %v817 = vpop.f32.mrf.mxu0
      %v818 = vadd.f32 %v732, %v817
      %v819 = vpop.f32.mrf.mxu0
      %v820 = vadd.f32 %v734, %v819
      %821 = vdwg.mxu0
      %v822 = vpack.c.bf16 %v538, %v538
      %s823 = scalar_lea.vmem %s1, 128
      %v824 = vld [vmem:[%s823] sm:$0xff]
      %v825 = vld [vmem:[%s823 + $0x8] sm:$0xff]
      %v826 = vld [vmem:[%s823 + $0x10] sm:$0xff]
      %v827 = vld [vmem:[%s823 + $0x18] sm:$0xff]
      %v828 = vld [vmem:[%s823 + $0x20] sm:$0xff]
      %v829 = vld [vmem:[%s823 + $0x28] sm:$0xff]
      %v830 = vld [vmem:[%s823 + $0x30] sm:$0xff]
      %v831 = vld [vmem:[%s823 + $0x38] sm:$0xff]
      %vm832 = vsmask.f32 7424
      %v833 = vshrl.u32 %v630, 16
      %v835 = vshll.u32 %v630, 16
      %v837 = vrot.slane %v835, 1
      %v838 = vor.u32 %v833, %v837
      %v840 = vshll.u32 %v822, 16
      %v842 = vrot.slane %v840, 1
      %v843 = vsel %vm832, %v838, %v842
      %v852 = vunpack.c.l.b16 %v824
      %v853 = vunpack.c.h.b16 %v824
      %v854 = vunpack.c.l.b16 %v825
      %v855 = vunpack.c.h.b16 %v825
      %v856 = vunpack.c.l.b16 %v826
      %v857 = vunpack.c.h.b16 %v826
      %v858 = vunpack.c.l.b16 %v827
      %v859 = vunpack.c.h.b16 %v827
      %v860 = vunpack.c.l.b16 %v828
      %v861 = vunpack.c.h.b16 %v828
      %v862 = vunpack.c.l.b16 %v829
      %v863 = vunpack.c.h.b16 %v829
      %v864 = vunpack.c.l.b16 %v830
      %v865 = vunpack.c.h.b16 %v830
      %v866 = vunpack.c.l.b16 %v831
      %v867 = vunpack.c.h.b16 %v831
      %v868 = vpack.c.b16 %v854, %v852
      %v869 = vpack.c.b16 %v855, %v853
      %v870 = vpack.c.b16 %v858, %v856
      %v871 = vpack.c.b16 %v859, %v857
      %v872 = vpack.c.b16 %v862, %v860
      %v873 = vpack.c.b16 %v863, %v861
      %v874 = vpack.c.b16 %v866, %v864
      %v875 = vpack.c.b16 %v867, %v865
      %v885 = vsel %vm689, %v843, 0
      %887 = vmatprep.subr.bf16.mxu0 0
      %888 = vmatpush1.bf16.msra.mxu0 0
      %889 = vmatprep.subr.bf16.mxu0 0
      %890 = vmatpush1.bf16.msra.mxu0 0
      %891 = vmatprep.subr.bf16.mxu0 0
      %892 = vmatpush1.bf16.msra.mxu0 0
      %893 = vmatprep.subr.bf16.mxu0 0
      %894 = vmatpush1.bf16.msra.mxu0 0
      %895 = vmatprep.subr.bf16.mxu0 %v875
      %896 = vmatpush1.bf16.msra.mxu0 %v874
      %897 = vmatprep.subr.bf16.mxu0 %v873
      %898 = vmatpush1.bf16.msra.mxu0 %v872
      %899 = vmatprep.subr.bf16.mxu0 %v871
      %900 = vmatpush1.bf16.msra.mxu0 %v870
      %901 = vmatprep.subr.bf16.mxu0 %v869
      %902 = vmatpush1.bf16.msra.mxu0 %v868
      %903 = vmatprep.subr.bf16.mxu0 0
      %904 = vmatpush2.bf16.msra.mxu0 0
      %905 = vmatprep.subr.bf16.mxu0 0
      %906 = vmatpush2.bf16.msra.mxu0 0
      %907 = vmatprep.subr.bf16.mxu0 0
      %908 = vmatpush2.bf16.msra.mxu0 0
      %909 = vmatprep.subr.bf16.mxu0 0
      %910 = vmatpush2.bf16.msra.mxu0 0
      %911 = vmatprep.subr.bf16.mxu0 0
      %912 = vmatpush2.bf16.msra.mxu0 0
      %913 = vmatprep.subr.bf16.mxu0 0
      %914 = vmatpush2.bf16.msra.mxu0 0
      %915 = vmatprep.subr.bf16.mxu0 0
      %916 = vmatpush2.bf16.msra.mxu0 0
      %917 = vmatprep.subr.bf16.mxu0 0
      %918 = vmatpush2.bf16.msra.mxu0 0
      %919 = vmatprep.mubr.bf16.mxu0 0
      %920 = vmatmul.mubr.bf16.gmra.mxu0 %v885
      %v921 = vpop.f32.mrf.mxu0
      %v922 = vadd.f32 0.0, %v921
      %v923 = vpop.f32.mrf.mxu0
      %v924 = vadd.f32 0.0, %v923
      %v925 = vpop.f32.mrf.mxu0
      %v926 = vadd.f32 0.0, %v925
      %v927 = vpop.f32.mrf.mxu0
      %v928 = vadd.f32 0.0, %v927
      %929 = vdwg.mxu0
      %v930 = vadd.f32 %v814, %v922
      %v931 = vadd.f32 %v816, %v924
      %v932 = vadd.f32 %v818, %v926
      %v933 = vadd.f32 %v820, %v928
      %v934 = vpack.c.bf16 %v627, %v627
      %s935 = scalar_lea.vmem %s1, 192
      %v936 = vld [vmem:[%s935] sm:$0xff]
      %v937 = vld [vmem:[%s935 + $0x8] sm:$0xff]
      %v938 = vld [vmem:[%s935 + $0x10] sm:$0xff]
      %v939 = vld [vmem:[%s935 + $0x18] sm:$0xff]
      %v940 = vld [vmem:[%s935 + $0x20] sm:$0xff]
      %v941 = vld [vmem:[%s935 + $0x28] sm:$0xff]
      %v942 = vld [vmem:[%s935 + $0x30] sm:$0xff]
      %v943 = vld [vmem:[%s935 + $0x38] sm:$0xff]
      %v944 = vshrl.u32 %v639, 16
      %v946 = vshll.u32 %v639, 16
      %v948 = vrot.slane %v946, 1
      %v949 = vor.u32 %v944, %v948
      %v951 = vshll.u32 %v934, 16
      %v953 = vrot.slane %v951, 1
      %v954 = vsel %vm832, %v949, %v953
      %v963 = vunpack.c.l.b16 %v936
      %v964 = vunpack.c.h.b16 %v936
      %v965 = vunpack.c.l.b16 %v937
      %v966 = vunpack.c.h.b16 %v937
      %v967 = vunpack.c.l.b16 %v938
      %v968 = vunpack.c.h.b16 %v938
      %v969 = vunpack.c.l.b16 %v939
      %v970 = vunpack.c.h.b16 %v939
      %v971 = vunpack.c.l.b16 %v940
      %v972 = vunpack.c.h.b16 %v940
      %v973 = vunpack.c.l.b16 %v941
      %v974 = vunpack.c.h.b16 %v941
      %v975 = vunpack.c.l.b16 %v942
      %v976 = vunpack.c.h.b16 %v942
      %v977 = vunpack.c.l.b16 %v943
      %v978 = vunpack.c.h.b16 %v943
      %v979 = vpack.c.b16 %v965, %v963
      %v980 = vpack.c.b16 %v966, %v964
      %v981 = vpack.c.b16 %v969, %v967
      %v982 = vpack.c.b16 %v970, %v968
      %v983 = vpack.c.b16 %v973, %v971
      %v984 = vpack.c.b16 %v974, %v972
      %v985 = vpack.c.b16 %v977, %v975
      %v986 = vpack.c.b16 %v978, %v976
      %v996 = vsel %vm689, %v954, 0
      %998 = vmatprep.subr.bf16.mxu0 0
      %999 = vmatpush1.bf16.msra.mxu0 0
      %1000 = vmatprep.subr.bf16.mxu0 0
      %1001 = vmatpush1.bf16.msra.mxu0 0
      %1002 = vmatprep.subr.bf16.mxu0 0
      %1003 = vmatpush1.bf16.msra.mxu0 0
      %1004 = vmatprep.subr.bf16.mxu0 0
      %1005 = vmatpush1.bf16.msra.mxu0 0
      %1006 = vmatprep.subr.bf16.mxu0 %v986
      %1007 = vmatpush1.bf16.msra.mxu0 %v985
      %1008 = vmatprep.subr.bf16.mxu0 %v984
      %1009 = vmatpush1.bf16.msra.mxu0 %v983
      %1010 = vmatprep.subr.bf16.mxu0 %v982
      %1011 = vmatpush1.bf16.msra.mxu0 %v981
      %1012 = vmatprep.subr.bf16.mxu0 %v980
      %1013 = vmatpush1.bf16.msra.mxu0 %v979
      %1014 = vmatprep.subr.bf16.mxu0 0
      %1015 = vmatpush2.bf16.msra.mxu0 0
      %1016 = vmatprep.subr.bf16.mxu0 0
      %1017 = vmatpush2.bf16.msra.mxu0 0
      %1018 = vmatprep.subr.bf16.mxu0 0
      %1019 = vmatpush2.bf16.msra.mxu0 0
      %1020 = vmatprep.subr.bf16.mxu0 0
      %1021 = vmatpush2.bf16.msra.mxu0 0
      %1022 = vmatprep.subr.bf16.mxu0 0
      %1023 = vmatpush2.bf16.msra.mxu0 0
      %1024 = vmatprep.subr.bf16.mxu0 0
      %1025 = vmatpush2.bf16.msra.mxu0 0
      %1026 = vmatprep.subr.bf16.mxu0 0
      %1027 = vmatpush2.bf16.msra.mxu0 0
      %1028 = vmatprep.subr.bf16.mxu0 0
      %1029 = vmatpush2.bf16.msra.mxu0 0
      %1030 = vmatprep.mubr.bf16.mxu0 0
      %1031 = vmatmul.mubr.bf16.gmra.mxu0 %v996
      %v1032 = vpop.f32.mrf.mxu0
      %v1033 = vadd.f32 0.0, %v1032
      %v1034 = vpop.f32.mrf.mxu0
      %v1035 = vadd.f32 0.0, %v1034
      %v1036 = vpop.f32.mrf.mxu0
      %v1037 = vadd.f32 0.0, %v1036
      %v1038 = vpop.f32.mrf.mxu0
      %v1039 = vadd.f32 0.0, %v1038
      %1040 = vdwg.mxu0
      %v1041 = vadd.f32 %v930, %v1033
      %v1042 = vadd.f32 %v931, %v1035
      %v1043 = vadd.f32 %v932, %v1037
      %v1044 = vadd.f32 %v933, %v1039
      %v1045 = vld [vmem:[%s6] sm:$0x3]
      %v1047 = vlaneseq
      %v1048 = vshrl.u32 %v1047, 7
      %v1049 = vsub.s32 0, %v1048
      %v1050 = vrot.slane %v1045, %v1049
      %v1051 = vlaneseq
      %v1052 = vshrl.u32 %v1051, 7
      %v1053 = vsub.s32 1, %v1052
      %v1054 = vrot.slane %v1045, %v1053
      %v1057 = vadd.f32 %v1041, %v1050
      %v1058 = vadd.f32 %v1042, %v1054
      %v1059 = vadd.f32 %v1043, %v1050
      %v1060 = vadd.f32 %v1044, %v1054
      %vm1061 = vcmp.gt.f32.partialorder %v1057, 0.0
      %vm1062 = vcmp.gt.f32.partialorder %v1058, 0.0
      %vm1063 = vcmp.gt.f32.partialorder %v1059, 0.0
      %vm1064 = vcmp.gt.f32.partialorder %v1060, 0.0
      %v1065 = vmul.f32 %v1057, 0.01
      %v1066 = vmul.f32 %v1058, 0.01
      %v1067 = vmul.f32 %v1059, 0.01
      %v1068 = vmul.f32 %v1060, 0.01
      %v1069 = vsel %vm1061, %v1057, %v1065
      %v1070 = vsel %vm1062, %v1058, %v1066
      %v1071 = vsel %vm1063, %v1059, %v1067
      %v1072 = vsel %vm1064, %v1060, %v1068
      %vm1073 = vcmp.lt.s32.totalorder %v416, 8
      %vm1074 = vcmp.lt.s32.totalorder %v417, 8
      %vm1075 = vmand %vm1073, %vm442
      %vm1076 = vmand %vm1074, %vm443
      %v1077 = vsel %vm1075, 1.0, 0.0
      %v1078 = vsel %vm1076, 1.0, 0.0
      %vm1079 = vcmask 130048
      %v1080 = vsel %vm1079, %v436, 0
      %v1082 = vsel %vm1079, %v437, 0
      %1084 = vmatprep.subr.mxu0 0.0
      %1085 = vmatpush1.msra.mxu0 0.0
      %1086 = vmatprep.subr.mxu0 0.0
      %1087 = vmatpush1.msra.mxu0 0.0
      %1088 = vmatprep.subr.mxu0 0.0
      %1089 = vmatpush1.msra.mxu0 0.0
      %1090 = vmatprep.subr.mxu0 0.0
      %1091 = vmatpush1.msra.mxu0 0.0
      %1092 = vmatprep.subr.mxu0 0.0
      %1093 = vmatpush1.msra.mxu0 0.0
      %1094 = vmatprep.subr.mxu0 0.0
      %1095 = vmatpush1.msra.mxu0 0.0
      %1096 = vmatprep.subr.mxu0 0.0
      %1097 = vmatpush1.msra.mxu0 0.0
      %1098 = vmatprep.subr.mxu0 0.0
      %1099 = vmatpush1.msra.mxu0 0.0
      %1100 = vmatprep.subr.mxu0 0.0
      %1101 = vmatpush1.msra.mxu0 0.0
      %1102 = vmatprep.subr.mxu0 0.0
      %1103 = vmatpush1.msra.mxu0 0.0
      %1104 = vmatprep.subr.mxu0 0.0
      %1105 = vmatpush1.msra.mxu0 0.0
      %1106 = vmatprep.subr.mxu0 0.0
      %1107 = vmatpush1.msra.mxu0 0.0
      %1108 = vmatprep.subr.mxu0 0.0
      %1109 = vmatpush1.msra.mxu0 0.0
      %1110 = vmatprep.subr.mxu0 0.0
      %1111 = vmatpush1.msra.mxu0 0.0
      %1112 = vmatprep.subr.mxu0 %v1072
      %1113 = vmatpush1.msra.mxu0 %v1071
      %1114 = vmatprep.subr.mxu0 %v1070
      %1115 = vmatpush1.msra.mxu0 %v1069
      %1116 = vmatprep.subr.mxu0 0.0
      %1117 = vmatpush2.msra.mxu0 0.0
      %1118 = vmatprep.subr.mxu0 0.0
      %1119 = vmatpush2.msra.mxu0 0.0
      %1120 = vmatprep.subr.mxu0 0.0
      %1121 = vmatpush2.msra.mxu0 0.0
      %1122 = vmatprep.subr.mxu0 0.0
      %1123 = vmatpush2.msra.mxu0 0.0
      %1124 = vmatprep.subr.mxu0 0.0
      %1125 = vmatpush2.msra.mxu0 0.0
      %1126 = vmatprep.subr.mxu0 0.0
      %1127 = vmatpush2.msra.mxu0 0.0
      %1128 = vmatprep.subr.mxu0 0.0
      %1129 = vmatpush2.msra.mxu0 0.0
      %1130 = vmatprep.subr.mxu0 0.0
      %1131 = vmatpush2.msra.mxu0 0.0
      %1132 = vmatprep.subr.mxu0 0.0
      %1133 = vmatpush2.msra.mxu0 0.0
      %1134 = vmatprep.subr.mxu0 0.0
      %1135 = vmatpush2.msra.mxu0 0.0
      %1136 = vmatprep.subr.mxu0 0.0
      %1137 = vmatpush2.msra.mxu0 0.0
      %1138 = vmatprep.subr.mxu0 0.0
      %1139 = vmatpush2.msra.mxu0 0.0
      %1140 = vmatprep.subr.mxu0 0.0
      %1141 = vmatpush2.msra.mxu0 0.0
      %1142 = vmatprep.subr.mxu0 0.0
      %1143 = vmatpush2.msra.mxu0 0.0
      %1144 = vmatprep.subr.mxu0 0.0
      %1145 = vmatpush2.msra.mxu0 0.0
      %1146 = vmatprep.subr.mxu0 0.0
      %1147 = vmatpush2.msra.mxu0 0.0
      %1148 = vmatprep.mubr.f32.mxu0 0.0
      %1149 = vmatmul.mubr.f32.gmra.mxu0 %v1080
      %v1150 = vpop.f32.mrf.mxu0
      %v1151 = vadd.f32 0.0, %v1150
      %v1152 = vpop.f32.mrf.mxu0
      %v1153 = vadd.f32 0.0, %v1152
      %1154 = vmatprep.mubr.f32.mxu0 0.0
      %1155 = vmatmul.mubr.f32.gmra.mxu0 %v1082
      %v1156 = vpop.f32.mrf.mxu0
      %v1157 = vadd.f32 0.0, %v1156
      %v1158 = vpop.f32.mrf.mxu0
      %v1159 = vadd.f32 0.0, %v1158
      %1160 = vdwg.mxu0
      %v1162 = vsel %vm1079, %v1077, 0
      %v1165 = vsel %vm1079, %v1078, 0
      %1167 = vmatprep.subr.mxu0 0.0
      %1168 = vmatpush1.msra.mxu0 0.0
      %1169 = vmatprep.subr.mxu0 0.0
      %1170 = vmatpush1.msra.mxu0 0.0
      %1171 = vmatprep.subr.mxu0 0.0
      %1172 = vmatpush1.msra.mxu0 0.0
      %1173 = vmatprep.subr.mxu0 0.0
      %1174 = vmatpush1.msra.mxu0 0.0
      %1175 = vmatprep.subr.mxu0 0.0
      %1176 = vmatpush1.msra.mxu0 0.0
      %1177 = vmatprep.subr.mxu0 0.0
      %1178 = vmatpush1.msra.mxu0 0.0
      %1179 = vmatprep.subr.mxu0 0.0
      %1180 = vmatpush1.msra.mxu0 0.0
      %1181 = vmatprep.subr.mxu0 0.0
      %1182 = vmatpush1.msra.mxu0 0.0
      %1183 = vmatprep.subr.mxu0 0.0
      %1184 = vmatpush1.msra.mxu0 0.0
      %1185 = vmatprep.subr.mxu0 0.0
      %1186 = vmatpush1.msra.mxu0 0.0
      %1187 = vmatprep.subr.mxu0 0.0
      %1188 = vmatpush1.msra.mxu0 0.0
      %1189 = vmatprep.subr.mxu0 0.0
      %1190 = vmatpush1.msra.mxu0 0.0
      %1191 = vmatprep.subr.mxu0 0.0
      %1192 = vmatpush1.msra.mxu0 0.0
      %1193 = vmatprep.subr.mxu0 0.0
      %1194 = vmatpush1.msra.mxu0 0.0
      %1195 = vmatprep.subr.mxu0 %v1072
      %1196 = vmatpush1.msra.mxu0 %v1071
      %1197 = vmatprep.subr.mxu0 %v1070
      %1198 = vmatpush1.msra.mxu0 %v1069
      %1199 = vmatprep.subr.mxu0 0.0
      %1200 = vmatpush2.msra.mxu0 0.0
      %1201 = vmatprep.subr.mxu0 0.0
      %1202 = vmatpush2.msra.mxu0 0.0
      %1203 = vmatprep.subr.mxu0 0.0
      %1204 = vmatpush2.msra.mxu0 0.0
      %1205 = vmatprep.subr.mxu0 0.0
      %1206 = vmatpush2.msra.mxu0 0.0
      %1207 = vmatprep.subr.mxu0 0.0
      %1208 = vmatpush2.msra.mxu0 0.0
      %1209 = vmatprep.subr.mxu0 0.0
      %1210 = vmatpush2.msra.mxu0 0.0
      %1211 = vmatprep.subr.mxu0 0.0
      %1212 = vmatpush2.msra.mxu0 0.0
      %1213 = vmatprep.subr.mxu0 0.0
      %1214 = vmatpush2.msra.mxu0 0.0
      %1215 = vmatprep.subr.mxu0 0.0
      %1216 = vmatpush2.msra.mxu0 0.0
      %1217 = vmatprep.subr.mxu0 0.0
      %1218 = vmatpush2.msra.mxu0 0.0
      %1219 = vmatprep.subr.mxu0 0.0
      %1220 = vmatpush2.msra.mxu0 0.0
      %1221 = vmatprep.subr.mxu0 0.0
      %1222 = vmatpush2.msra.mxu0 0.0
      %1223 = vmatprep.subr.mxu0 0.0
      %1224 = vmatpush2.msra.mxu0 0.0
      %1225 = vmatprep.subr.mxu0 0.0
      %1226 = vmatpush2.msra.mxu0 0.0
      %1227 = vmatprep.subr.mxu0 0.0
      %1228 = vmatpush2.msra.mxu0 0.0
      %1229 = vmatprep.subr.mxu0 0.0
      %1230 = vmatpush2.msra.mxu0 0.0
      %1231 = vmatprep.mubr.f32.mxu0 0.0
      %1232 = vmatmul.mubr.f32.gmra.mxu0 %v1162
      %v1233 = vpop.f32.mrf.mxu0
      %v1234 = vadd.f32 0.0, %v1233
      %v1235 = vpop.f32.mrf.mxu0
      %v1236 = vadd.f32 0.0, %v1235
      %1237 = vmatprep.mubr.f32.mxu0 0.0
      %1238 = vmatmul.mubr.f32.gmra.mxu0 %v1165
      %v1239 = vpop.f32.mrf.mxu0
      %v1240 = vadd.f32 0.0, %v1239
      %v1241 = vpop.f32.mrf.mxu0
      %v1242 = vadd.f32 0.0, %v1241
      %1243 = vdwg.mxu0
      %v1244 = vpack.c.bf16 %v1151, %v1151
      %v1245 = vpack.c.bf16 %v1153, %v1153
      %v1246 = vld [vmem:[%s2] sm:$0xff]
      %v1247 = vld [vmem:[%s2 + $0x8] sm:$0xff]
      %v1248 = vld [vmem:[%s2 + $0x10] sm:$0xff]
      %v1249 = vld [vmem:[%s2 + $0x18] sm:$0xff]
      %v1250 = vld [vmem:[%s2 + $0x20] sm:$0xff]
      %v1251 = vld [vmem:[%s2 + $0x28] sm:$0xff]
      %v1252 = vld [vmem:[%s2 + $0x30] sm:$0xff]
      %v1253 = vld [vmem:[%s2 + $0x38] sm:$0xff]
      %v1254 = vld [vmem:[%s2 + $0x40] sm:$0xff]
      %v1255 = vld [vmem:[%s2 + $0x48] sm:$0xff]
      %v1256 = vld [vmem:[%s2 + $0x50] sm:$0xff]
      %v1257 = vld [vmem:[%s2 + $0x58] sm:$0xff]
      %v1258 = vld [vmem:[%s2 + $0x60] sm:$0xff]
      %v1259 = vld [vmem:[%s2 + $0x68] sm:$0xff]
      %v1260 = vld [vmem:[%s2 + $0x70] sm:$0xff]
      %v1261 = vld [vmem:[%s2 + $0x78] sm:$0xff]
      %v1262 = vld [vmem:[%s2 + $0x80] sm:$0xff]
      %v1263 = vld [vmem:[%s2 + $0x88] sm:$0xff]
      %v1264 = vld [vmem:[%s2 + $0x90] sm:$0xff]
      %v1265 = vld [vmem:[%s2 + $0x98] sm:$0xff]
      %v1266 = vld [vmem:[%s2 + $0xa0] sm:$0xff]
      %v1267 = vld [vmem:[%s2 + $0xa8] sm:$0xff]
      %v1268 = vld [vmem:[%s2 + $0xb0] sm:$0xff]
      %v1269 = vld [vmem:[%s2 + $0xb8] sm:$0xff]
      %v1270 = vld [vmem:[%s2 + $0xc0] sm:$0xff]
      %v1271 = vld [vmem:[%s2 + $0xc8] sm:$0xff]
      %v1272 = vld [vmem:[%s2 + $0xd0] sm:$0xff]
      %v1273 = vld [vmem:[%s2 + $0xd8] sm:$0xff]
      %v1274 = vld [vmem:[%s2 + $0xe0] sm:$0xff]
      %v1275 = vld [vmem:[%s2 + $0xe8] sm:$0xff]
      %v1276 = vld [vmem:[%s2 + $0xf0] sm:$0xff]
      %v1277 = vld [vmem:[%s2 + $0xf8] sm:$0xff]
      %v1278 = vpack.c.bf16 %v1234, %v1234
      %v1279 = vpack.c.bf16 %v1236, %v1236
      %s1280 = scalar_lea.vmem %s2, 256
      %v1281 = vld [vmem:[%s1280] sm:$0xff]
      %v1282 = vld [vmem:[%s1280 + $0x8] sm:$0xff]
      %v1283 = vld [vmem:[%s1280 + $0x10] sm:$0xff]
      %v1284 = vld [vmem:[%s1280 + $0x18] sm:$0xff]
      %v1285 = vld [vmem:[%s1280 + $0x20] sm:$0xff]
      %v1286 = vld [vmem:[%s1280 + $0x28] sm:$0xff]
      %v1287 = vld [vmem:[%s1280 + $0x30] sm:$0xff]
      %v1288 = vld [vmem:[%s1280 + $0x38] sm:$0xff]
      %v1289 = vld [vmem:[%s1280 + $0x40] sm:$0xff]
      %v1290 = vld [vmem:[%s1280 + $0x48] sm:$0xff]
      %v1291 = vld [vmem:[%s1280 + $0x50] sm:$0xff]
      %v1292 = vld [vmem:[%s1280 + $0x58] sm:$0xff]
      %v1293 = vld [vmem:[%s1280 + $0x60] sm:$0xff]
      %v1294 = vld [vmem:[%s1280 + $0x68] sm:$0xff]
      %v1295 = vld [vmem:[%s1280 + $0x70] sm:$0xff]
      %v1296 = vld [vmem:[%s1280 + $0x78] sm:$0xff]
      %v1297 = vld [vmem:[%s1280 + $0x80] sm:$0xff]
      %v1298 = vld [vmem:[%s1280 + $0x88] sm:$0xff]
      %v1299 = vld [vmem:[%s1280 + $0x90] sm:$0xff]
      %v1300 = vld [vmem:[%s1280 + $0x98] sm:$0xff]
      %v1301 = vld [vmem:[%s1280 + $0xa0] sm:$0xff]
      %v1302 = vld [vmem:[%s1280 + $0xa8] sm:$0xff]
      %v1303 = vld [vmem:[%s1280 + $0xb0] sm:$0xff]
      %v1304 = vld [vmem:[%s1280 + $0xb8] sm:$0xff]
      %v1305 = vld [vmem:[%s1280 + $0xc0] sm:$0xff]
      %v1306 = vld [vmem:[%s1280 + $0xc8] sm:$0xff]
      %v1307 = vld [vmem:[%s1280 + $0xd0] sm:$0xff]
      %v1308 = vld [vmem:[%s1280 + $0xd8] sm:$0xff]
      %v1309 = vld [vmem:[%s1280 + $0xe0] sm:$0xff]
      %v1310 = vld [vmem:[%s1280 + $0xe8] sm:$0xff]
      %v1311 = vld [vmem:[%s1280 + $0xf0] sm:$0xff]
      %v1312 = vld [vmem:[%s1280 + $0xf8] sm:$0xff]
      %v1345 = vunpack.c.l.b16 %v1281
      %v1346 = vunpack.c.h.b16 %v1281
      %v1347 = vunpack.c.l.b16 %v1282
      %v1348 = vunpack.c.h.b16 %v1282
      %v1349 = vunpack.c.l.b16 %v1283
      %v1350 = vunpack.c.h.b16 %v1283
      %v1351 = vunpack.c.l.b16 %v1284
      %v1352 = vunpack.c.h.b16 %v1284
      %v1353 = vunpack.c.l.b16 %v1285
      %v1354 = vunpack.c.h.b16 %v1285
      %v1355 = vunpack.c.l.b16 %v1286
      %v1356 = vunpack.c.h.b16 %v1286
      %v1357 = vunpack.c.l.b16 %v1287
      %v1358 = vunpack.c.h.b16 %v1287
      %v1359 = vunpack.c.l.b16 %v1288
      %v1360 = vunpack.c.h.b16 %v1288
      %v1361 = vunpack.c.l.b16 %v1289
      %v1362 = vunpack.c.h.b16 %v1289
      %v1363 = vunpack.c.l.b16 %v1290
      %v1364 = vunpack.c.h.b16 %v1290
      %v1365 = vunpack.c.l.b16 %v1291
      %v1366 = vunpack.c.h.b16 %v1291
      %v1367 = vunpack.c.l.b16 %v1292
      %v1368 = vunpack.c.h.b16 %v1292
      %v1369 = vunpack.c.l.b16 %v1293
      %v1370 = vunpack.c.h.b16 %v1293
      %v1371 = vunpack.c.l.b16 %v1294
      %v1372 = vunpack.c.h.b16 %v1294
      %v1373 = vunpack.c.l.b16 %v1295
      %v1374 = vunpack.c.h.b16 %v1295
      %v1375 = vunpack.c.l.b16 %v1296
      %v1376 = vunpack.c.h.b16 %v1296
      %v1377 = vunpack.c.l.b16 %v1297
      %v1378 = vunpack.c.h.b16 %v1297
      %v1379 = vunpack.c.l.b16 %v1298
      %v1380 = vunpack.c.h.b16 %v1298
      %v1381 = vunpack.c.l.b16 %v1299
      %v1382 = vunpack.c.h.b16 %v1299
      %v1383 = vunpack.c.l.b16 %v1300
      %v1384 = vunpack.c.h.b16 %v1300
      %v1385 = vunpack.c.l.b16 %v1301
      %v1386 = vunpack.c.h.b16 %v1301
      %v1387 = vunpack.c.l.b16 %v1302
      %v1388 = vunpack.c.h.b16 %v1302
      %v1389 = vunpack.c.l.b16 %v1303
      %v1390 = vunpack.c.h.b16 %v1303
      %v1391 = vunpack.c.l.b16 %v1304
      %v1392 = vunpack.c.h.b16 %v1304
      %v1393 = vunpack.c.l.b16 %v1305
      %v1394 = vunpack.c.h.b16 %v1305
      %v1395 = vunpack.c.l.b16 %v1306
      %v1396 = vunpack.c.h.b16 %v1306
      %v1397 = vunpack.c.l.b16 %v1307
      %v1398 = vunpack.c.h.b16 %v1307
      %v1399 = vunpack.c.l.b16 %v1308
      %v1400 = vunpack.c.h.b16 %v1308
      %v1401 = vunpack.c.l.b16 %v1309
      %v1402 = vunpack.c.h.b16 %v1309
      %v1403 = vunpack.c.l.b16 %v1310
      %v1404 = vunpack.c.h.b16 %v1310
      %v1405 = vunpack.c.l.b16 %v1311
      %v1406 = vunpack.c.h.b16 %v1311
      %v1407 = vunpack.c.l.b16 %v1312
      %v1408 = vunpack.c.h.b16 %v1312
      %v1409 = vpack.c.b16 %v1347, %v1345
      %v1410 = vpack.c.b16 %v1348, %v1346
      %v1411 = vpack.c.b16 %v1351, %v1349
      %v1412 = vpack.c.b16 %v1352, %v1350
      %v1413 = vpack.c.b16 %v1355, %v1353
      %v1414 = vpack.c.b16 %v1356, %v1354
      %v1415 = vpack.c.b16 %v1359, %v1357
      %v1416 = vpack.c.b16 %v1360, %v1358
      %v1417 = vpack.c.b16 %v1363, %v1361
      %v1418 = vpack.c.b16 %v1364, %v1362
      %v1419 = vpack.c.b16 %v1367, %v1365
      %v1420 = vpack.c.b16 %v1368, %v1366
      %v1421 = vpack.c.b16 %v1371, %v1369
      %v1422 = vpack.c.b16 %v1372, %v1370
      %v1423 = vpack.c.b16 %v1375, %v1373
      %v1424 = vpack.c.b16 %v1376, %v1374
      %v1425 = vpack.c.b16 %v1379, %v1377
      %v1426 = vpack.c.b16 %v1380, %v1378
      %v1427 = vpack.c.b16 %v1383, %v1381
      %v1428 = vpack.c.b16 %v1384, %v1382
      %v1429 = vpack.c.b16 %v1387, %v1385
      %v1430 = vpack.c.b16 %v1388, %v1386
      %v1431 = vpack.c.b16 %v1391, %v1389
      %v1432 = vpack.c.b16 %v1392, %v1390
      %v1433 = vpack.c.b16 %v1395, %v1393
      %v1434 = vpack.c.b16 %v1396, %v1394
      %v1435 = vpack.c.b16 %v1399, %v1397
      %v1436 = vpack.c.b16 %v1400, %v1398
      %v1437 = vpack.c.b16 %v1403, %v1401
      %v1438 = vpack.c.b16 %v1404, %v1402
      %v1439 = vpack.c.b16 %v1407, %v1405
      %v1440 = vpack.c.b16 %v1408, %v1406
      %1473 = vmatprep.subr.bf16.mxu0 %v1424
      %1474 = vmatpush1.bf16.msra.mxu0 %v1423
      %1475 = vmatprep.subr.bf16.mxu0 %v1422
      %1476 = vmatpush1.bf16.msra.mxu0 %v1421
      %1477 = vmatprep.subr.bf16.mxu0 %v1420
      %1478 = vmatpush1.bf16.msra.mxu0 %v1419
      %1479 = vmatprep.subr.bf16.mxu0 %v1418
      %1480 = vmatpush1.bf16.msra.mxu0 %v1417
      %1481 = vmatprep.subr.bf16.mxu0 %v1416
      %1482 = vmatpush1.bf16.msra.mxu0 %v1415
      %1483 = vmatprep.subr.bf16.mxu0 %v1414
      %1484 = vmatpush1.bf16.msra.mxu0 %v1413
      %1485 = vmatprep.subr.bf16.mxu0 %v1412
      %1486 = vmatpush1.bf16.msra.mxu0 %v1411
      %1487 = vmatprep.subr.bf16.mxu0 %v1410
      %1488 = vmatpush1.bf16.msra.mxu0 %v1409
      %1489 = vmatprep.subr.bf16.mxu0 %v1440
      %1490 = vmatpush2.bf16.msra.mxu0 %v1439
      %1491 = vmatprep.subr.bf16.mxu0 %v1438
      %1492 = vmatpush2.bf16.msra.mxu0 %v1437
      %1493 = vmatprep.subr.bf16.mxu0 %v1436
      %1494 = vmatpush2.bf16.msra.mxu0 %v1435
      %1495 = vmatprep.subr.bf16.mxu0 %v1434
      %1496 = vmatpush2.bf16.msra.mxu0 %v1433
      %1497 = vmatprep.subr.bf16.mxu0 %v1432
      %1498 = vmatpush2.bf16.msra.mxu0 %v1431
      %1499 = vmatprep.subr.bf16.mxu0 %v1430
      %1500 = vmatpush2.bf16.msra.mxu0 %v1429
      %1501 = vmatprep.subr.bf16.mxu0 %v1428
      %1502 = vmatpush2.bf16.msra.mxu0 %v1427
      %1503 = vmatprep.subr.bf16.mxu0 %v1426
      %1504 = vmatpush2.bf16.msra.mxu0 %v1425
      %1505 = vmatprep.mubr.bf16.mxu0 %v1279
      %1506 = vmatmul.mubr.bf16.gmra.mxu0 %v1278
      %v1507 = vpop.f32.mrf.mxu0
      %v1508 = vadd.f32 0.0, %v1507
      %v1509 = vpop.f32.mrf.mxu0
      %v1510 = vadd.f32 0.0, %v1509
      %v1511 = vpop.f32.mrf.mxu0
      %v1512 = vpop.f32.mrf.mxu0
      %1513 = vdwg.mxu0
      %v1546 = vunpack.c.l.b16 %v1246
      %v1547 = vunpack.c.h.b16 %v1246
      %v1548 = vunpack.c.l.b16 %v1247
      %v1549 = vunpack.c.h.b16 %v1247
      %v1550 = vunpack.c.l.b16 %v1248
      %v1551 = vunpack.c.h.b16 %v1248
      %v1552 = vunpack.c.l.b16 %v1249
      %v1553 = vunpack.c.h.b16 %v1249
      %v1554 = vunpack.c.l.b16 %v1250
      %v1555 = vunpack.c.h.b16 %v1250
      %v1556 = vunpack.c.l.b16 %v1251
      %v1557 = vunpack.c.h.b16 %v1251
      %v1558 = vunpack.c.l.b16 %v1252
      %v1559 = vunpack.c.h.b16 %v1252
      %v1560 = vunpack.c.l.b16 %v1253
      %v1561 = vunpack.c.h.b16 %v1253
      %v1562 = vunpack.c.l.b16 %v1254
      %v1563 = vunpack.c.h.b16 %v1254
      %v1564 = vunpack.c.l.b16 %v1255
      %v1565 = vunpack.c.h.b16 %v1255
      %v1566 = vunpack.c.l.b16 %v1256
      %v1567 = vunpack.c.h.b16 %v1256
      %v1568 = vunpack.c.l.b16 %v1257
      %v1569 = vunpack.c.h.b16 %v1257
      %v1570 = vunpack.c.l.b16 %v1258
      %v1571 = vunpack.c.h.b16 %v1258
      %v1572 = vunpack.c.l.b16 %v1259
      %v1573 = vunpack.c.h.b16 %v1259
      %v1574 = vunpack.c.l.b16 %v1260
      %v1575 = vunpack.c.h.b16 %v1260
      %v1576 = vunpack.c.l.b16 %v1261
      %v1577 = vunpack.c.h.b16 %v1261
      %v1578 = vunpack.c.l.b16 %v1262
      %v1579 = vunpack.c.h.b16 %v1262
      %v1580 = vunpack.c.l.b16 %v1263
      %v1581 = vunpack.c.h.b16 %v1263
      %v1582 = vunpack.c.l.b16 %v1264
      %v1583 = vunpack.c.h.b16 %v1264
      %v1584 = vunpack.c.l.b16 %v1265
      %v1585 = vunpack.c.h.b16 %v1265
      %v1586 = vunpack.c.l.b16 %v1266
      %v1587 = vunpack.c.h.b16 %v1266
      %v1588 = vunpack.c.l.b16 %v1267
      %v1589 = vunpack.c.h.b16 %v1267
      %v1590 = vunpack.c.l.b16 %v1268
      %v1591 = vunpack.c.h.b16 %v1268
      %v1592 = vunpack.c.l.b16 %v1269
      %v1593 = vunpack.c.h.b16 %v1269
      %v1594 = vunpack.c.l.b16 %v1270
      %v1595 = vunpack.c.h.b16 %v1270
      %v1596 = vunpack.c.l.b16 %v1271
      %v1597 = vunpack.c.h.b16 %v1271
      %v1598 = vunpack.c.l.b16 %v1272
      %v1599 = vunpack.c.h.b16 %v1272
      %v1600 = vunpack.c.l.b16 %v1273
      %v1601 = vunpack.c.h.b16 %v1273
      %v1602 = vunpack.c.l.b16 %v1274
      %v1603 = vunpack.c.h.b16 %v1274
      %v1604 = vunpack.c.l.b16 %v1275
      %v1605 = vunpack.c.h.b16 %v1275
      %v1606 = vunpack.c.l.b16 %v1276
      %v1607 = vunpack.c.h.b16 %v1276
      %v1608 = vunpack.c.l.b16 %v1277
      %v1609 = vunpack.c.h.b16 %v1277
      %v1610 = vpack.c.b16 %v1548, %v1546
      %v1611 = vpack.c.b16 %v1549, %v1547
      %v1612 = vpack.c.b16 %v1552, %v1550
      %v1613 = vpack.c.b16 %v1553, %v1551
      %v1614 = vpack.c.b16 %v1556, %v1554
      %v1615 = vpack.c.b16 %v1557, %v1555
      %v1616 = vpack.c.b16 %v1560, %v1558
      %v1617 = vpack.c.b16 %v1561, %v1559
      %v1618 = vpack.c.b16 %v1564, %v1562
      %v1619 = vpack.c.b16 %v1565, %v1563
      %v1620 = vpack.c.b16 %v1568, %v1566
      %v1621 = vpack.c.b16 %v1569, %v1567
      %v1622 = vpack.c.b16 %v1572, %v1570
      %v1623 = vpack.c.b16 %v1573, %v1571
      %v1624 = vpack.c.b16 %v1576, %v1574
      %v1625 = vpack.c.b16 %v1577, %v1575
      %v1626 = vpack.c.b16 %v1580, %v1578
      %v1627 = vpack.c.b16 %v1581, %v1579
      %v1628 = vpack.c.b16 %v1584, %v1582
      %v1629 = vpack.c.b16 %v1585, %v1583
      %v1630 = vpack.c.b16 %v1588, %v1586
      %v1631 = vpack.c.b16 %v1589, %v1587
      %v1632 = vpack.c.b16 %v1592, %v1590
      %v1633 = vpack.c.b16 %v1593, %v1591
      %v1634 = vpack.c.b16 %v1596, %v1594
      %v1635 = vpack.c.b16 %v1597, %v1595
      %v1636 = vpack.c.b16 %v1600, %v1598
      %v1637 = vpack.c.b16 %v1601, %v1599
      %v1638 = vpack.c.b16 %v1604, %v1602
      %v1639 = vpack.c.b16 %v1605, %v1603
      %v1640 = vpack.c.b16 %v1608, %v1606
      %v1641 = vpack.c.b16 %v1609, %v1607
      %1674 = vmatprep.subr.bf16.mxu0 %v1625
      %1675 = vmatpush1.bf16.msra.mxu0 %v1624
      %1676 = vmatprep.subr.bf16.mxu0 %v1623
      %1677 = vmatpush1.bf16.msra.mxu0 %v1622
      %1678 = vmatprep.subr.bf16.mxu0 %v1621
      %1679 = vmatpush1.bf16.msra.mxu0 %v1620
      %1680 = vmatprep.subr.bf16.mxu0 %v1619
      %1681 = vmatpush1.bf16.msra.mxu0 %v1618
      %1682 = vmatprep.subr.bf16.mxu0 %v1617
      %1683 = vmatpush1.bf16.msra.mxu0 %v1616
      %1684 = vmatprep.subr.bf16.mxu0 %v1615
      %1685 = vmatpush1.bf16.msra.mxu0 %v1614
      %1686 = vmatprep.subr.bf16.mxu0 %v1613
      %1687 = vmatpush1.bf16.msra.mxu0 %v1612
      %1688 = vmatprep.subr.bf16.mxu0 %v1611
      %1689 = vmatpush1.bf16.msra.mxu0 %v1610
      %1690 = vmatprep.subr.bf16.mxu0 %v1641
      %1691 = vmatpush2.bf16.msra.mxu0 %v1640
      %1692 = vmatprep.subr.bf16.mxu0 %v1639
      %1693 = vmatpush2.bf16.msra.mxu0 %v1638
      %1694 = vmatprep.subr.bf16.mxu0 %v1637
      %1695 = vmatpush2.bf16.msra.mxu0 %v1636
      %1696 = vmatprep.subr.bf16.mxu0 %v1635
      %1697 = vmatpush2.bf16.msra.mxu0 %v1634
      %1698 = vmatprep.subr.bf16.mxu0 %v1633
      %1699 = vmatpush2.bf16.msra.mxu0 %v1632
      %1700 = vmatprep.subr.bf16.mxu0 %v1631
      %1701 = vmatpush2.bf16.msra.mxu0 %v1630
      %1702 = vmatprep.subr.bf16.mxu0 %v1629
      %1703 = vmatpush2.bf16.msra.mxu0 %v1628
      %1704 = vmatprep.subr.bf16.mxu0 %v1627
      %1705 = vmatpush2.bf16.msra.mxu0 %v1626
      %1706 = vmatprep.mubr.bf16.mxu0 %v1245
      %1707 = vmatmul.mubr.bf16.gmra.mxu0 %v1244
      %v1708 = vpop.f32.mrf.mxu0
      %v1709 = vadd.f32 %v1508, %v1708
      %v1710 = vpop.f32.mrf.mxu0
      %v1711 = vadd.f32 %v1510, %v1710
      %v1712 = vpop.f32.mrf.mxu0
      %v1713 = vpop.f32.mrf.mxu0
      %1714 = vdwg.mxu0
      %v1715 = vpack.c.bf16 %v1157, %v1151
      %v1716 = vpack.c.bf16 %v1159, %v1153
      %s1717 = scalar_lea.vmem %s2, 512
      %v1718 = vld [vmem:[%s1717] sm:$0xff]
      %v1719 = vld [vmem:[%s1717 + $0x8] sm:$0xff]
      %v1720 = vld [vmem:[%s1717 + $0x10] sm:$0xff]
      %v1721 = vld [vmem:[%s1717 + $0x18] sm:$0xff]
      %v1722 = vld [vmem:[%s1717 + $0x20] sm:$0xff]
      %v1723 = vld [vmem:[%s1717 + $0x28] sm:$0xff]
      %v1724 = vld [vmem:[%s1717 + $0x30] sm:$0xff]
      %v1725 = vld [vmem:[%s1717 + $0x38] sm:$0xff]
      %v1726 = vld [vmem:[%s1717 + $0x40] sm:$0xff]
      %v1727 = vld [vmem:[%s1717 + $0x48] sm:$0xff]
      %v1728 = vld [vmem:[%s1717 + $0x50] sm:$0xff]
      %v1729 = vld [vmem:[%s1717 + $0x58] sm:$0xff]
      %v1730 = vld [vmem:[%s1717 + $0x60] sm:$0xff]
      %v1731 = vld [vmem:[%s1717 + $0x68] sm:$0xff]
      %v1732 = vld [vmem:[%s1717 + $0x70] sm:$0xff]
      %v1733 = vld [vmem:[%s1717 + $0x78] sm:$0xff]
      %v1734 = vld [vmem:[%s1717 + $0x80] sm:$0xff]
      %v1735 = vld [vmem:[%s1717 + $0x88] sm:$0xff]
      %v1736 = vld [vmem:[%s1717 + $0x90] sm:$0xff]
      %v1737 = vld [vmem:[%s1717 + $0x98] sm:$0xff]
      %v1738 = vld [vmem:[%s1717 + $0xa0] sm:$0xff]
      %v1739 = vld [vmem:[%s1717 + $0xa8] sm:$0xff]
      %v1740 = vld [vmem:[%s1717 + $0xb0] sm:$0xff]
      %v1741 = vld [vmem:[%s1717 + $0xb8] sm:$0xff]
      %v1742 = vld [vmem:[%s1717 + $0xc0] sm:$0xff]
      %v1743 = vld [vmem:[%s1717 + $0xc8] sm:$0xff]
      %v1744 = vld [vmem:[%s1717 + $0xd0] sm:$0xff]
      %v1745 = vld [vmem:[%s1717 + $0xd8] sm:$0xff]
      %v1746 = vld [vmem:[%s1717 + $0xe0] sm:$0xff]
      %v1747 = vld [vmem:[%s1717 + $0xe8] sm:$0xff]
      %v1748 = vld [vmem:[%s1717 + $0xf0] sm:$0xff]
      %v1749 = vld [vmem:[%s1717 + $0xf8] sm:$0xff]
      %v1751 = vshrl.u32 %v1715, 16
      %v1753 = vshll.u32 %v1715, 16
      %v1755 = vrot.slane %v1753, 1
      %v1756 = vor.u32 %v1751, %v1755
      %v1758 = vshrl.u32 %v1716, 16
      %v1760 = vshll.u32 %v1716, 16
      %v1762 = vrot.slane %v1760, 1
      %v1763 = vor.u32 %v1758, %v1762
      %v1798 = vunpack.c.l.b16 %v1718
      %v1799 = vunpack.c.h.b16 %v1718
      %v1800 = vunpack.c.l.b16 %v1719
      %v1801 = vunpack.c.h.b16 %v1719
      %v1802 = vunpack.c.l.b16 %v1720
      %v1803 = vunpack.c.h.b16 %v1720
      %v1804 = vunpack.c.l.b16 %v1721
      %v1805 = vunpack.c.h.b16 %v1721
      %v1806 = vunpack.c.l.b16 %v1722
      %v1807 = vunpack.c.h.b16 %v1722
      %v1808 = vunpack.c.l.b16 %v1723
      %v1809 = vunpack.c.h.b16 %v1723
      %v1810 = vunpack.c.l.b16 %v1724
      %v1811 = vunpack.c.h.b16 %v1724
      %v1812 = vunpack.c.l.b16 %v1725
      %v1813 = vunpack.c.h.b16 %v1725
      %v1814 = vunpack.c.l.b16 %v1726
      %v1815 = vunpack.c.h.b16 %v1726
      %v1816 = vunpack.c.l.b16 %v1727
      %v1817 = vunpack.c.h.b16 %v1727
      %v1818 = vunpack.c.l.b16 %v1728
      %v1819 = vunpack.c.h.b16 %v1728
      %v1820 = vunpack.c.l.b16 %v1729
      %v1821 = vunpack.c.h.b16 %v1729
      %v1822 = vunpack.c.l.b16 %v1730
      %v1823 = vunpack.c.h.b16 %v1730
      %v1824 = vunpack.c.l.b16 %v1731
      %v1825 = vunpack.c.h.b16 %v1731
      %v1826 = vunpack.c.l.b16 %v1732
      %v1827 = vunpack.c.h.b16 %v1732
      %v1828 = vunpack.c.l.b16 %v1733
      %v1829 = vunpack.c.h.b16 %v1733
      %v1830 = vunpack.c.l.b16 %v1734
      %v1831 = vunpack.c.h.b16 %v1734
      %v1832 = vunpack.c.l.b16 %v1735
      %v1833 = vunpack.c.h.b16 %v1735
      %v1834 = vunpack.c.l.b16 %v1736
      %v1835 = vunpack.c.h.b16 %v1736
      %v1836 = vunpack.c.l.b16 %v1737
      %v1837 = vunpack.c.h.b16 %v1737
      %v1838 = vunpack.c.l.b16 %v1738
      %v1839 = vunpack.c.h.b16 %v1738
      %v1840 = vunpack.c.l.b16 %v1739
      %v1841 = vunpack.c.h.b16 %v1739
      %v1842 = vunpack.c.l.b16 %v1740
      %v1843 = vunpack.c.h.b16 %v1740
      %v1844 = vunpack.c.l.b16 %v1741
      %v1845 = vunpack.c.h.b16 %v1741
      %v1846 = vunpack.c.l.b16 %v1742
      %v1847 = vunpack.c.h.b16 %v1742
      %v1848 = vunpack.c.l.b16 %v1743
      %v1849 = vunpack.c.h.b16 %v1743
      %v1850 = vunpack.c.l.b16 %v1744
      %v1851 = vunpack.c.h.b16 %v1744
      %v1852 = vunpack.c.l.b16 %v1745
      %v1853 = vunpack.c.h.b16 %v1745
      %v1854 = vunpack.c.l.b16 %v1746
      %v1855 = vunpack.c.h.b16 %v1746
      %v1856 = vunpack.c.l.b16 %v1747
      %v1857 = vunpack.c.h.b16 %v1747
      %v1858 = vunpack.c.l.b16 %v1748
      %v1859 = vunpack.c.h.b16 %v1748
      %v1860 = vunpack.c.l.b16 %v1749
      %v1861 = vunpack.c.h.b16 %v1749
      %v1862 = vpack.c.b16 %v1800, %v1798
      %v1863 = vpack.c.b16 %v1801, %v1799
      %v1864 = vpack.c.b16 %v1804, %v1802
      %v1865 = vpack.c.b16 %v1805, %v1803
      %v1866 = vpack.c.b16 %v1808, %v1806
      %v1867 = vpack.c.b16 %v1809, %v1807
      %v1868 = vpack.c.b16 %v1812, %v1810
      %v1869 = vpack.c.b16 %v1813, %v1811
      %v1870 = vpack.c.b16 %v1816, %v1814
      %v1871 = vpack.c.b16 %v1817, %v1815
      %v1872 = vpack.c.b16 %v1820, %v1818
      %v1873 = vpack.c.b16 %v1821, %v1819
      %v1874 = vpack.c.b16 %v1824, %v1822
      %v1875 = vpack.c.b16 %v1825, %v1823
      %v1876 = vpack.c.b16 %v1828, %v1826
      %v1877 = vpack.c.b16 %v1829, %v1827
      %v1878 = vpack.c.b16 %v1832, %v1830
      %v1879 = vpack.c.b16 %v1833, %v1831
      %v1880 = vpack.c.b16 %v1836, %v1834
      %v1881 = vpack.c.b16 %v1837, %v1835
      %v1882 = vpack.c.b16 %v1840, %v1838
      %v1883 = vpack.c.b16 %v1841, %v1839
      %v1884 = vpack.c.b16 %v1844, %v1842
      %v1885 = vpack.c.b16 %v1845, %v1843
      %v1886 = vpack.c.b16 %v1848, %v1846
      %v1887 = vpack.c.b16 %v1849, %v1847
      %v1888 = vpack.c.b16 %v1852, %v1850
      %v1889 = vpack.c.b16 %v1853, %v1851
      %v1890 = vpack.c.b16 %v1856, %v1854
      %v1891 = vpack.c.b16 %v1857, %v1855
      %v1892 = vpack.c.b16 %v1860, %v1858
      %v1893 = vpack.c.b16 %v1861, %v1859
      %1926 = vmatprep.subr.bf16.mxu0 %v1877
      %1927 = vmatpush1.bf16.msra.mxu0 %v1876
      %1928 = vmatprep.subr.bf16.mxu0 %v1875
      %1929 = vmatpush1.bf16.msra.mxu0 %v1874
      %1930 = vmatprep.subr.bf16.mxu0 %v1873
      %1931 = vmatpush1.bf16.msra.mxu0 %v1872
      %1932 = vmatprep.subr.bf16.mxu0 %v1871
      %1933 = vmatpush1.bf16.msra.mxu0 %v1870
      %1934 = vmatprep.subr.bf16.mxu0 %v1869
      %1935 = vmatpush1.bf16.msra.mxu0 %v1868
      %1936 = vmatprep.subr.bf16.mxu0 %v1867
      %1937 = vmatpush1.bf16.msra.mxu0 %v1866
      %1938 = vmatprep.subr.bf16.mxu0 %v1865
      %1939 = vmatpush1.bf16.msra.mxu0 %v1864
      %1940 = vmatprep.subr.bf16.mxu0 %v1863
      %1941 = vmatpush1.bf16.msra.mxu0 %v1862
      %1942 = vmatprep.subr.bf16.mxu0 %v1893
      %1943 = vmatpush2.bf16.msra.mxu0 %v1892
      %1944 = vmatprep.subr.bf16.mxu0 %v1891
      %1945 = vmatpush2.bf16.msra.mxu0 %v1890
      %1946 = vmatprep.subr.bf16.mxu0 %v1889
      %1947 = vmatpush2.bf16.msra.mxu0 %v1888
      %1948 = vmatprep.subr.bf16.mxu0 %v1887
      %1949 = vmatpush2.bf16.msra.mxu0 %v1886
      %1950 = vmatprep.subr.bf16.mxu0 %v1885
      %1951 = vmatpush2.bf16.msra.mxu0 %v1884
      %1952 = vmatprep.subr.bf16.mxu0 %v1883
      %1953 = vmatpush2.bf16.msra.mxu0 %v1882
      %1954 = vmatprep.subr.bf16.mxu0 %v1881
      %1955 = vmatpush2.bf16.msra.mxu0 %v1880
      %1956 = vmatprep.subr.bf16.mxu0 %v1879
      %1957 = vmatpush2.bf16.msra.mxu0 %v1878
      %1958 = vmatprep.mubr.bf16.mxu0 %v1763
      %1959 = vmatmul.mubr.bf16.gmra.mxu0 %v1756
      %v1960 = vpop.f32.mrf.mxu0
      %v1961 = vadd.f32 0.0, %v1960
      %v1962 = vpop.f32.mrf.mxu0
      %v1963 = vadd.f32 0.0, %v1962
      %v1964 = vpop.f32.mrf.mxu0
      %v1965 = vpop.f32.mrf.mxu0
      %1966 = vdwg.mxu0
      %v1967 = vadd.f32 %v1709, %v1961
      %v1968 = vadd.f32 %v1711, %v1963
      %v1969 = vpack.c.bf16 %v1240, %v1234
      %v1970 = vpack.c.bf16 %v1242, %v1236
      %s1971 = scalar_lea.vmem %s2, 768
      %v1972 = vld [vmem:[%s1971] sm:$0xff]
      %v1973 = vld [vmem:[%s1971 + $0x8] sm:$0xff]
      %v1974 = vld [vmem:[%s1971 + $0x10] sm:$0xff]
      %v1975 = vld [vmem:[%s1971 + $0x18] sm:$0xff]
      %v1976 = vld [vmem:[%s1971 + $0x20] sm:$0xff]
      %v1977 = vld [vmem:[%s1971 + $0x28] sm:$0xff]
      %v1978 = vld [vmem:[%s1971 + $0x30] sm:$0xff]
      %v1979 = vld [vmem:[%s1971 + $0x38] sm:$0xff]
      %v1980 = vld [vmem:[%s1971 + $0x40] sm:$0xff]
      %v1981 = vld [vmem:[%s1971 + $0x48] sm:$0xff]
      %v1982 = vld [vmem:[%s1971 + $0x50] sm:$0xff]
      %v1983 = vld [vmem:[%s1971 + $0x58] sm:$0xff]
      %v1984 = vld [vmem:[%s1971 + $0x60] sm:$0xff]
      %v1985 = vld [vmem:[%s1971 + $0x68] sm:$0xff]
      %v1986 = vld [vmem:[%s1971 + $0x70] sm:$0xff]
      %v1987 = vld [vmem:[%s1971 + $0x78] sm:$0xff]
      %v1988 = vld [vmem:[%s1971 + $0x80] sm:$0xff]
      %v1989 = vld [vmem:[%s1971 + $0x88] sm:$0xff]
      %v1990 = vld [vmem:[%s1971 + $0x90] sm:$0xff]
      %v1991 = vld [vmem:[%s1971 + $0x98] sm:$0xff]
      %v1992 = vld [vmem:[%s1971 + $0xa0] sm:$0xff]
      %v1993 = vld [vmem:[%s1971 + $0xa8] sm:$0xff]
      %v1994 = vld [vmem:[%s1971 + $0xb0] sm:$0xff]
      %v1995 = vld [vmem:[%s1971 + $0xb8] sm:$0xff]
      %v1996 = vld [vmem:[%s1971 + $0xc0] sm:$0xff]
      %v1997 = vld [vmem:[%s1971 + $0xc8] sm:$0xff]
      %v1998 = vld [vmem:[%s1971 + $0xd0] sm:$0xff]
      %v1999 = vld [vmem:[%s1971 + $0xd8] sm:$0xff]
      %v2000 = vld [vmem:[%s1971 + $0xe0] sm:$0xff]
      %v2001 = vld [vmem:[%s1971 + $0xe8] sm:$0xff]
      %v2002 = vld [vmem:[%s1971 + $0xf0] sm:$0xff]
      %v2003 = vld [vmem:[%s1971 + $0xf8] sm:$0xff]
      %v2005 = vshrl.u32 %v1969, 16
      %v2007 = vshll.u32 %v1969, 16
      %v2009 = vrot.slane %v2007, 1
      %v2010 = vor.u32 %v2005, %v2009
      %v2012 = vshrl.u32 %v1970, 16
      %v2014 = vshll.u32 %v1970, 16
      %v2016 = vrot.slane %v2014, 1
      %v2017 = vor.u32 %v2012, %v2016
      %v2052 = vunpack.c.l.b16 %v1972
      %v2053 = vunpack.c.h.b16 %v1972
      %v2054 = vunpack.c.l.b16 %v1973
      %v2055 = vunpack.c.h.b16 %v1973
      %v2056 = vunpack.c.l.b16 %v1974
      %v2057 = vunpack.c.h.b16 %v1974
      %v2058 = vunpack.c.l.b16 %v1975
      %v2059 = vunpack.c.h.b16 %v1975
      %v2060 = vunpack.c.l.b16 %v1976
      %v2061 = vunpack.c.h.b16 %v1976
      %v2062 = vunpack.c.l.b16 %v1977
      %v2063 = vunpack.c.h.b16 %v1977
      %v2064 = vunpack.c.l.b16 %v1978
      %v2065 = vunpack.c.h.b16 %v1978
      %v2066 = vunpack.c.l.b16 %v1979
      %v2067 = vunpack.c.h.b16 %v1979
      %v2068 = vunpack.c.l.b16 %v1980
      %v2069 = vunpack.c.h.b16 %v1980
      %v2070 = vunpack.c.l.b16 %v1981
      %v2071 = vunpack.c.h.b16 %v1981
      %v2072 = vunpack.c.l.b16 %v1982
      %v2073 = vunpack.c.h.b16 %v1982
      %v2074 = vunpack.c.l.b16 %v1983
      %v2075 = vunpack.c.h.b16 %v1983
      %v2076 = vunpack.c.l.b16 %v1984
      %v2077 = vunpack.c.h.b16 %v1984
      %v2078 = vunpack.c.l.b16 %v1985
      %v2079 = vunpack.c.h.b16 %v1985
      %v2080 = vunpack.c.l.b16 %v1986
      %v2081 = vunpack.c.h.b16 %v1986
      %v2082 = vunpack.c.l.b16 %v1987
      %v2083 = vunpack.c.h.b16 %v1987
      %v2084 = vunpack.c.l.b16 %v1988
      %v2085 = vunpack.c.h.b16 %v1988
      %v2086 = vunpack.c.l.b16 %v1989
      %v2087 = vunpack.c.h.b16 %v1989
      %v2088 = vunpack.c.l.b16 %v1990
      %v2089 = vunpack.c.h.b16 %v1990
      %v2090 = vunpack.c.l.b16 %v1991
      %v2091 = vunpack.c.h.b16 %v1991
      %v2092 = vunpack.c.l.b16 %v1992
      %v2093 = vunpack.c.h.b16 %v1992
      %v2094 = vunpack.c.l.b16 %v1993
      %v2095 = vunpack.c.h.b16 %v1993
      %v2096 = vunpack.c.l.b16 %v1994
      %v2097 = vunpack.c.h.b16 %v1994
      %v2098 = vunpack.c.l.b16 %v1995
      %v2099 = vunpack.c.h.b16 %v1995
      %v2100 = vunpack.c.l.b16 %v1996
      %v2101 = vunpack.c.h.b16 %v1996
      %v2102 = vunpack.c.l.b16 %v1997
      %v2103 = vunpack.c.h.b16 %v1997
      %v2104 = vunpack.c.l.b16 %v1998
      %v2105 = vunpack.c.h.b16 %v1998
      %v2106 = vunpack.c.l.b16 %v1999
      %v2107 = vunpack.c.h.b16 %v1999
      %v2108 = vunpack.c.l.b16 %v2000
      %v2109 = vunpack.c.h.b16 %v2000
      %v2110 = vunpack.c.l.b16 %v2001
      %v2111 = vunpack.c.h.b16 %v2001
      %v2112 = vunpack.c.l.b16 %v2002
      %v2113 = vunpack.c.h.b16 %v2002
      %v2114 = vunpack.c.l.b16 %v2003
      %v2115 = vunpack.c.h.b16 %v2003
      %v2116 = vpack.c.b16 %v2054, %v2052
      %v2117 = vpack.c.b16 %v2055, %v2053
      %v2118 = vpack.c.b16 %v2058, %v2056
      %v2119 = vpack.c.b16 %v2059, %v2057
      %v2120 = vpack.c.b16 %v2062, %v2060
      %v2121 = vpack.c.b16 %v2063, %v2061
      %v2122 = vpack.c.b16 %v2066, %v2064
      %v2123 = vpack.c.b16 %v2067, %v2065
      %v2124 = vpack.c.b16 %v2070, %v2068
      %v2125 = vpack.c.b16 %v2071, %v2069
      %v2126 = vpack.c.b16 %v2074, %v2072
      %v2127 = vpack.c.b16 %v2075, %v2073
      %v2128 = vpack.c.b16 %v2078, %v2076
      %v2129 = vpack.c.b16 %v2079, %v2077
      %v2130 = vpack.c.b16 %v2082, %v2080
      %v2131 = vpack.c.b16 %v2083, %v2081
      %v2132 = vpack.c.b16 %v2086, %v2084
      %v2133 = vpack.c.b16 %v2087, %v2085
      %v2134 = vpack.c.b16 %v2090, %v2088
      %v2135 = vpack.c.b16 %v2091, %v2089
      %v2136 = vpack.c.b16 %v2094, %v2092
      %v2137 = vpack.c.b16 %v2095, %v2093
      %v2138 = vpack.c.b16 %v2098, %v2096
      %v2139 = vpack.c.b16 %v2099, %v2097
      %v2140 = vpack.c.b16 %v2102, %v2100
      %v2141 = vpack.c.b16 %v2103, %v2101
      %v2142 = vpack.c.b16 %v2106, %v2104
      %v2143 = vpack.c.b16 %v2107, %v2105
      %v2144 = vpack.c.b16 %v2110, %v2108
      %v2145 = vpack.c.b16 %v2111, %v2109
      %v2146 = vpack.c.b16 %v2114, %v2112
      %v2147 = vpack.c.b16 %v2115, %v2113
      %2180 = vmatprep.subr.bf16.mxu0 %v2131
      %2181 = vmatpush1.bf16.msra.mxu0 %v2130
      %2182 = vmatprep.subr.bf16.mxu0 %v2129
      %2183 = vmatpush1.bf16.msra.mxu0 %v2128
      %2184 = vmatprep.subr.bf16.mxu0 %v2127
      %2185 = vmatpush1.bf16.msra.mxu0 %v2126
      %2186 = vmatprep.subr.bf16.mxu0 %v2125
      %2187 = vmatpush1.bf16.msra.mxu0 %v2124
      %2188 = vmatprep.subr.bf16.mxu0 %v2123
      %2189 = vmatpush1.bf16.msra.mxu0 %v2122
      %2190 = vmatprep.subr.bf16.mxu0 %v2121
      %2191 = vmatpush1.bf16.msra.mxu0 %v2120
      %2192 = vmatprep.subr.bf16.mxu0 %v2119
      %2193 = vmatpush1.bf16.msra.mxu0 %v2118
      %2194 = vmatprep.subr.bf16.mxu0 %v2117
      %2195 = vmatpush1.bf16.msra.mxu0 %v2116
      %2196 = vmatprep.subr.bf16.mxu0 %v2147
      %2197 = vmatpush2.bf16.msra.mxu0 %v2146
      %2198 = vmatprep.subr.bf16.mxu0 %v2145
      %2199 = vmatpush2.bf16.msra.mxu0 %v2144
      %2200 = vmatprep.subr.bf16.mxu0 %v2143
      %2201 = vmatpush2.bf16.msra.mxu0 %v2142
      %2202 = vmatprep.subr.bf16.mxu0 %v2141
      %2203 = vmatpush2.bf16.msra.mxu0 %v2140
      %2204 = vmatprep.subr.bf16.mxu0 %v2139
      %2205 = vmatpush2.bf16.msra.mxu0 %v2138
      %2206 = vmatprep.subr.bf16.mxu0 %v2137
      %2207 = vmatpush2.bf16.msra.mxu0 %v2136
      %2208 = vmatprep.subr.bf16.mxu0 %v2135
      %2209 = vmatpush2.bf16.msra.mxu0 %v2134
      %2210 = vmatprep.subr.bf16.mxu0 %v2133
      %2211 = vmatpush2.bf16.msra.mxu0 %v2132
      %2212 = vmatprep.mubr.bf16.mxu0 %v2017
      %2213 = vmatmul.mubr.bf16.gmra.mxu0 %v2010
      %v2214 = vpop.f32.mrf.mxu0
      %v2215 = vadd.f32 0.0, %v2214
      %v2216 = vpop.f32.mrf.mxu0
      %v2217 = vadd.f32 0.0, %v2216
      %v2218 = vpop.f32.mrf.mxu0
      %v2219 = vpop.f32.mrf.mxu0
      %2220 = vdwg.mxu0
      %v2221 = vadd.f32 %v1967, %v2215
      %v2222 = vadd.f32 %v1968, %v2217
      %v2223 = vld [vmem:[%s7] sm:$0x3]
      %v2225 = vlaneseq
      %v2226 = vshrl.u32 %v2225, 7
      %v2227 = vsub.s32 0, %v2226
      %v2228 = vrot.slane %v2223, %v2227
      %v2229 = vlaneseq
      %v2230 = vshrl.u32 %v2229, 7
      %v2231 = vsub.s32 1, %v2230
      %v2232 = vrot.slane %v2223, %v2231
      %v2235 = vadd.f32 %v2221, %v2228
      %v2236 = vadd.f32 %v2222, %v2232
      %vm2237 = vcmp.gt.f32.partialorder %v2235, 0.0
      %vm2238 = vcmp.gt.f32.partialorder %v2236, 0.0
      %v2239 = vmul.f32 %v2235, 0.01
      %v2240 = vmul.f32 %v2236, 0.01
      %v2241 = vsel %vm2237, %v2235, %v2239
      %v2242 = vsel %vm2238, %v2236, %v2240
      %vm2243 = vcmp.lt.s32.totalorder %v416, 4
      %vm2244 = vmand %vm2243, %vm442
      %v2245 = vsel %vm2244, 1.0, 0.0
      %vm2246 = vcmask 64512
      %v2247 = vsel %vm2246, %v436, 0
      %2249 = vmatprep.subr.mxu0 0.0
      %2250 = vmatpush1.msra.mxu0 0.0
      %2251 = vmatprep.subr.mxu0 0.0
      %2252 = vmatpush1.msra.mxu0 0.0
      %2253 = vmatprep.subr.mxu0 0.0
      %2254 = vmatpush1.msra.mxu0 0.0
      %2255 = vmatprep.subr.mxu0 0.0
      %2256 = vmatpush1.msra.mxu0 0.0
      %2257 = vmatprep.subr.mxu0 0.0
      %2258 = vmatpush1.msra.mxu0 0.0
      %2259 = vmatprep.subr.mxu0 0.0
      %2260 = vmatpush1.msra.mxu0 0.0
      %2261 = vmatprep.subr.mxu0 0.0
      %2262 = vmatpush1.msra.mxu0 0.0
      %2263 = vmatprep.subr.mxu0 0.0
      %2264 = vmatpush1.msra.mxu0 0.0
      %2265 = vmatprep.subr.mxu0 0.0
      %2266 = vmatpush1.msra.mxu0 0.0
      %2267 = vmatprep.subr.mxu0 0.0
      %2268 = vmatpush1.msra.mxu0 0.0
      %2269 = vmatprep.subr.mxu0 0.0
      %2270 = vmatpush1.msra.mxu0 0.0
      %2271 = vmatprep.subr.mxu0 0.0
      %2272 = vmatpush1.msra.mxu0 0.0
      %2273 = vmatprep.subr.mxu0 0.0
      %2274 = vmatpush1.msra.mxu0 0.0
      %2275 = vmatprep.subr.mxu0 0.0
      %2276 = vmatpush1.msra.mxu0 0.0
      %2277 = vmatprep.subr.mxu0 0.0
      %2278 = vmatpush1.msra.mxu0 0.0
      %2279 = vmatprep.subr.mxu0 %v2242
      %2280 = vmatpush1.msra.mxu0 %v2241
      %2281 = vmatprep.subr.mxu0 0.0
      %2282 = vmatpush2.msra.mxu0 0.0
      %2283 = vmatprep.subr.mxu0 0.0
      %2284 = vmatpush2.msra.mxu0 0.0
      %2285 = vmatprep.subr.mxu0 0.0
      %2286 = vmatpush2.msra.mxu0 0.0
      %2287 = vmatprep.subr.mxu0 0.0
      %2288 = vmatpush2.msra.mxu0 0.0
      %2289 = vmatprep.subr.mxu0 0.0
      %2290 = vmatpush2.msra.mxu0 0.0
      %2291 = vmatprep.subr.mxu0 0.0
      %2292 = vmatpush2.msra.mxu0 0.0
      %2293 = vmatprep.subr.mxu0 0.0
      %2294 = vmatpush2.msra.mxu0 0.0
      %2295 = vmatprep.subr.mxu0 0.0
      %2296 = vmatpush2.msra.mxu0 0.0
      %2297 = vmatprep.subr.mxu0 0.0
      %2298 = vmatpush2.msra.mxu0 0.0
      %2299 = vmatprep.subr.mxu0 0.0
      %2300 = vmatpush2.msra.mxu0 0.0
      %2301 = vmatprep.subr.mxu0 0.0
      %2302 = vmatpush2.msra.mxu0 0.0
      %2303 = vmatprep.subr.mxu0 0.0
      %2304 = vmatpush2.msra.mxu0 0.0
      %2305 = vmatprep.subr.mxu0 0.0
      %2306 = vmatpush2.msra.mxu0 0.0
      %2307 = vmatprep.subr.mxu0 0.0
      %2308 = vmatpush2.msra.mxu0 0.0
      %2309 = vmatprep.subr.mxu0 0.0
      %2310 = vmatpush2.msra.mxu0 0.0
      %2311 = vmatprep.subr.mxu0 0.0
      %2312 = vmatpush2.msra.mxu0 0.0
      %2313 = vmatprep.mubr.f32.mxu0 0.0
      %2314 = vmatmul.mubr.f32.gmra.mxu0 %v2247
      %v2315 = vpop.f32.mrf.mxu0
      %v2316 = vadd.f32 0.0, %v2315
      %v2317 = vpop.f32.mrf.mxu0
      %v2318 = vadd.f32 0.0, %v2317
      %2319 = vdwg.mxu0
      %v2321 = vsel %vm2246, %v2245, 0
      %2323 = vmatprep.subr.mxu0 0.0
      %2324 = vmatpush1.msra.mxu0 0.0
      %2325 = vmatprep.subr.mxu0 0.0
      %2326 = vmatpush1.msra.mxu0 0.0
      %2327 = vmatprep.subr.mxu0 0.0
      %2328 = vmatpush1.msra.mxu0 0.0
      %2329 = vmatprep.subr.mxu0 0.0
      %2330 = vmatpush1.msra.mxu0 0.0
      %2331 = vmatprep.subr.mxu0 0.0
      %2332 = vmatpush1.msra.mxu0 0.0
      %2333 = vmatprep.subr.mxu0 0.0
      %2334 = vmatpush1.msra.mxu0 0.0
      %2335 = vmatprep.subr.mxu0 0.0
      %2336 = vmatpush1.msra.mxu0 0.0
      %2337 = vmatprep.subr.mxu0 0.0
      %2338 = vmatpush1.msra.mxu0 0.0
      %2339 = vmatprep.subr.mxu0 0.0
      %2340 = vmatpush1.msra.mxu0 0.0
      %2341 = vmatprep.subr.mxu0 0.0
      %2342 = vmatpush1.msra.mxu0 0.0
      %2343 = vmatprep.subr.mxu0 0.0
      %2344 = vmatpush1.msra.mxu0 0.0
      %2345 = vmatprep.subr.mxu0 0.0
      %2346 = vmatpush1.msra.mxu0 0.0
      %2347 = vmatprep.subr.mxu0 0.0
      %2348 = vmatpush1.msra.mxu0 0.0
      %2349 = vmatprep.subr.mxu0 0.0
      %2350 = vmatpush1.msra.mxu0 0.0
      %2351 = vmatprep.subr.mxu0 0.0
      %2352 = vmatpush1.msra.mxu0 0.0
      %2353 = vmatprep.subr.mxu0 %v2242
      %2354 = vmatpush1.msra.mxu0 %v2241
      %2355 = vmatprep.subr.mxu0 0.0
      %2356 = vmatpush2.msra.mxu0 0.0
      %2357 = vmatprep.subr.mxu0 0.0
      %2358 = vmatpush2.msra.mxu0 0.0
      %2359 = vmatprep.subr.mxu0 0.0
      %2360 = vmatpush2.msra.mxu0 0.0
      %2361 = vmatprep.subr.mxu0 0.0
      %2362 = vmatpush2.msra.mxu0 0.0
      %2363 = vmatprep.subr.mxu0 0.0
      %2364 = vmatpush2.msra.mxu0 0.0
      %2365 = vmatprep.subr.mxu0 0.0
      %2366 = vmatpush2.msra.mxu0 0.0
      %2367 = vmatprep.subr.mxu0 0.0
      %2368 = vmatpush2.msra.mxu0 0.0
      %2369 = vmatprep.subr.mxu0 0.0
      %2370 = vmatpush2.msra.mxu0 0.0
      %2371 = vmatprep.subr.mxu0 0.0
      %2372 = vmatpush2.msra.mxu0 0.0
      %2373 = vmatprep.subr.mxu0 0.0
      %2374 = vmatpush2.msra.mxu0 0.0
      %2375 = vmatprep.subr.mxu0 0.0
      %2376 = vmatpush2.msra.mxu0 0.0
      %2377 = vmatprep.subr.mxu0 0.0
      %2378 = vmatpush2.msra.mxu0 0.0
      %2379 = vmatprep.subr.mxu0 0.0
      %2380 = vmatpush2.msra.mxu0 0.0
      %2381 = vmatprep.subr.mxu0 0.0
      %2382 = vmatpush2.msra.mxu0 0.0
      %2383 = vmatprep.subr.mxu0 0.0
      %2384 = vmatpush2.msra.mxu0 0.0
      %2385 = vmatprep.subr.mxu0 0.0
      %2386 = vmatpush2.msra.mxu0 0.0
      %2387 = vmatprep.mubr.f32.mxu0 0.0
      %2388 = vmatmul.mubr.f32.gmra.mxu0 %v2321
      %v2389 = vpop.f32.mrf.mxu0
      %v2390 = vadd.f32 0.0, %v2389
      %v2391 = vpop.f32.mrf.mxu0
      %v2392 = vadd.f32 0.0, %v2391
      %2393 = vdwg.mxu0
      %v2394 = vpack.c.bf16 %v2316, %v2316
      %v2395 = vpack.c.bf16 %v2318, %v2318
      %v2396 = vld [vmem:[%s3] sm:$0xff]
      %v2397 = vld [vmem:[%s3 + $0x8] sm:$0xff]
      %v2398 = vld [vmem:[%s3 + $0x10] sm:$0xff]
      %v2399 = vld [vmem:[%s3 + $0x18] sm:$0xff]
      %v2400 = vld [vmem:[%s3 + $0x20] sm:$0xff]
      %v2401 = vld [vmem:[%s3 + $0x28] sm:$0xff]
      %v2402 = vld [vmem:[%s3 + $0x30] sm:$0xff]
      %v2403 = vld [vmem:[%s3 + $0x38] sm:$0xff]
      %v2404 = vld [vmem:[%s3 + $0x40] sm:$0xff]
      %v2405 = vld [vmem:[%s3 + $0x48] sm:$0xff]
      %v2406 = vld [vmem:[%s3 + $0x50] sm:$0xff]
      %v2407 = vld [vmem:[%s3 + $0x58] sm:$0xff]
      %v2408 = vld [vmem:[%s3 + $0x60] sm:$0xff]
      %v2409 = vld [vmem:[%s3 + $0x68] sm:$0xff]
      %v2410 = vld [vmem:[%s3 + $0x70] sm:$0xff]
      %v2411 = vld [vmem:[%s3 + $0x78] sm:$0xff]
      %v2412 = vld [vmem:[%s3 + $0x80] sm:$0xff]
      %v2413 = vld [vmem:[%s3 + $0x88] sm:$0xff]
      %v2414 = vld [vmem:[%s3 + $0x90] sm:$0xff]
      %v2415 = vld [vmem:[%s3 + $0x98] sm:$0xff]
      %v2416 = vld [vmem:[%s3 + $0xa0] sm:$0xff]
      %v2417 = vld [vmem:[%s3 + $0xa8] sm:$0xff]
      %v2418 = vld [vmem:[%s3 + $0xb0] sm:$0xff]
      %v2419 = vld [vmem:[%s3 + $0xb8] sm:$0xff]
      %v2420 = vld [vmem:[%s3 + $0xc0] sm:$0xff]
      %v2421 = vld [vmem:[%s3 + $0xc8] sm:$0xff]
      %v2422 = vld [vmem:[%s3 + $0xd0] sm:$0xff]
      %v2423 = vld [vmem:[%s3 + $0xd8] sm:$0xff]
      %v2424 = vld [vmem:[%s3 + $0xe0] sm:$0xff]
      %v2425 = vld [vmem:[%s3 + $0xe8] sm:$0xff]
      %v2426 = vld [vmem:[%s3 + $0xf0] sm:$0xff]
      %v2427 = vld [vmem:[%s3 + $0xf8] sm:$0xff]
      %v2428 = vpack.c.bf16 %v2390, %v2390
      %v2429 = vpack.c.bf16 %v2392, %v2392
      %s2430 = scalar_lea.vmem %s3, 256
      %v2431 = vld [vmem:[%s2430] sm:$0xff]
      %v2432 = vld [vmem:[%s2430 + $0x8] sm:$0xff]
      %v2433 = vld [vmem:[%s2430 + $0x10] sm:$0xff]
      %v2434 = vld [vmem:[%s2430 + $0x18] sm:$0xff]
      %v2435 = vld [vmem:[%s2430 + $0x20] sm:$0xff]
      %v2436 = vld [vmem:[%s2430 + $0x28] sm:$0xff]
      %v2437 = vld [vmem:[%s2430 + $0x30] sm:$0xff]
      %v2438 = vld [vmem:[%s2430 + $0x38] sm:$0xff]
      %v2439 = vld [vmem:[%s2430 + $0x40] sm:$0xff]
      %v2440 = vld [vmem:[%s2430 + $0x48] sm:$0xff]
      %v2441 = vld [vmem:[%s2430 + $0x50] sm:$0xff]
      %v2442 = vld [vmem:[%s2430 + $0x58] sm:$0xff]
      %v2443 = vld [vmem:[%s2430 + $0x60] sm:$0xff]
      %v2444 = vld [vmem:[%s2430 + $0x68] sm:$0xff]
      %v2445 = vld [vmem:[%s2430 + $0x70] sm:$0xff]
      %v2446 = vld [vmem:[%s2430 + $0x78] sm:$0xff]
      %v2447 = vld [vmem:[%s2430 + $0x80] sm:$0xff]
      %v2448 = vld [vmem:[%s2430 + $0x88] sm:$0xff]
      %v2449 = vld [vmem:[%s2430 + $0x90] sm:$0xff]
      %v2450 = vld [vmem:[%s2430 + $0x98] sm:$0xff]
      %v2451 = vld [vmem:[%s2430 + $0xa0] sm:$0xff]
      %v2452 = vld [vmem:[%s2430 + $0xa8] sm:$0xff]
      %v2453 = vld [vmem:[%s2430 + $0xb0] sm:$0xff]
      %v2454 = vld [vmem:[%s2430 + $0xb8] sm:$0xff]
      %v2455 = vld [vmem:[%s2430 + $0xc0] sm:$0xff]
      %v2456 = vld [vmem:[%s2430 + $0xc8] sm:$0xff]
      %v2457 = vld [vmem:[%s2430 + $0xd0] sm:$0xff]
      %v2458 = vld [vmem:[%s2430 + $0xd8] sm:$0xff]
      %v2459 = vld [vmem:[%s2430 + $0xe0] sm:$0xff]
      %v2460 = vld [vmem:[%s2430 + $0xe8] sm:$0xff]
      %v2461 = vld [vmem:[%s2430 + $0xf0] sm:$0xff]
      %v2462 = vld [vmem:[%s2430 + $0xf8] sm:$0xff]
      %v2495 = vunpack.c.l.b16 %v2431
      %v2496 = vunpack.c.h.b16 %v2431
      %v2497 = vunpack.c.l.b16 %v2432
      %v2498 = vunpack.c.h.b16 %v2432
      %v2499 = vunpack.c.l.b16 %v2433
      %v2500 = vunpack.c.h.b16 %v2433
      %v2501 = vunpack.c.l.b16 %v2434
      %v2502 = vunpack.c.h.b16 %v2434
      %v2503 = vunpack.c.l.b16 %v2435
      %v2504 = vunpack.c.h.b16 %v2435
      %v2505 = vunpack.c.l.b16 %v2436
      %v2506 = vunpack.c.h.b16 %v2436
      %v2507 = vunpack.c.l.b16 %v2437
      %v2508 = vunpack.c.h.b16 %v2437
      %v2509 = vunpack.c.l.b16 %v2438
      %v2510 = vunpack.c.h.b16 %v2438
      %v2511 = vunpack.c.l.b16 %v2439
      %v2512 = vunpack.c.h.b16 %v2439
      %v2513 = vunpack.c.l.b16 %v2440
      %v2514 = vunpack.c.h.b16 %v2440
      %v2515 = vunpack.c.l.b16 %v2441
      %v2516 = vunpack.c.h.b16 %v2441
      %v2517 = vunpack.c.l.b16 %v2442
      %v2518 = vunpack.c.h.b16 %v2442
      %v2519 = vunpack.c.l.b16 %v2443
      %v2520 = vunpack.c.h.b16 %v2443
      %v2521 = vunpack.c.l.b16 %v2444
      %v2522 = vunpack.c.h.b16 %v2444
      %v2523 = vunpack.c.l.b16 %v2445
      %v2524 = vunpack.c.h.b16 %v2445
      %v2525 = vunpack.c.l.b16 %v2446
      %v2526 = vunpack.c.h.b16 %v2446
      %v2527 = vunpack.c.l.b16 %v2447
      %v2528 = vunpack.c.h.b16 %v2447
      %v2529 = vunpack.c.l.b16 %v2448
      %v2530 = vunpack.c.h.b16 %v2448
      %v2531 = vunpack.c.l.b16 %v2449
      %v2532 = vunpack.c.h.b16 %v2449
      %v2533 = vunpack.c.l.b16 %v2450
      %v2534 = vunpack.c.h.b16 %v2450
      %v2535 = vunpack.c.l.b16 %v2451
      %v2536 = vunpack.c.h.b16 %v2451
      %v2537 = vunpack.c.l.b16 %v2452
      %v2538 = vunpack.c.h.b16 %v2452
      %v2539 = vunpack.c.l.b16 %v2453
      %v2540 = vunpack.c.h.b16 %v2453
      %v2541 = vunpack.c.l.b16 %v2454
      %v2542 = vunpack.c.h.b16 %v2454
      %v2543 = vunpack.c.l.b16 %v2455
      %v2544 = vunpack.c.h.b16 %v2455
      %v2545 = vunpack.c.l.b16 %v2456
      %v2546 = vunpack.c.h.b16 %v2456
      %v2547 = vunpack.c.l.b16 %v2457
      %v2548 = vunpack.c.h.b16 %v2457
      %v2549 = vunpack.c.l.b16 %v2458
      %v2550 = vunpack.c.h.b16 %v2458
      %v2551 = vunpack.c.l.b16 %v2459
      %v2552 = vunpack.c.h.b16 %v2459
      %v2553 = vunpack.c.l.b16 %v2460
      %v2554 = vunpack.c.h.b16 %v2460
      %v2555 = vunpack.c.l.b16 %v2461
      %v2556 = vunpack.c.h.b16 %v2461
      %v2557 = vunpack.c.l.b16 %v2462
      %v2558 = vunpack.c.h.b16 %v2462
      %v2559 = vpack.c.b16 %v2497, %v2495
      %v2560 = vpack.c.b16 %v2498, %v2496
      %v2561 = vpack.c.b16 %v2501, %v2499
      %v2562 = vpack.c.b16 %v2502, %v2500
      %v2563 = vpack.c.b16 %v2505, %v2503
      %v2564 = vpack.c.b16 %v2506, %v2504
      %v2565 = vpack.c.b16 %v2509, %v2507
      %v2566 = vpack.c.b16 %v2510, %v2508
      %v2567 = vpack.c.b16 %v2513, %v2511
      %v2568 = vpack.c.b16 %v2514, %v2512
      %v2569 = vpack.c.b16 %v2517, %v2515
      %v2570 = vpack.c.b16 %v2518, %v2516
      %v2571 = vpack.c.b16 %v2521, %v2519
      %v2572 = vpack.c.b16 %v2522, %v2520
      %v2573 = vpack.c.b16 %v2525, %v2523
      %v2574 = vpack.c.b16 %v2526, %v2524
      %v2575 = vpack.c.b16 %v2529, %v2527
      %v2576 = vpack.c.b16 %v2530, %v2528
      %v2577 = vpack.c.b16 %v2533, %v2531
      %v2578 = vpack.c.b16 %v2534, %v2532
      %v2579 = vpack.c.b16 %v2537, %v2535
      %v2580 = vpack.c.b16 %v2538, %v2536
      %v2581 = vpack.c.b16 %v2541, %v2539
      %v2582 = vpack.c.b16 %v2542, %v2540
      %v2583 = vpack.c.b16 %v2545, %v2543
      %v2584 = vpack.c.b16 %v2546, %v2544
      %v2585 = vpack.c.b16 %v2549, %v2547
      %v2586 = vpack.c.b16 %v2550, %v2548
      %v2587 = vpack.c.b16 %v2553, %v2551
      %v2588 = vpack.c.b16 %v2554, %v2552
      %v2589 = vpack.c.b16 %v2557, %v2555
      %v2590 = vpack.c.b16 %v2558, %v2556
      %2623 = vmatprep.subr.bf16.mxu0 %v2574
      %2624 = vmatpush1.bf16.msra.mxu0 %v2573
      %2625 = vmatprep.subr.bf16.mxu0 %v2572
      %2626 = vmatpush1.bf16.msra.mxu0 %v2571
      %2627 = vmatprep.subr.bf16.mxu0 %v2570
      %2628 = vmatpush1.bf16.msra.mxu0 %v2569
      %2629 = vmatprep.subr.bf16.mxu0 %v2568
      %2630 = vmatpush1.bf16.msra.mxu0 %v2567
      %2631 = vmatprep.subr.bf16.mxu0 %v2566
      %2632 = vmatpush1.bf16.msra.mxu0 %v2565
      %2633 = vmatprep.subr.bf16.mxu0 %v2564
      %2634 = vmatpush1.bf16.msra.mxu0 %v2563
      %2635 = vmatprep.subr.bf16.mxu0 %v2562
      %2636 = vmatpush1.bf16.msra.mxu0 %v2561
      %2637 = vmatprep.subr.bf16.mxu0 %v2560
      %2638 = vmatpush1.bf16.msra.mxu0 %v2559
      %2639 = vmatprep.subr.bf16.mxu0 %v2590
      %2640 = vmatpush2.bf16.msra.mxu0 %v2589
      %2641 = vmatprep.subr.bf16.mxu0 %v2588
      %2642 = vmatpush2.bf16.msra.mxu0 %v2587
      %2643 = vmatprep.subr.bf16.mxu0 %v2586
      %2644 = vmatpush2.bf16.msra.mxu0 %v2585
      %2645 = vmatprep.subr.bf16.mxu0 %v2584
      %2646 = vmatpush2.bf16.msra.mxu0 %v2583
      %2647 = vmatprep.subr.bf16.mxu0 %v2582
      %2648 = vmatpush2.bf16.msra.mxu0 %v2581
      %2649 = vmatprep.subr.bf16.mxu0 %v2580
      %2650 = vmatpush2.bf16.msra.mxu0 %v2579
      %2651 = vmatprep.subr.bf16.mxu0 %v2578
      %2652 = vmatpush2.bf16.msra.mxu0 %v2577
      %2653 = vmatprep.subr.bf16.mxu0 %v2576
      %2654 = vmatpush2.bf16.msra.mxu0 %v2575
      %2655 = vmatprep.mubr.bf16.mxu0 %v2429
      %2656 = vmatmul.mubr.bf16.gmra.mxu0 %v2428
      %v2657 = vpop.f32.mrf.mxu0
      %v2658 = vadd.f32 0.0, %v2657
      %v2659 = vpop.f32.mrf.mxu0
      %v2660 = vadd.f32 0.0, %v2659
      %v2661 = vpop.f32.mrf.mxu0
      %v2662 = vpop.f32.mrf.mxu0
      %2663 = vdwg.mxu0
      %v2696 = vunpack.c.l.b16 %v2396
      %v2697 = vunpack.c.h.b16 %v2396
      %v2698 = vunpack.c.l.b16 %v2397
      %v2699 = vunpack.c.h.b16 %v2397
      %v2700 = vunpack.c.l.b16 %v2398
      %v2701 = vunpack.c.h.b16 %v2398
      %v2702 = vunpack.c.l.b16 %v2399
      %v2703 = vunpack.c.h.b16 %v2399
      %v2704 = vunpack.c.l.b16 %v2400
      %v2705 = vunpack.c.h.b16 %v2400
      %v2706 = vunpack.c.l.b16 %v2401
      %v2707 = vunpack.c.h.b16 %v2401
      %v2708 = vunpack.c.l.b16 %v2402
      %v2709 = vunpack.c.h.b16 %v2402
      %v2710 = vunpack.c.l.b16 %v2403
      %v2711 = vunpack.c.h.b16 %v2403
      %v2712 = vunpack.c.l.b16 %v2404
      %v2713 = vunpack.c.h.b16 %v2404
      %v2714 = vunpack.c.l.b16 %v2405
      %v2715 = vunpack.c.h.b16 %v2405
      %v2716 = vunpack.c.l.b16 %v2406
      %v2717 = vunpack.c.h.b16 %v2406
      %v2718 = vunpack.c.l.b16 %v2407
      %v2719 = vunpack.c.h.b16 %v2407
      %v2720 = vunpack.c.l.b16 %v2408
      %v2721 = vunpack.c.h.b16 %v2408
      %v2722 = vunpack.c.l.b16 %v2409
      %v2723 = vunpack.c.h.b16 %v2409
      %v2724 = vunpack.c.l.b16 %v2410
      %v2725 = vunpack.c.h.b16 %v2410
      %v2726 = vunpack.c.l.b16 %v2411
      %v2727 = vunpack.c.h.b16 %v2411
      %v2728 = vunpack.c.l.b16 %v2412
      %v2729 = vunpack.c.h.b16 %v2412
      %v2730 = vunpack.c.l.b16 %v2413
      %v2731 = vunpack.c.h.b16 %v2413
      %v2732 = vunpack.c.l.b16 %v2414
      %v2733 = vunpack.c.h.b16 %v2414
      %v2734 = vunpack.c.l.b16 %v2415
      %v2735 = vunpack.c.h.b16 %v2415
      %v2736 = vunpack.c.l.b16 %v2416
      %v2737 = vunpack.c.h.b16 %v2416
      %v2738 = vunpack.c.l.b16 %v2417
      %v2739 = vunpack.c.h.b16 %v2417
      %v2740 = vunpack.c.l.b16 %v2418
      %v2741 = vunpack.c.h.b16 %v2418
      %v2742 = vunpack.c.l.b16 %v2419
      %v2743 = vunpack.c.h.b16 %v2419
      %v2744 = vunpack.c.l.b16 %v2420
      %v2745 = vunpack.c.h.b16 %v2420
      %v2746 = vunpack.c.l.b16 %v2421
      %v2747 = vunpack.c.h.b16 %v2421
      %v2748 = vunpack.c.l.b16 %v2422
      %v2749 = vunpack.c.h.b16 %v2422
      %v2750 = vunpack.c.l.b16 %v2423
      %v2751 = vunpack.c.h.b16 %v2423
      %v2752 = vunpack.c.l.b16 %v2424
      %v2753 = vunpack.c.h.b16 %v2424
      %v2754 = vunpack.c.l.b16 %v2425
      %v2755 = vunpack.c.h.b16 %v2425
      %v2756 = vunpack.c.l.b16 %v2426
      %v2757 = vunpack.c.h.b16 %v2426
      %v2758 = vunpack.c.l.b16 %v2427
      %v2759 = vunpack.c.h.b16 %v2427
      %v2760 = vpack.c.b16 %v2698, %v2696
      %v2761 = vpack.c.b16 %v2699, %v2697
      %v2762 = vpack.c.b16 %v2702, %v2700
      %v2763 = vpack.c.b16 %v2703, %v2701
      %v2764 = vpack.c.b16 %v2706, %v2704
      %v2765 = vpack.c.b16 %v2707, %v2705
      %v2766 = vpack.c.b16 %v2710, %v2708
      %v2767 = vpack.c.b16 %v2711, %v2709
      %v2768 = vpack.c.b16 %v2714, %v2712
      %v2769 = vpack.c.b16 %v2715, %v2713
      %v2770 = vpack.c.b16 %v2718, %v2716
      %v2771 = vpack.c.b16 %v2719, %v2717
      %v2772 = vpack.c.b16 %v2722, %v2720
      %v2773 = vpack.c.b16 %v2723, %v2721
      %v2774 = vpack.c.b16 %v2726, %v2724
      %v2775 = vpack.c.b16 %v2727, %v2725
      %v2776 = vpack.c.b16 %v2730, %v2728
      %v2777 = vpack.c.b16 %v2731, %v2729
      %v2778 = vpack.c.b16 %v2734, %v2732
      %v2779 = vpack.c.b16 %v2735, %v2733
      %v2780 = vpack.c.b16 %v2738, %v2736
      %v2781 = vpack.c.b16 %v2739, %v2737
      %v2782 = vpack.c.b16 %v2742, %v2740
      %v2783 = vpack.c.b16 %v2743, %v2741
      %v2784 = vpack.c.b16 %v2746, %v2744
      %v2785 = vpack.c.b16 %v2747, %v2745
      %v2786 = vpack.c.b16 %v2750, %v2748
      %v2787 = vpack.c.b16 %v2751, %v2749
      %v2788 = vpack.c.b16 %v2754, %v2752
      %v2789 = vpack.c.b16 %v2755, %v2753
      %v2790 = vpack.c.b16 %v2758, %v2756
      %v2791 = vpack.c.b16 %v2759, %v2757
      %2824 = vmatprep.subr.bf16.mxu0 %v2775
      %2825 = vmatpush1.bf16.msra.mxu0 %v2774
      %2826 = vmatprep.subr.bf16.mxu0 %v2773
      %2827 = vmatpush1.bf16.msra.mxu0 %v2772
      %2828 = vmatprep.subr.bf16.mxu0 %v2771
      %2829 = vmatpush1.bf16.msra.mxu0 %v2770
      %2830 = vmatprep.subr.bf16.mxu0 %v2769
      %2831 = vmatpush1.bf16.msra.mxu0 %v2768
      %2832 = vmatprep.subr.bf16.mxu0 %v2767
      %2833 = vmatpush1.bf16.msra.mxu0 %v2766
      %2834 = vmatprep.subr.bf16.mxu0 %v2765
      %2835 = vmatpush1.bf16.msra.mxu0 %v2764
      %2836 = vmatprep.subr.bf16.mxu0 %v2763
      %2837 = vmatpush1.bf16.msra.mxu0 %v2762
      %2838 = vmatprep.subr.bf16.mxu0 %v2761
      %2839 = vmatpush1.bf16.msra.mxu0 %v2760
      %2840 = vmatprep.subr.bf16.mxu0 %v2791
      %2841 = vmatpush2.bf16.msra.mxu0 %v2790
      %2842 = vmatprep.subr.bf16.mxu0 %v2789
      %2843 = vmatpush2.bf16.msra.mxu0 %v2788
      %2844 = vmatprep.subr.bf16.mxu0 %v2787
      %2845 = vmatpush2.bf16.msra.mxu0 %v2786
      %2846 = vmatprep.subr.bf16.mxu0 %v2785
      %2847 = vmatpush2.bf16.msra.mxu0 %v2784
      %2848 = vmatprep.subr.bf16.mxu0 %v2783
      %2849 = vmatpush2.bf16.msra.mxu0 %v2782
      %2850 = vmatprep.subr.bf16.mxu0 %v2781
      %2851 = vmatpush2.bf16.msra.mxu0 %v2780
      %2852 = vmatprep.subr.bf16.mxu0 %v2779
      %2853 = vmatpush2.bf16.msra.mxu0 %v2778
      %2854 = vmatprep.subr.bf16.mxu0 %v2777
      %2855 = vmatpush2.bf16.msra.mxu0 %v2776
      %2856 = vmatprep.mubr.bf16.mxu0 %v2395
      %2857 = vmatmul.mubr.bf16.gmra.mxu0 %v2394
      %v2858 = vpop.f32.mrf.mxu0
      %v2859 = vadd.f32 %v2658, %v2858
      %v2860 = vpop.f32.mrf.mxu0
      %v2861 = vadd.f32 %v2660, %v2860
      %v2862 = vpop.f32.mrf.mxu0
      %v2863 = vpop.f32.mrf.mxu0
      %2864 = vdwg.mxu0
      %s2865 = scalar_lea.vmem %s3, 512
      %v2866 = vld [vmem:[%s2865] sm:$0xff]
      %v2867 = vld [vmem:[%s2865 + $0x8] sm:$0xff]
      %v2868 = vld [vmem:[%s2865 + $0x10] sm:$0xff]
      %v2869 = vld [vmem:[%s2865 + $0x18] sm:$0xff]
      %v2870 = vld [vmem:[%s2865 + $0x20] sm:$0xff]
      %v2871 = vld [vmem:[%s2865 + $0x28] sm:$0xff]
      %v2872 = vld [vmem:[%s2865 + $0x30] sm:$0xff]
      %v2873 = vld [vmem:[%s2865 + $0x38] sm:$0xff]
      %v2874 = vld [vmem:[%s2865 + $0x40] sm:$0xff]
      %v2875 = vld [vmem:[%s2865 + $0x48] sm:$0xff]
      %v2876 = vld [vmem:[%s2865 + $0x50] sm:$0xff]
      %v2877 = vld [vmem:[%s2865 + $0x58] sm:$0xff]
      %v2878 = vld [vmem:[%s2865 + $0x60] sm:$0xff]
      %v2879 = vld [vmem:[%s2865 + $0x68] sm:$0xff]
      %v2880 = vld [vmem:[%s2865 + $0x70] sm:$0xff]
      %v2881 = vld [vmem:[%s2865 + $0x78] sm:$0xff]
      %v2882 = vld [vmem:[%s2865 + $0x80] sm:$0xff]
      %v2883 = vld [vmem:[%s2865 + $0x88] sm:$0xff]
      %v2884 = vld [vmem:[%s2865 + $0x90] sm:$0xff]
      %v2885 = vld [vmem:[%s2865 + $0x98] sm:$0xff]
      %v2886 = vld [vmem:[%s2865 + $0xa0] sm:$0xff]
      %v2887 = vld [vmem:[%s2865 + $0xa8] sm:$0xff]
      %v2888 = vld [vmem:[%s2865 + $0xb0] sm:$0xff]
      %v2889 = vld [vmem:[%s2865 + $0xb8] sm:$0xff]
      %v2890 = vld [vmem:[%s2865 + $0xc0] sm:$0xff]
      %v2891 = vld [vmem:[%s2865 + $0xc8] sm:$0xff]
      %v2892 = vld [vmem:[%s2865 + $0xd0] sm:$0xff]
      %v2893 = vld [vmem:[%s2865 + $0xd8] sm:$0xff]
      %v2894 = vld [vmem:[%s2865 + $0xe0] sm:$0xff]
      %v2895 = vld [vmem:[%s2865 + $0xe8] sm:$0xff]
      %v2896 = vld [vmem:[%s2865 + $0xf0] sm:$0xff]
      %v2897 = vld [vmem:[%s2865 + $0xf8] sm:$0xff]
      %v2899 = vshrl.u32 %v2394, 16
      %v2901 = vshll.u32 %v2394, 16
      %v2903 = vrot.slane %v2901, 1
      %v2904 = vor.u32 %v2899, %v2903
      %v2906 = vshrl.u32 %v2395, 16
      %v2908 = vshll.u32 %v2395, 16
      %v2910 = vrot.slane %v2908, 1
      %v2911 = vor.u32 %v2906, %v2910
      %v2946 = vunpack.c.l.b16 %v2866
      %v2947 = vunpack.c.h.b16 %v2866
      %v2948 = vunpack.c.l.b16 %v2867
      %v2949 = vunpack.c.h.b16 %v2867
      %v2950 = vunpack.c.l.b16 %v2868
      %v2951 = vunpack.c.h.b16 %v2868
      %v2952 = vunpack.c.l.b16 %v2869
      %v2953 = vunpack.c.h.b16 %v2869
      %v2954 = vunpack.c.l.b16 %v2870
      %v2955 = vunpack.c.h.b16 %v2870
      %v2956 = vunpack.c.l.b16 %v2871
      %v2957 = vunpack.c.h.b16 %v2871
      %v2958 = vunpack.c.l.b16 %v2872
      %v2959 = vunpack.c.h.b16 %v2872
      %v2960 = vunpack.c.l.b16 %v2873
      %v2961 = vunpack.c.h.b16 %v2873
      %v2962 = vunpack.c.l.b16 %v2874
      %v2963 = vunpack.c.h.b16 %v2874
      %v2964 = vunpack.c.l.b16 %v2875
      %v2965 = vunpack.c.h.b16 %v2875
      %v2966 = vunpack.c.l.b16 %v2876
      %v2967 = vunpack.c.h.b16 %v2876
      %v2968 = vunpack.c.l.b16 %v2877
      %v2969 = vunpack.c.h.b16 %v2877
      %v2970 = vunpack.c.l.b16 %v2878
      %v2971 = vunpack.c.h.b16 %v2878
      %v2972 = vunpack.c.l.b16 %v2879
      %v2973 = vunpack.c.h.b16 %v2879
      %v2974 = vunpack.c.l.b16 %v2880
      %v2975 = vunpack.c.h.b16 %v2880
      %v2976 = vunpack.c.l.b16 %v2881
      %v2977 = vunpack.c.h.b16 %v2881
      %v2978 = vunpack.c.l.b16 %v2882
      %v2979 = vunpack.c.h.b16 %v2882
      %v2980 = vunpack.c.l.b16 %v2883
      %v2981 = vunpack.c.h.b16 %v2883
      %v2982 = vunpack.c.l.b16 %v2884
      %v2983 = vunpack.c.h.b16 %v2884
      %v2984 = vunpack.c.l.b16 %v2885
      %v2985 = vunpack.c.h.b16 %v2885
      %v2986 = vunpack.c.l.b16 %v2886
      %v2987 = vunpack.c.h.b16 %v2886
      %v2988 = vunpack.c.l.b16 %v2887
      %v2989 = vunpack.c.h.b16 %v2887
      %v2990 = vunpack.c.l.b16 %v2888
      %v2991 = vunpack.c.h.b16 %v2888
      %v2992 = vunpack.c.l.b16 %v2889
      %v2993 = vunpack.c.h.b16 %v2889
      %v2994 = vunpack.c.l.b16 %v2890
      %v2995 = vunpack.c.h.b16 %v2890
      %v2996 = vunpack.c.l.b16 %v2891
      %v2997 = vunpack.c.h.b16 %v2891
      %v2998 = vunpack.c.l.b16 %v2892
      %v2999 = vunpack.c.h.b16 %v2892
      %v3000 = vunpack.c.l.b16 %v2893
      %v3001 = vunpack.c.h.b16 %v2893
      %v3002 = vunpack.c.l.b16 %v2894
      %v3003 = vunpack.c.h.b16 %v2894
      %v3004 = vunpack.c.l.b16 %v2895
      %v3005 = vunpack.c.h.b16 %v2895
      %v3006 = vunpack.c.l.b16 %v2896
      %v3007 = vunpack.c.h.b16 %v2896
      %v3008 = vunpack.c.l.b16 %v2897
      %v3009 = vunpack.c.h.b16 %v2897
      %v3010 = vpack.c.b16 %v2948, %v2946
      %v3011 = vpack.c.b16 %v2949, %v2947
      %v3012 = vpack.c.b16 %v2952, %v2950
      %v3013 = vpack.c.b16 %v2953, %v2951
      %v3014 = vpack.c.b16 %v2956, %v2954
      %v3015 = vpack.c.b16 %v2957, %v2955
      %v3016 = vpack.c.b16 %v2960, %v2958
      %v3017 = vpack.c.b16 %v2961, %v2959
      %v3018 = vpack.c.b16 %v2964, %v2962
      %v3019 = vpack.c.b16 %v2965, %v2963
      %v3020 = vpack.c.b16 %v2968, %v2966
      %v3021 = vpack.c.b16 %v2969, %v2967
      %v3022 = vpack.c.b16 %v2972, %v2970
      %v3023 = vpack.c.b16 %v2973, %v2971
      %v3024 = vpack.c.b16 %v2976, %v2974
      %v3025 = vpack.c.b16 %v2977, %v2975
      %v3026 = vpack.c.b16 %v2980, %v2978
      %v3027 = vpack.c.b16 %v2981, %v2979
      %v3028 = vpack.c.b16 %v2984, %v2982
      %v3029 = vpack.c.b16 %v2985, %v2983
      %v3030 = vpack.c.b16 %v2988, %v2986
      %v3031 = vpack.c.b16 %v2989, %v2987
      %v3032 = vpack.c.b16 %v2992, %v2990
      %v3033 = vpack.c.b16 %v2993, %v2991
      %v3034 = vpack.c.b16 %v2996, %v2994
      %v3035 = vpack.c.b16 %v2997, %v2995
      %v3036 = vpack.c.b16 %v3000, %v2998
      %v3037 = vpack.c.b16 %v3001, %v2999
      %v3038 = vpack.c.b16 %v3004, %v3002
      %v3039 = vpack.c.b16 %v3005, %v3003
      %v3040 = vpack.c.b16 %v3008, %v3006
      %v3041 = vpack.c.b16 %v3009, %v3007
      %3074 = vmatprep.subr.bf16.mxu0 %v3025
      %3075 = vmatpush1.bf16.msra.mxu0 %v3024
      %3076 = vmatprep.subr.bf16.mxu0 %v3023
      %3077 = vmatpush1.bf16.msra.mxu0 %v3022
      %3078 = vmatprep.subr.bf16.mxu0 %v3021
      %3079 = vmatpush1.bf16.msra.mxu0 %v3020
      %3080 = vmatprep.subr.bf16.mxu0 %v3019
      %3081 = vmatpush1.bf16.msra.mxu0 %v3018
      %3082 = vmatprep.subr.bf16.mxu0 %v3017
      %3083 = vmatpush1.bf16.msra.mxu0 %v3016
      %3084 = vmatprep.subr.bf16.mxu0 %v3015
      %3085 = vmatpush1.bf16.msra.mxu0 %v3014
      %3086 = vmatprep.subr.bf16.mxu0 %v3013
      %3087 = vmatpush1.bf16.msra.mxu0 %v3012
      %3088 = vmatprep.subr.bf16.mxu0 %v3011
      %3089 = vmatpush1.bf16.msra.mxu0 %v3010
      %3090 = vmatprep.subr.bf16.mxu0 %v3041
      %3091 = vmatpush2.bf16.msra.mxu0 %v3040
      %3092 = vmatprep.subr.bf16.mxu0 %v3039
      %3093 = vmatpush2.bf16.msra.mxu0 %v3038
      %3094 = vmatprep.subr.bf16.mxu0 %v3037
      %3095 = vmatpush2.bf16.msra.mxu0 %v3036
      %3096 = vmatprep.subr.bf16.mxu0 %v3035
      %3097 = vmatpush2.bf16.msra.mxu0 %v3034
      %3098 = vmatprep.subr.bf16.mxu0 %v3033
      %3099 = vmatpush2.bf16.msra.mxu0 %v3032
      %3100 = vmatprep.subr.bf16.mxu0 %v3031
      %3101 = vmatpush2.bf16.msra.mxu0 %v3030
      %3102 = vmatprep.subr.bf16.mxu0 %v3029
      %3103 = vmatpush2.bf16.msra.mxu0 %v3028
      %3104 = vmatprep.subr.bf16.mxu0 %v3027
      %3105 = vmatpush2.bf16.msra.mxu0 %v3026
      %3106 = vmatprep.mubr.bf16.mxu0 %v2911
      %3107 = vmatmul.mubr.bf16.gmra.mxu0 %v2904
      %v3108 = vpop.f32.mrf.mxu0
      %v3109 = vadd.f32 0.0, %v3108
      %v3110 = vpop.f32.mrf.mxu0
      %v3111 = vadd.f32 0.0, %v3110
      %v3112 = vpop.f32.mrf.mxu0
      %v3113 = vpop.f32.mrf.mxu0
      %3114 = vdwg.mxu0
      %v3115 = vadd.f32 %v2859, %v3109
      %v3116 = vadd.f32 %v2861, %v3111
      %s3117 = scalar_lea.vmem %s3, 768
      %v3118 = vld [vmem:[%s3117] sm:$0xff]
      %v3119 = vld [vmem:[%s3117 + $0x8] sm:$0xff]
      %v3120 = vld [vmem:[%s3117 + $0x10] sm:$0xff]
      %v3121 = vld [vmem:[%s3117 + $0x18] sm:$0xff]
      %v3122 = vld [vmem:[%s3117 + $0x20] sm:$0xff]
      %v3123 = vld [vmem:[%s3117 + $0x28] sm:$0xff]
      %v3124 = vld [vmem:[%s3117 + $0x30] sm:$0xff]
      %v3125 = vld [vmem:[%s3117 + $0x38] sm:$0xff]
      %v3126 = vld [vmem:[%s3117 + $0x40] sm:$0xff]
      %v3127 = vld [vmem:[%s3117 + $0x48] sm:$0xff]
      %v3128 = vld [vmem:[%s3117 + $0x50] sm:$0xff]
      %v3129 = vld [vmem:[%s3117 + $0x58] sm:$0xff]
      %v3130 = vld [vmem:[%s3117 + $0x60] sm:$0xff]
      %v3131 = vld [vmem:[%s3117 + $0x68] sm:$0xff]
      %v3132 = vld [vmem:[%s3117 + $0x70] sm:$0xff]
      %v3133 = vld [vmem:[%s3117 + $0x78] sm:$0xff]
      %v3134 = vld [vmem:[%s3117 + $0x80] sm:$0xff]
      %v3135 = vld [vmem:[%s3117 + $0x88] sm:$0xff]
      %v3136 = vld [vmem:[%s3117 + $0x90] sm:$0xff]
      %v3137 = vld [vmem:[%s3117 + $0x98] sm:$0xff]
      %v3138 = vld [vmem:[%s3117 + $0xa0] sm:$0xff]
      %v3139 = vld [vmem:[%s3117 + $0xa8] sm:$0xff]
      %v3140 = vld [vmem:[%s3117 + $0xb0] sm:$0xff]
      %v3141 = vld [vmem:[%s3117 + $0xb8] sm:$0xff]
      %v3142 = vld [vmem:[%s3117 + $0xc0] sm:$0xff]
      %v3143 = vld [vmem:[%s3117 + $0xc8] sm:$0xff]
      %v3144 = vld [vmem:[%s3117 + $0xd0] sm:$0xff]
      %v3145 = vld [vmem:[%s3117 + $0xd8] sm:$0xff]
      %v3146 = vld [vmem:[%s3117 + $0xe0] sm:$0xff]
      %v3147 = vld [vmem:[%s3117 + $0xe8] sm:$0xff]
      %v3148 = vld [vmem:[%s3117 + $0xf0] sm:$0xff]
      %v3149 = vld [vmem:[%s3117 + $0xf8] sm:$0xff]
      %v3151 = vshrl.u32 %v2428, 16
      %v3153 = vshll.u32 %v2428, 16
      %v3155 = vrot.slane %v3153, 1
      %v3156 = vor.u32 %v3151, %v3155
      %v3158 = vshrl.u32 %v2429, 16
      %v3160 = vshll.u32 %v2429, 16
      %v3162 = vrot.slane %v3160, 1
      %v3163 = vor.u32 %v3158, %v3162
      %v3198 = vunpack.c.l.b16 %v3118
      %v3199 = vunpack.c.h.b16 %v3118
      %v3200 = vunpack.c.l.b16 %v3119
      %v3201 = vunpack.c.h.b16 %v3119
      %v3202 = vunpack.c.l.b16 %v3120
      %v3203 = vunpack.c.h.b16 %v3120
      %v3204 = vunpack.c.l.b16 %v3121
      %v3205 = vunpack.c.h.b16 %v3121
      %v3206 = vunpack.c.l.b16 %v3122
      %v3207 = vunpack.c.h.b16 %v3122
      %v3208 = vunpack.c.l.b16 %v3123
      %v3209 = vunpack.c.h.b16 %v3123
      %v3210 = vunpack.c.l.b16 %v3124
      %v3211 = vunpack.c.h.b16 %v3124
      %v3212 = vunpack.c.l.b16 %v3125
      %v3213 = vunpack.c.h.b16 %v3125
      %v3214 = vunpack.c.l.b16 %v3126
      %v3215 = vunpack.c.h.b16 %v3126
      %v3216 = vunpack.c.l.b16 %v3127
      %v3217 = vunpack.c.h.b16 %v3127
      %v3218 = vunpack.c.l.b16 %v3128
      %v3219 = vunpack.c.h.b16 %v3128
      %v3220 = vunpack.c.l.b16 %v3129
      %v3221 = vunpack.c.h.b16 %v3129
      %v3222 = vunpack.c.l.b16 %v3130
      %v3223 = vunpack.c.h.b16 %v3130
      %v3224 = vunpack.c.l.b16 %v3131
      %v3225 = vunpack.c.h.b16 %v3131
      %v3226 = vunpack.c.l.b16 %v3132
      %v3227 = vunpack.c.h.b16 %v3132
      %v3228 = vunpack.c.l.b16 %v3133
      %v3229 = vunpack.c.h.b16 %v3133
      %v3230 = vunpack.c.l.b16 %v3134
      %v3231 = vunpack.c.h.b16 %v3134
      %v3232 = vunpack.c.l.b16 %v3135
      %v3233 = vunpack.c.h.b16 %v3135
      %v3234 = vunpack.c.l.b16 %v3136
      %v3235 = vunpack.c.h.b16 %v3136
      %v3236 = vunpack.c.l.b16 %v3137
      %v3237 = vunpack.c.h.b16 %v3137
      %v3238 = vunpack.c.l.b16 %v3138
      %v3239 = vunpack.c.h.b16 %v3138
      %v3240 = vunpack.c.l.b16 %v3139
      %v3241 = vunpack.c.h.b16 %v3139
      %v3242 = vunpack.c.l.b16 %v3140
      %v3243 = vunpack.c.h.b16 %v3140
      %v3244 = vunpack.c.l.b16 %v3141
      %v3245 = vunpack.c.h.b16 %v3141
      %v3246 = vunpack.c.l.b16 %v3142
      %v3247 = vunpack.c.h.b16 %v3142
      %v3248 = vunpack.c.l.b16 %v3143
      %v3249 = vunpack.c.h.b16 %v3143
      %v3250 = vunpack.c.l.b16 %v3144
      %v3251 = vunpack.c.h.b16 %v3144
      %v3252 = vunpack.c.l.b16 %v3145
      %v3253 = vunpack.c.h.b16 %v3145
      %v3254 = vunpack.c.l.b16 %v3146
      %v3255 = vunpack.c.h.b16 %v3146
      %v3256 = vunpack.c.l.b16 %v3147
      %v3257 = vunpack.c.h.b16 %v3147
      %v3258 = vunpack.c.l.b16 %v3148
      %v3259 = vunpack.c.h.b16 %v3148
      %v3260 = vunpack.c.l.b16 %v3149
      %v3261 = vunpack.c.h.b16 %v3149
      %v3262 = vpack.c.b16 %v3200, %v3198
      %v3263 = vpack.c.b16 %v3201, %v3199
      %v3264 = vpack.c.b16 %v3204, %v3202
      %v3265 = vpack.c.b16 %v3205, %v3203
      %v3266 = vpack.c.b16 %v3208, %v3206
      %v3267 = vpack.c.b16 %v3209, %v3207
      %v3268 = vpack.c.b16 %v3212, %v3210
      %v3269 = vpack.c.b16 %v3213, %v3211
      %v3270 = vpack.c.b16 %v3216, %v3214
      %v3271 = vpack.c.b16 %v3217, %v3215
      %v3272 = vpack.c.b16 %v3220, %v3218
      %v3273 = vpack.c.b16 %v3221, %v3219
      %v3274 = vpack.c.b16 %v3224, %v3222
      %v3275 = vpack.c.b16 %v3225, %v3223
      %v3276 = vpack.c.b16 %v3228, %v3226
      %v3277 = vpack.c.b16 %v3229, %v3227
      %v3278 = vpack.c.b16 %v3232, %v3230
      %v3279 = vpack.c.b16 %v3233, %v3231
      %v3280 = vpack.c.b16 %v3236, %v3234
      %v3281 = vpack.c.b16 %v3237, %v3235
      %v3282 = vpack.c.b16 %v3240, %v3238
      %v3283 = vpack.c.b16 %v3241, %v3239
      %v3284 = vpack.c.b16 %v3244, %v3242
      %v3285 = vpack.c.b16 %v3245, %v3243
      %v3286 = vpack.c.b16 %v3248, %v3246
      %v3287 = vpack.c.b16 %v3249, %v3247
      %v3288 = vpack.c.b16 %v3252, %v3250
      %v3289 = vpack.c.b16 %v3253, %v3251
      %v3290 = vpack.c.b16 %v3256, %v3254
      %v3291 = vpack.c.b16 %v3257, %v3255
      %v3292 = vpack.c.b16 %v3260, %v3258
      %v3293 = vpack.c.b16 %v3261, %v3259
      %3326 = vmatprep.subr.bf16.mxu0 %v3277
      %3327 = vmatpush1.bf16.msra.mxu0 %v3276
      %3328 = vmatprep.subr.bf16.mxu0 %v3275
      %3329 = vmatpush1.bf16.msra.mxu0 %v3274
      %3330 = vmatprep.subr.bf16.mxu0 %v3273
      %3331 = vmatpush1.bf16.msra.mxu0 %v3272
      %3332 = vmatprep.subr.bf16.mxu0 %v3271
      %3333 = vmatpush1.bf16.msra.mxu0 %v3270
      %3334 = vmatprep.subr.bf16.mxu0 %v3269
      %3335 = vmatpush1.bf16.msra.mxu0 %v3268
      %3336 = vmatprep.subr.bf16.mxu0 %v3267
      %3337 = vmatpush1.bf16.msra.mxu0 %v3266
      %3338 = vmatprep.subr.bf16.mxu0 %v3265
      %3339 = vmatpush1.bf16.msra.mxu0 %v3264
      %3340 = vmatprep.subr.bf16.mxu0 %v3263
      %3341 = vmatpush1.bf16.msra.mxu0 %v3262
      %3342 = vmatprep.subr.bf16.mxu0 %v3293
      %3343 = vmatpush2.bf16.msra.mxu0 %v3292
      %3344 = vmatprep.subr.bf16.mxu0 %v3291
      %3345 = vmatpush2.bf16.msra.mxu0 %v3290
      %3346 = vmatprep.subr.bf16.mxu0 %v3289
      %3347 = vmatpush2.bf16.msra.mxu0 %v3288
      %3348 = vmatprep.subr.bf16.mxu0 %v3287
      %3349 = vmatpush2.bf16.msra.mxu0 %v3286
      %3350 = vmatprep.subr.bf16.mxu0 %v3285
      %3351 = vmatpush2.bf16.msra.mxu0 %v3284
      %3352 = vmatprep.subr.bf16.mxu0 %v3283
      %3353 = vmatpush2.bf16.msra.mxu0 %v3282
      %3354 = vmatprep.subr.bf16.mxu0 %v3281
      %3355 = vmatpush2.bf16.msra.mxu0 %v3280
      %3356 = vmatprep.subr.bf16.mxu0 %v3279
      %3357 = vmatpush2.bf16.msra.mxu0 %v3278
      %3358 = vmatprep.mubr.bf16.mxu0 %v3163
      %3359 = vmatmul.mubr.bf16.gmra.mxu0 %v3156
      %v3360 = vpop.f32.mrf.mxu0
      %v3361 = vadd.f32 0.0, %v3360
      %v3362 = vpop.f32.mrf.mxu0
      %v3363 = vadd.f32 0.0, %v3362
      %v3364 = vpop.f32.mrf.mxu0
      %v3365 = vpop.f32.mrf.mxu0
      %3366 = vdwg.mxu0
      %v3367 = vadd.f32 %v3115, %v3361
      %v3368 = vadd.f32 %v3116, %v3363
      %v3369 = vld [vmem:[%s8] sm:$0x3]
      %v3371 = vlaneseq
      %v3372 = vshrl.u32 %v3371, 7
      %v3373 = vsub.s32 0, %v3372
      %v3374 = vrot.slane %v3369, %v3373
      %v3375 = vlaneseq
      %v3376 = vshrl.u32 %v3375, 7
      %v3377 = vsub.s32 1, %v3376
      %v3378 = vrot.slane %v3369, %v3377
      %v3381 = vadd.f32 %v3367, %v3374
      %v3382 = vadd.f32 %v3368, %v3378
      %vm3383 = vcmp.gt.f32.partialorder %v3381, 0.0
      %vm3384 = vcmp.gt.f32.partialorder %v3382, 0.0
      %v3385 = vmul.f32 %v3381, 0.01
      %v3386 = vmul.f32 %v3382, 0.01
      %v3387 = vsel %vm3383, %v3381, %v3385
      %v3388 = vsel %vm3384, %v3382, %v3386
      %vm3389 = vcmp.lt.s32.totalorder %v416, 2
      %vm3390 = vmand %vm3389, %vm442
      %v3391 = vsel %vm3390, 1.0, 0.0
      %vm3392 = vcmask 31744
      %v3393 = vsel %vm3392, %v436, 0
      %vm3395 = vcmask 1043456
      %v3397 = vsel %vm3395, %v3387, 0
      %v3400 = vsel %vm3395, %v3388, 0
      %3402 = vmatprep.subr.mxu0 0.0
      %3403 = vmatpush1.msra.mxu0 0.0
      %3404 = vmatprep.subr.mxu0 0.0
      %3405 = vmatpush1.msra.mxu0 0.0
      %3406 = vmatprep.subr.mxu0 0.0
      %3407 = vmatpush1.msra.mxu0 0.0
      %3408 = vmatprep.subr.mxu0 0.0
      %3409 = vmatpush1.msra.mxu0 0.0
      %3410 = vmatprep.subr.mxu0 0.0
      %3411 = vmatpush1.msra.mxu0 0.0
      %3412 = vmatprep.subr.mxu0 0.0
      %3413 = vmatpush1.msra.mxu0 0.0
      %3414 = vmatprep.subr.mxu0 0.0
      %3415 = vmatpush1.msra.mxu0 0.0
      %3416 = vmatprep.subr.mxu0 0.0
      %3417 = vmatpush1.msra.mxu0 0.0
      %3418 = vmatprep.subr.mxu0 0.0
      %3419 = vmatpush1.msra.mxu0 0.0
      %3420 = vmatprep.subr.mxu0 0.0
      %3421 = vmatpush1.msra.mxu0 0.0
      %3422 = vmatprep.subr.mxu0 0.0
      %3423 = vmatpush1.msra.mxu0 0.0
      %3424 = vmatprep.subr.mxu0 0.0
      %3425 = vmatpush1.msra.mxu0 0.0
      %3426 = vmatprep.subr.mxu0 0.0
      %3427 = vmatpush1.msra.mxu0 0.0
      %3428 = vmatprep.subr.mxu0 0.0
      %3429 = vmatpush1.msra.mxu0 0.0
      %3430 = vmatprep.subr.mxu0 0.0
      %3431 = vmatpush1.msra.mxu0 0.0
      %3432 = vmatprep.subr.mxu0 %v3400
      %3433 = vmatpush1.msra.mxu0 %v3397
      %3434 = vmatprep.subr.mxu0 0.0
      %3435 = vmatpush2.msra.mxu0 0.0
      %3436 = vmatprep.subr.mxu0 0.0
      %3437 = vmatpush2.msra.mxu0 0.0
      %3438 = vmatprep.subr.mxu0 0.0
      %3439 = vmatpush2.msra.mxu0 0.0
      %3440 = vmatprep.subr.mxu0 0.0
      %3441 = vmatpush2.msra.mxu0 0.0
      %3442 = vmatprep.subr.mxu0 0.0
      %3443 = vmatpush2.msra.mxu0 0.0
      %3444 = vmatprep.subr.mxu0 0.0
      %3445 = vmatpush2.msra.mxu0 0.0
      %3446 = vmatprep.subr.mxu0 0.0
      %3447 = vmatpush2.msra.mxu0 0.0
      %3448 = vmatprep.subr.mxu0 0.0
      %3449 = vmatpush2.msra.mxu0 0.0
      %3450 = vmatprep.subr.mxu0 0.0
      %3451 = vmatpush2.msra.mxu0 0.0
      %3452 = vmatprep.subr.mxu0 0.0
      %3453 = vmatpush2.msra.mxu0 0.0
      %3454 = vmatprep.subr.mxu0 0.0
      %3455 = vmatpush2.msra.mxu0 0.0
      %3456 = vmatprep.subr.mxu0 0.0
      %3457 = vmatpush2.msra.mxu0 0.0
      %3458 = vmatprep.subr.mxu0 0.0
      %3459 = vmatpush2.msra.mxu0 0.0
      %3460 = vmatprep.subr.mxu0 0.0
      %3461 = vmatpush2.msra.mxu0 0.0
      %3462 = vmatprep.subr.mxu0 0.0
      %3463 = vmatpush2.msra.mxu0 0.0
      %3464 = vmatprep.subr.mxu0 0.0
      %3465 = vmatpush2.msra.mxu0 0.0
      %3466 = vmatprep.mubr.f32.mxu0 0.0
      %3467 = vmatmul.mubr.f32.gmra.mxu0 %v3393
      %v3468 = vpop.f32.mrf.mxu0
      %v3469 = vadd.f32 0.0, %v3468
      %v3470 = vpop.f32.mrf.mxu0
      %v3471 = vadd.f32 0.0, %v3470
      %3472 = vdwg.mxu0
      %v3474 = vsel %vm3392, %v3391, 0
      %3476 = vmatprep.subr.mxu0 0.0
      %3477 = vmatpush1.msra.mxu0 0.0
      %3478 = vmatprep.subr.mxu0 0.0
      %3479 = vmatpush1.msra.mxu0 0.0
      %3480 = vmatprep.subr.mxu0 0.0
      %3481 = vmatpush1.msra.mxu0 0.0
      %3482 = vmatprep.subr.mxu0 0.0
      %3483 = vmatpush1.msra.mxu0 0.0
      %3484 = vmatprep.subr.mxu0 0.0
      %3485 = vmatpush1.msra.mxu0 0.0
      %3486 = vmatprep.subr.mxu0 0.0
      %3487 = vmatpush1.msra.mxu0 0.0
      %3488 = vmatprep.subr.mxu0 0.0
      %3489 = vmatpush1.msra.mxu0 0.0
      %3490 = vmatprep.subr.mxu0 0.0
      %3491 = vmatpush1.msra.mxu0 0.0
      %3492 = vmatprep.subr.mxu0 0.0
      %3493 = vmatpush1.msra.mxu0 0.0
      %3494 = vmatprep.subr.mxu0 0.0
      %3495 = vmatpush1.msra.mxu0 0.0
      %3496 = vmatprep.subr.mxu0 0.0
      %3497 = vmatpush1.msra.mxu0 0.0
      %3498 = vmatprep.subr.mxu0 0.0
      %3499 = vmatpush1.msra.mxu0 0.0
      %3500 = vmatprep.subr.mxu0 0.0
      %3501 = vmatpush1.msra.mxu0 0.0
      %3502 = vmatprep.subr.mxu0 0.0
      %3503 = vmatpush1.msra.mxu0 0.0
      %3504 = vmatprep.subr.mxu0 0.0
      %3505 = vmatpush1.msra.mxu0 0.0
      %3506 = vmatprep.subr.mxu0 %v3400
      %3507 = vmatpush1.msra.mxu0 %v3397
      %3508 = vmatprep.subr.mxu0 0.0
      %3509 = vmatpush2.msra.mxu0 0.0
      %3510 = vmatprep.subr.mxu0 0.0
      %3511 = vmatpush2.msra.mxu0 0.0
      %3512 = vmatprep.subr.mxu0 0.0
      %3513 = vmatpush2.msra.mxu0 0.0
      %3514 = vmatprep.subr.mxu0 0.0
      %3515 = vmatpush2.msra.mxu0 0.0
      %3516 = vmatprep.subr.mxu0 0.0
      %3517 = vmatpush2.msra.mxu0 0.0
      %3518 = vmatprep.subr.mxu0 0.0
      %3519 = vmatpush2.msra.mxu0 0.0
      %3520 = vmatprep.subr.mxu0 0.0
      %3521 = vmatpush2.msra.mxu0 0.0
      %3522 = vmatprep.subr.mxu0 0.0
      %3523 = vmatpush2.msra.mxu0 0.0
      %3524 = vmatprep.subr.mxu0 0.0
      %3525 = vmatpush2.msra.mxu0 0.0
      %3526 = vmatprep.subr.mxu0 0.0
      %3527 = vmatpush2.msra.mxu0 0.0
      %3528 = vmatprep.subr.mxu0 0.0
      %3529 = vmatpush2.msra.mxu0 0.0
      %3530 = vmatprep.subr.mxu0 0.0
      %3531 = vmatpush2.msra.mxu0 0.0
      %3532 = vmatprep.subr.mxu0 0.0
      %3533 = vmatpush2.msra.mxu0 0.0
      %3534 = vmatprep.subr.mxu0 0.0
      %3535 = vmatpush2.msra.mxu0 0.0
      %3536 = vmatprep.subr.mxu0 0.0
      %3537 = vmatpush2.msra.mxu0 0.0
      %3538 = vmatprep.subr.mxu0 0.0
      %3539 = vmatpush2.msra.mxu0 0.0
      %3540 = vmatprep.mubr.f32.mxu0 0.0
      %3541 = vmatmul.mubr.f32.gmra.mxu0 %v3474
      %v3542 = vpop.f32.mrf.mxu0
      %v3543 = vadd.f32 0.0, %v3542
      %v3544 = vpop.f32.mrf.mxu0
      %v3545 = vadd.f32 0.0, %v3544
      %3546 = vdwg.mxu0
      %v3547 = vpack.c.bf16 %v3469, %v3469
      %v3548 = vpack.c.bf16 %v3471, %v3471
      %v3549 = vld [vmem:[%s4] sm:$0xff]
      %v3550 = vld [vmem:[%s4 + $0x8] sm:$0xff]
      %v3551 = vld [vmem:[%s4 + $0x10] sm:$0xff]
      %v3552 = vld [vmem:[%s4 + $0x18] sm:$0xff]
      %v3553 = vld [vmem:[%s4 + $0x20] sm:$0xff]
      %v3554 = vld [vmem:[%s4 + $0x28] sm:$0xff]
      %v3555 = vld [vmem:[%s4 + $0x30] sm:$0xff]
      %v3556 = vld [vmem:[%s4 + $0x38] sm:$0xff]
      %v3557 = vld [vmem:[%s4 + $0x40] sm:$0xff]
      %v3558 = vld [vmem:[%s4 + $0x48] sm:$0xff]
      %v3559 = vld [vmem:[%s4 + $0x50] sm:$0xff]
      %v3560 = vld [vmem:[%s4 + $0x58] sm:$0xff]
      %v3561 = vld [vmem:[%s4 + $0x60] sm:$0xff]
      %v3562 = vld [vmem:[%s4 + $0x68] sm:$0xff]
      %v3563 = vld [vmem:[%s4 + $0x70] sm:$0xff]
      %v3564 = vld [vmem:[%s4 + $0x78] sm:$0xff]
      %v3565 = vld [vmem:[%s4 + $0x80] sm:$0xff]
      %v3566 = vld [vmem:[%s4 + $0x88] sm:$0xff]
      %v3567 = vld [vmem:[%s4 + $0x90] sm:$0xff]
      %v3568 = vld [vmem:[%s4 + $0x98] sm:$0xff]
      %v3569 = vld [vmem:[%s4 + $0xa0] sm:$0xff]
      %v3570 = vld [vmem:[%s4 + $0xa8] sm:$0xff]
      %v3571 = vld [vmem:[%s4 + $0xb0] sm:$0xff]
      %v3572 = vld [vmem:[%s4 + $0xb8] sm:$0xff]
      %v3573 = vld [vmem:[%s4 + $0xc0] sm:$0xff]
      %v3574 = vld [vmem:[%s4 + $0xc8] sm:$0xff]
      %v3575 = vld [vmem:[%s4 + $0xd0] sm:$0xff]
      %v3576 = vld [vmem:[%s4 + $0xd8] sm:$0xff]
      %v3577 = vld [vmem:[%s4 + $0xe0] sm:$0xff]
      %v3578 = vld [vmem:[%s4 + $0xe8] sm:$0xff]
      %v3579 = vld [vmem:[%s4 + $0xf0] sm:$0xff]
      %v3580 = vld [vmem:[%s4 + $0xf8] sm:$0xff]
      %v3581 = vpack.c.bf16 %v3543, %v3543
      %v3582 = vpack.c.bf16 %v3545, %v3545
      %s3583 = scalar_lea.vmem %s4, 256
      %v3584 = vld [vmem:[%s3583] sm:$0xff]
      %v3585 = vld [vmem:[%s3583 + $0x8] sm:$0xff]
      %v3586 = vld [vmem:[%s3583 + $0x10] sm:$0xff]
      %v3587 = vld [vmem:[%s3583 + $0x18] sm:$0xff]
      %v3588 = vld [vmem:[%s3583 + $0x20] sm:$0xff]
      %v3589 = vld [vmem:[%s3583 + $0x28] sm:$0xff]
      %v3590 = vld [vmem:[%s3583 + $0x30] sm:$0xff]
      %v3591 = vld [vmem:[%s3583 + $0x38] sm:$0xff]
      %v3592 = vld [vmem:[%s3583 + $0x40] sm:$0xff]
      %v3593 = vld [vmem:[%s3583 + $0x48] sm:$0xff]
      %v3594 = vld [vmem:[%s3583 + $0x50] sm:$0xff]
      %v3595 = vld [vmem:[%s3583 + $0x58] sm:$0xff]
      %v3596 = vld [vmem:[%s3583 + $0x60] sm:$0xff]
      %v3597 = vld [vmem:[%s3583 + $0x68] sm:$0xff]
      %v3598 = vld [vmem:[%s3583 + $0x70] sm:$0xff]
      %v3599 = vld [vmem:[%s3583 + $0x78] sm:$0xff]
      %v3600 = vld [vmem:[%s3583 + $0x80] sm:$0xff]
      %v3601 = vld [vmem:[%s3583 + $0x88] sm:$0xff]
      %v3602 = vld [vmem:[%s3583 + $0x90] sm:$0xff]
      %v3603 = vld [vmem:[%s3583 + $0x98] sm:$0xff]
      %v3604 = vld [vmem:[%s3583 + $0xa0] sm:$0xff]
      %v3605 = vld [vmem:[%s3583 + $0xa8] sm:$0xff]
      %v3606 = vld [vmem:[%s3583 + $0xb0] sm:$0xff]
      %v3607 = vld [vmem:[%s3583 + $0xb8] sm:$0xff]
      %v3608 = vld [vmem:[%s3583 + $0xc0] sm:$0xff]
      %v3609 = vld [vmem:[%s3583 + $0xc8] sm:$0xff]
      %v3610 = vld [vmem:[%s3583 + $0xd0] sm:$0xff]
      %v3611 = vld [vmem:[%s3583 + $0xd8] sm:$0xff]
      %v3612 = vld [vmem:[%s3583 + $0xe0] sm:$0xff]
      %v3613 = vld [vmem:[%s3583 + $0xe8] sm:$0xff]
      %v3614 = vld [vmem:[%s3583 + $0xf0] sm:$0xff]
      %v3615 = vld [vmem:[%s3583 + $0xf8] sm:$0xff]
      %v3648 = vunpack.c.l.b16 %v3584
      %v3649 = vunpack.c.h.b16 %v3584
      %v3650 = vunpack.c.l.b16 %v3585
      %v3651 = vunpack.c.h.b16 %v3585
      %v3652 = vunpack.c.l.b16 %v3586
      %v3653 = vunpack.c.h.b16 %v3586
      %v3654 = vunpack.c.l.b16 %v3587
      %v3655 = vunpack.c.h.b16 %v3587
      %v3656 = vunpack.c.l.b16 %v3588
      %v3657 = vunpack.c.h.b16 %v3588
      %v3658 = vunpack.c.l.b16 %v3589
      %v3659 = vunpack.c.h.b16 %v3589
      %v3660 = vunpack.c.l.b16 %v3590
      %v3661 = vunpack.c.h.b16 %v3590
      %v3662 = vunpack.c.l.b16 %v3591
      %v3663 = vunpack.c.h.b16 %v3591
      %v3664 = vunpack.c.l.b16 %v3592
      %v3665 = vunpack.c.h.b16 %v3592
      %v3666 = vunpack.c.l.b16 %v3593
      %v3667 = vunpack.c.h.b16 %v3593
      %v3668 = vunpack.c.l.b16 %v3594
      %v3669 = vunpack.c.h.b16 %v3594
      %v3670 = vunpack.c.l.b16 %v3595
      %v3671 = vunpack.c.h.b16 %v3595
      %v3672 = vunpack.c.l.b16 %v3596
      %v3673 = vunpack.c.h.b16 %v3596
      %v3674 = vunpack.c.l.b16 %v3597
      %v3675 = vunpack.c.h.b16 %v3597
      %v3676 = vunpack.c.l.b16 %v3598
      %v3677 = vunpack.c.h.b16 %v3598
      %v3678 = vunpack.c.l.b16 %v3599
      %v3679 = vunpack.c.h.b16 %v3599
      %v3680 = vunpack.c.l.b16 %v3600
      %v3681 = vunpack.c.h.b16 %v3600
      %v3682 = vunpack.c.l.b16 %v3601
      %v3683 = vunpack.c.h.b16 %v3601
      %v3684 = vunpack.c.l.b16 %v3602
      %v3685 = vunpack.c.h.b16 %v3602
      %v3686 = vunpack.c.l.b16 %v3603
      %v3687 = vunpack.c.h.b16 %v3603
      %v3688 = vunpack.c.l.b16 %v3604
      %v3689 = vunpack.c.h.b16 %v3604
      %v3690 = vunpack.c.l.b16 %v3605
      %v3691 = vunpack.c.h.b16 %v3605
      %v3692 = vunpack.c.l.b16 %v3606
      %v3693 = vunpack.c.h.b16 %v3606
      %v3694 = vunpack.c.l.b16 %v3607
      %v3695 = vunpack.c.h.b16 %v3607
      %v3696 = vunpack.c.l.b16 %v3608
      %v3697 = vunpack.c.h.b16 %v3608
      %v3698 = vunpack.c.l.b16 %v3609
      %v3699 = vunpack.c.h.b16 %v3609
      %v3700 = vunpack.c.l.b16 %v3610
      %v3701 = vunpack.c.h.b16 %v3610
      %v3702 = vunpack.c.l.b16 %v3611
      %v3703 = vunpack.c.h.b16 %v3611
      %v3704 = vunpack.c.l.b16 %v3612
      %v3705 = vunpack.c.h.b16 %v3612
      %v3706 = vunpack.c.l.b16 %v3613
      %v3707 = vunpack.c.h.b16 %v3613
      %v3708 = vunpack.c.l.b16 %v3614
      %v3709 = vunpack.c.h.b16 %v3614
      %v3710 = vunpack.c.l.b16 %v3615
      %v3711 = vunpack.c.h.b16 %v3615
      %v3712 = vpack.c.b16 %v3650, %v3648
      %v3713 = vpack.c.b16 %v3651, %v3649
      %v3714 = vpack.c.b16 %v3654, %v3652
      %v3715 = vpack.c.b16 %v3655, %v3653
      %v3716 = vpack.c.b16 %v3658, %v3656
      %v3717 = vpack.c.b16 %v3659, %v3657
      %v3718 = vpack.c.b16 %v3662, %v3660
      %v3719 = vpack.c.b16 %v3663, %v3661
      %v3720 = vpack.c.b16 %v3666, %v3664
      %v3721 = vpack.c.b16 %v3667, %v3665
      %v3722 = vpack.c.b16 %v3670, %v3668
      %v3723 = vpack.c.b16 %v3671, %v3669
      %v3724 = vpack.c.b16 %v3674, %v3672
      %v3725 = vpack.c.b16 %v3675, %v3673
      %v3726 = vpack.c.b16 %v3678, %v3676
      %v3727 = vpack.c.b16 %v3679, %v3677
      %v3728 = vpack.c.b16 %v3682, %v3680
      %v3729 = vpack.c.b16 %v3683, %v3681
      %v3730 = vpack.c.b16 %v3686, %v3684
      %v3731 = vpack.c.b16 %v3687, %v3685
      %v3732 = vpack.c.b16 %v3690, %v3688
      %v3733 = vpack.c.b16 %v3691, %v3689
      %v3734 = vpack.c.b16 %v3694, %v3692
      %v3735 = vpack.c.b16 %v3695, %v3693
      %v3736 = vpack.c.b16 %v3698, %v3696
      %v3737 = vpack.c.b16 %v3699, %v3697
      %v3738 = vpack.c.b16 %v3702, %v3700
      %v3739 = vpack.c.b16 %v3703, %v3701
      %v3740 = vpack.c.b16 %v3706, %v3704
      %v3741 = vpack.c.b16 %v3707, %v3705
      %v3742 = vpack.c.b16 %v3710, %v3708
      %v3743 = vpack.c.b16 %v3711, %v3709
      %3776 = vmatprep.subr.bf16.mxu0 %v3727
      %3777 = vmatpush1.bf16.msra.mxu0 %v3726
      %3778 = vmatprep.subr.bf16.mxu0 %v3725
      %3779 = vmatpush1.bf16.msra.mxu0 %v3724
      %3780 = vmatprep.subr.bf16.mxu0 %v3723
      %3781 = vmatpush1.bf16.msra.mxu0 %v3722
      %3782 = vmatprep.subr.bf16.mxu0 %v3721
      %3783 = vmatpush1.bf16.msra.mxu0 %v3720
      %3784 = vmatprep.subr.bf16.mxu0 %v3719
      %3785 = vmatpush1.bf16.msra.mxu0 %v3718
      %3786 = vmatprep.subr.bf16.mxu0 %v3717
      %3787 = vmatpush1.bf16.msra.mxu0 %v3716
      %3788 = vmatprep.subr.bf16.mxu0 %v3715
      %3789 = vmatpush1.bf16.msra.mxu0 %v3714
      %3790 = vmatprep.subr.bf16.mxu0 %v3713
      %3791 = vmatpush1.bf16.msra.mxu0 %v3712
      %3792 = vmatprep.subr.bf16.mxu0 %v3743
      %3793 = vmatpush2.bf16.msra.mxu0 %v3742
      %3794 = vmatprep.subr.bf16.mxu0 %v3741
      %3795 = vmatpush2.bf16.msra.mxu0 %v3740
      %3796 = vmatprep.subr.bf16.mxu0 %v3739
      %3797 = vmatpush2.bf16.msra.mxu0 %v3738
      %3798 = vmatprep.subr.bf16.mxu0 %v3737
      %3799 = vmatpush2.bf16.msra.mxu0 %v3736
      %3800 = vmatprep.subr.bf16.mxu0 %v3735
      %3801 = vmatpush2.bf16.msra.mxu0 %v3734
      %3802 = vmatprep.subr.bf16.mxu0 %v3733
      %3803 = vmatpush2.bf16.msra.mxu0 %v3732
      %3804 = vmatprep.subr.bf16.mxu0 %v3731
      %3805 = vmatpush2.bf16.msra.mxu0 %v3730
      %3806 = vmatprep.subr.bf16.mxu0 %v3729
      %3807 = vmatpush2.bf16.msra.mxu0 %v3728
      %3808 = vmatprep.mubr.bf16.mxu0 %v3582
      %3809 = vmatmul.mubr.bf16.gmra.mxu0 %v3581
      %v3810 = vpop.f32.mrf.mxu0
      %v3811 = vadd.f32 0.0, %v3810
      %v3812 = vpop.f32.mrf.mxu0
      %v3813 = vadd.f32 0.0, %v3812
      %v3814 = vpop.f32.mrf.mxu0
      %v3815 = vpop.f32.mrf.mxu0
      %3816 = vdwg.mxu0
      %v3849 = vunpack.c.l.b16 %v3549
      %v3850 = vunpack.c.h.b16 %v3549
      %v3851 = vunpack.c.l.b16 %v3550
      %v3852 = vunpack.c.h.b16 %v3550
      %v3853 = vunpack.c.l.b16 %v3551
      %v3854 = vunpack.c.h.b16 %v3551
      %v3855 = vunpack.c.l.b16 %v3552
      %v3856 = vunpack.c.h.b16 %v3552
      %v3857 = vunpack.c.l.b16 %v3553
      %v3858 = vunpack.c.h.b16 %v3553
      %v3859 = vunpack.c.l.b16 %v3554
      %v3860 = vunpack.c.h.b16 %v3554
      %v3861 = vunpack.c.l.b16 %v3555
      %v3862 = vunpack.c.h.b16 %v3555
      %v3863 = vunpack.c.l.b16 %v3556
      %v3864 = vunpack.c.h.b16 %v3556
      %v3865 = vunpack.c.l.b16 %v3557
      %v3866 = vunpack.c.h.b16 %v3557
      %v3867 = vunpack.c.l.b16 %v3558
      %v3868 = vunpack.c.h.b16 %v3558
      %v3869 = vunpack.c.l.b16 %v3559
      %v3870 = vunpack.c.h.b16 %v3559
      %v3871 = vunpack.c.l.b16 %v3560
      %v3872 = vunpack.c.h.b16 %v3560
      %v3873 = vunpack.c.l.b16 %v3561
      %v3874 = vunpack.c.h.b16 %v3561
      %v3875 = vunpack.c.l.b16 %v3562
      %v3876 = vunpack.c.h.b16 %v3562
      %v3877 = vunpack.c.l.b16 %v3563
      %v3878 = vunpack.c.h.b16 %v3563
      %v3879 = vunpack.c.l.b16 %v3564
      %v3880 = vunpack.c.h.b16 %v3564
      %v3881 = vunpack.c.l.b16 %v3565
      %v3882 = vunpack.c.h.b16 %v3565
      %v3883 = vunpack.c.l.b16 %v3566
      %v3884 = vunpack.c.h.b16 %v3566
      %v3885 = vunpack.c.l.b16 %v3567
      %v3886 = vunpack.c.h.b16 %v3567
      %v3887 = vunpack.c.l.b16 %v3568
      %v3888 = vunpack.c.h.b16 %v3568
      %v3889 = vunpack.c.l.b16 %v3569
      %v3890 = vunpack.c.h.b16 %v3569
      %v3891 = vunpack.c.l.b16 %v3570
      %v3892 = vunpack.c.h.b16 %v3570
      %v3893 = vunpack.c.l.b16 %v3571
      %v3894 = vunpack.c.h.b16 %v3571
      %v3895 = vunpack.c.l.b16 %v3572
      %v3896 = vunpack.c.h.b16 %v3572
      %v3897 = vunpack.c.l.b16 %v3573
      %v3898 = vunpack.c.h.b16 %v3573
      %v3899 = vunpack.c.l.b16 %v3574
      %v3900 = vunpack.c.h.b16 %v3574
      %v3901 = vunpack.c.l.b16 %v3575
      %v3902 = vunpack.c.h.b16 %v3575
      %v3903 = vunpack.c.l.b16 %v3576
      %v3904 = vunpack.c.h.b16 %v3576
      %v3905 = vunpack.c.l.b16 %v3577
      %v3906 = vunpack.c.h.b16 %v3577
      %v3907 = vunpack.c.l.b16 %v3578
      %v3908 = vunpack.c.h.b16 %v3578
      %v3909 = vunpack.c.l.b16 %v3579
      %v3910 = vunpack.c.h.b16 %v3579
      %v3911 = vunpack.c.l.b16 %v3580
      %v3912 = vunpack.c.h.b16 %v3580
      %v3913 = vpack.c.b16 %v3851, %v3849
      %v3914 = vpack.c.b16 %v3852, %v3850
      %v3915 = vpack.c.b16 %v3855, %v3853
      %v3916 = vpack.c.b16 %v3856, %v3854
      %v3917 = vpack.c.b16 %v3859, %v3857
      %v3918 = vpack.c.b16 %v3860, %v3858
      %v3919 = vpack.c.b16 %v3863, %v3861
      %v3920 = vpack.c.b16 %v3864, %v3862
      %v3921 = vpack.c.b16 %v3867, %v3865
      %v3922 = vpack.c.b16 %v3868, %v3866
      %v3923 = vpack.c.b16 %v3871, %v3869
      %v3924 = vpack.c.b16 %v3872, %v3870
      %v3925 = vpack.c.b16 %v3875, %v3873
      %v3926 = vpack.c.b16 %v3876, %v3874
      %v3927 = vpack.c.b16 %v3879, %v3877
      %v3928 = vpack.c.b16 %v3880, %v3878
      %v3929 = vpack.c.b16 %v3883, %v3881
      %v3930 = vpack.c.b16 %v3884, %v3882
      %v3931 = vpack.c.b16 %v3887, %v3885
      %v3932 = vpack.c.b16 %v3888, %v3886
      %v3933 = vpack.c.b16 %v3891, %v3889
      %v3934 = vpack.c.b16 %v3892, %v3890
      %v3935 = vpack.c.b16 %v3895, %v3893
      %v3936 = vpack.c.b16 %v3896, %v3894
      %v3937 = vpack.c.b16 %v3899, %v3897
      %v3938 = vpack.c.b16 %v3900, %v3898
      %v3939 = vpack.c.b16 %v3903, %v3901
      %v3940 = vpack.c.b16 %v3904, %v3902
      %v3941 = vpack.c.b16 %v3907, %v3905
      %v3942 = vpack.c.b16 %v3908, %v3906
      %v3943 = vpack.c.b16 %v3911, %v3909
      %v3944 = vpack.c.b16 %v3912, %v3910
      %3977 = vmatprep.subr.bf16.mxu0 %v3928
      %3978 = vmatpush1.bf16.msra.mxu0 %v3927
      %3979 = vmatprep.subr.bf16.mxu0 %v3926
      %3980 = vmatpush1.bf16.msra.mxu0 %v3925
      %3981 = vmatprep.subr.bf16.mxu0 %v3924
      %3982 = vmatpush1.bf16.msra.mxu0 %v3923
      %3983 = vmatprep.subr.bf16.mxu0 %v3922
      %3984 = vmatpush1.bf16.msra.mxu0 %v3921
      %3985 = vmatprep.subr.bf16.mxu0 %v3920
      %3986 = vmatpush1.bf16.msra.mxu0 %v3919
      %3987 = vmatprep.subr.bf16.mxu0 %v3918
      %3988 = vmatpush1.bf16.msra.mxu0 %v3917
      %3989 = vmatprep.subr.bf16.mxu0 %v3916
      %3990 = vmatpush1.bf16.msra.mxu0 %v3915
      %3991 = vmatprep.subr.bf16.mxu0 %v3914
      %3992 = vmatpush1.bf16.msra.mxu0 %v3913
      %3993 = vmatprep.subr.bf16.mxu0 %v3944
      %3994 = vmatpush2.bf16.msra.mxu0 %v3943
      %3995 = vmatprep.subr.bf16.mxu0 %v3942
      %3996 = vmatpush2.bf16.msra.mxu0 %v3941
      %3997 = vmatprep.subr.bf16.mxu0 %v3940
      %3998 = vmatpush2.bf16.msra.mxu0 %v3939
      %3999 = vmatprep.subr.bf16.mxu0 %v3938
      %4000 = vmatpush2.bf16.msra.mxu0 %v3937
      %4001 = vmatprep.subr.bf16.mxu0 %v3936
      %4002 = vmatpush2.bf16.msra.mxu0 %v3935
      %4003 = vmatprep.subr.bf16.mxu0 %v3934
      %4004 = vmatpush2.bf16.msra.mxu0 %v3933
      %4005 = vmatprep.subr.bf16.mxu0 %v3932
      %4006 = vmatpush2.bf16.msra.mxu0 %v3931
      %4007 = vmatprep.subr.bf16.mxu0 %v3930
      %4008 = vmatpush2.bf16.msra.mxu0 %v3929
      %4009 = vmatprep.mubr.bf16.mxu0 %v3548
      %4010 = vmatmul.mubr.bf16.gmra.mxu0 %v3547
      %v4011 = vpop.f32.mrf.mxu0
      %v4012 = vadd.f32 %v3811, %v4011
      %v4013 = vpop.f32.mrf.mxu0
      %v4014 = vadd.f32 %v3813, %v4013
      %v4015 = vpop.f32.mrf.mxu0
      %v4016 = vpop.f32.mrf.mxu0
      %4017 = vdwg.mxu0
      %s4018 = scalar_lea.vmem %s4, 512
      %v4019 = vld [vmem:[%s4018] sm:$0xff]
      %v4020 = vld [vmem:[%s4018 + $0x8] sm:$0xff]
      %v4021 = vld [vmem:[%s4018 + $0x10] sm:$0xff]
      %v4022 = vld [vmem:[%s4018 + $0x18] sm:$0xff]
      %v4023 = vld [vmem:[%s4018 + $0x20] sm:$0xff]
      %v4024 = vld [vmem:[%s4018 + $0x28] sm:$0xff]
      %v4025 = vld [vmem:[%s4018 + $0x30] sm:$0xff]
      %v4026 = vld [vmem:[%s4018 + $0x38] sm:$0xff]
      %v4027 = vld [vmem:[%s4018 + $0x40] sm:$0xff]
      %v4028 = vld [vmem:[%s4018 + $0x48] sm:$0xff]
      %v4029 = vld [vmem:[%s4018 + $0x50] sm:$0xff]
      %v4030 = vld [vmem:[%s4018 + $0x58] sm:$0xff]
      %v4031 = vld [vmem:[%s4018 + $0x60] sm:$0xff]
      %v4032 = vld [vmem:[%s4018 + $0x68] sm:$0xff]
      %v4033 = vld [vmem:[%s4018 + $0x70] sm:$0xff]
      %v4034 = vld [vmem:[%s4018 + $0x78] sm:$0xff]
      %v4035 = vld [vmem:[%s4018 + $0x80] sm:$0xff]
      %v4036 = vld [vmem:[%s4018 + $0x88] sm:$0xff]
      %v4037 = vld [vmem:[%s4018 + $0x90] sm:$0xff]
      %v4038 = vld [vmem:[%s4018 + $0x98] sm:$0xff]
      %v4039 = vld [vmem:[%s4018 + $0xa0] sm:$0xff]
      %v4040 = vld [vmem:[%s4018 + $0xa8] sm:$0xff]
      %v4041 = vld [vmem:[%s4018 + $0xb0] sm:$0xff]
      %v4042 = vld [vmem:[%s4018 + $0xb8] sm:$0xff]
      %v4043 = vld [vmem:[%s4018 + $0xc0] sm:$0xff]
      %v4044 = vld [vmem:[%s4018 + $0xc8] sm:$0xff]
      %v4045 = vld [vmem:[%s4018 + $0xd0] sm:$0xff]
      %v4046 = vld [vmem:[%s4018 + $0xd8] sm:$0xff]
      %v4047 = vld [vmem:[%s4018 + $0xe0] sm:$0xff]
      %v4048 = vld [vmem:[%s4018 + $0xe8] sm:$0xff]
      %v4049 = vld [vmem:[%s4018 + $0xf0] sm:$0xff]
      %v4050 = vld [vmem:[%s4018 + $0xf8] sm:$0xff]
      %v4052 = vshrl.u32 %v3547, 16
      %v4054 = vshll.u32 %v3547, 16
      %v4056 = vrot.slane %v4054, 1
      %v4057 = vor.u32 %v4052, %v4056
      %v4059 = vshrl.u32 %v3548, 16
      %v4061 = vshll.u32 %v3548, 16
      %v4063 = vrot.slane %v4061, 1
      %v4064 = vor.u32 %v4059, %v4063
      %v4099 = vunpack.c.l.b16 %v4019
      %v4100 = vunpack.c.h.b16 %v4019
      %v4101 = vunpack.c.l.b16 %v4020
      %v4102 = vunpack.c.h.b16 %v4020
      %v4103 = vunpack.c.l.b16 %v4021
      %v4104 = vunpack.c.h.b16 %v4021
      %v4105 = vunpack.c.l.b16 %v4022
      %v4106 = vunpack.c.h.b16 %v4022
      %v4107 = vunpack.c.l.b16 %v4023
      %v4108 = vunpack.c.h.b16 %v4023
      %v4109 = vunpack.c.l.b16 %v4024
      %v4110 = vunpack.c.h.b16 %v4024
      %v4111 = vunpack.c.l.b16 %v4025
      %v4112 = vunpack.c.h.b16 %v4025
      %v4113 = vunpack.c.l.b16 %v4026
      %v4114 = vunpack.c.h.b16 %v4026
      %v4115 = vunpack.c.l.b16 %v4027
      %v4116 = vunpack.c.h.b16 %v4027
      %v4117 = vunpack.c.l.b16 %v4028
      %v4118 = vunpack.c.h.b16 %v4028
      %v4119 = vunpack.c.l.b16 %v4029
      %v4120 = vunpack.c.h.b16 %v4029
      %v4121 = vunpack.c.l.b16 %v4030
      %v4122 = vunpack.c.h.b16 %v4030
      %v4123 = vunpack.c.l.b16 %v4031
      %v4124 = vunpack.c.h.b16 %v4031
      %v4125 = vunpack.c.l.b16 %v4032
      %v4126 = vunpack.c.h.b16 %v4032
      %v4127 = vunpack.c.l.b16 %v4033
      %v4128 = vunpack.c.h.b16 %v4033
      %v4129 = vunpack.c.l.b16 %v4034
      %v4130 = vunpack.c.h.b16 %v4034
      %v4131 = vunpack.c.l.b16 %v4035
      %v4132 = vunpack.c.h.b16 %v4035
      %v4133 = vunpack.c.l.b16 %v4036
      %v4134 = vunpack.c.h.b16 %v4036
      %v4135 = vunpack.c.l.b16 %v4037
      %v4136 = vunpack.c.h.b16 %v4037
      %v4137 = vunpack.c.l.b16 %v4038
      %v4138 = vunpack.c.h.b16 %v4038
      %v4139 = vunpack.c.l.b16 %v4039
      %v4140 = vunpack.c.h.b16 %v4039
      %v4141 = vunpack.c.l.b16 %v4040
      %v4142 = vunpack.c.h.b16 %v4040
      %v4143 = vunpack.c.l.b16 %v4041
      %v4144 = vunpack.c.h.b16 %v4041
      %v4145 = vunpack.c.l.b16 %v4042
      %v4146 = vunpack.c.h.b16 %v4042
      %v4147 = vunpack.c.l.b16 %v4043
      %v4148 = vunpack.c.h.b16 %v4043
      %v4149 = vunpack.c.l.b16 %v4044
      %v4150 = vunpack.c.h.b16 %v4044
      %v4151 = vunpack.c.l.b16 %v4045
      %v4152 = vunpack.c.h.b16 %v4045
      %v4153 = vunpack.c.l.b16 %v4046
      %v4154 = vunpack.c.h.b16 %v4046
      %v4155 = vunpack.c.l.b16 %v4047
      %v4156 = vunpack.c.h.b16 %v4047
      %v4157 = vunpack.c.l.b16 %v4048
      %v4158 = vunpack.c.h.b16 %v4048
      %v4159 = vunpack.c.l.b16 %v4049
      %v4160 = vunpack.c.h.b16 %v4049
      %v4161 = vunpack.c.l.b16 %v4050
      %v4162 = vunpack.c.h.b16 %v4050
      %v4163 = vpack.c.b16 %v4101, %v4099
      %v4164 = vpack.c.b16 %v4102, %v4100
      %v4165 = vpack.c.b16 %v4105, %v4103
      %v4166 = vpack.c.b16 %v4106, %v4104
      %v4167 = vpack.c.b16 %v4109, %v4107
      %v4168 = vpack.c.b16 %v4110, %v4108
      %v4169 = vpack.c.b16 %v4113, %v4111
      %v4170 = vpack.c.b16 %v4114, %v4112
      %v4171 = vpack.c.b16 %v4117, %v4115
      %v4172 = vpack.c.b16 %v4118, %v4116
      %v4173 = vpack.c.b16 %v4121, %v4119
      %v4174 = vpack.c.b16 %v4122, %v4120
      %v4175 = vpack.c.b16 %v4125, %v4123
      %v4176 = vpack.c.b16 %v4126, %v4124
      %v4177 = vpack.c.b16 %v4129, %v4127
      %v4178 = vpack.c.b16 %v4130, %v4128
      %v4179 = vpack.c.b16 %v4133, %v4131
      %v4180 = vpack.c.b16 %v4134, %v4132
      %v4181 = vpack.c.b16 %v4137, %v4135
      %v4182 = vpack.c.b16 %v4138, %v4136
      %v4183 = vpack.c.b16 %v4141, %v4139
      %v4184 = vpack.c.b16 %v4142, %v4140
      %v4185 = vpack.c.b16 %v4145, %v4143
      %v4186 = vpack.c.b16 %v4146, %v4144
      %v4187 = vpack.c.b16 %v4149, %v4147
      %v4188 = vpack.c.b16 %v4150, %v4148
      %v4189 = vpack.c.b16 %v4153, %v4151
      %v4190 = vpack.c.b16 %v4154, %v4152
      %v4191 = vpack.c.b16 %v4157, %v4155
      %v4192 = vpack.c.b16 %v4158, %v4156
      %v4193 = vpack.c.b16 %v4161, %v4159
      %v4194 = vpack.c.b16 %v4162, %v4160
      %4227 = vmatprep.subr.bf16.mxu0 %v4178
      %4228 = vmatpush1.bf16.msra.mxu0 %v4177
      %4229 = vmatprep.subr.bf16.mxu0 %v4176
      %4230 = vmatpush1.bf16.msra.mxu0 %v4175
      %4231 = vmatprep.subr.bf16.mxu0 %v4174
      %4232 = vmatpush1.bf16.msra.mxu0 %v4173
      %4233 = vmatprep.subr.bf16.mxu0 %v4172
      %4234 = vmatpush1.bf16.msra.mxu0 %v4171
      %4235 = vmatprep.subr.bf16.mxu0 %v4170
      %4236 = vmatpush1.bf16.msra.mxu0 %v4169
      %4237 = vmatprep.subr.bf16.mxu0 %v4168
      %4238 = vmatpush1.bf16.msra.mxu0 %v4167
      %4239 = vmatprep.subr.bf16.mxu0 %v4166
      %4240 = vmatpush1.bf16.msra.mxu0 %v4165
      %4241 = vmatprep.subr.bf16.mxu0 %v4164
      %4242 = vmatpush1.bf16.msra.mxu0 %v4163
      %4243 = vmatprep.subr.bf16.mxu0 %v4194
      %4244 = vmatpush2.bf16.msra.mxu0 %v4193
      %4245 = vmatprep.subr.bf16.mxu0 %v4192
      %4246 = vmatpush2.bf16.msra.mxu0 %v4191
      %4247 = vmatprep.subr.bf16.mxu0 %v4190
      %4248 = vmatpush2.bf16.msra.mxu0 %v4189
      %4249 = vmatprep.subr.bf16.mxu0 %v4188
      %4250 = vmatpush2.bf16.msra.mxu0 %v4187
      %4251 = vmatprep.subr.bf16.mxu0 %v4186
      %4252 = vmatpush2.bf16.msra.mxu0 %v4185
      %4253 = vmatprep.subr.bf16.mxu0 %v4184
      %4254 = vmatpush2.bf16.msra.mxu0 %v4183
      %4255 = vmatprep.subr.bf16.mxu0 %v4182
      %4256 = vmatpush2.bf16.msra.mxu0 %v4181
      %4257 = vmatprep.subr.bf16.mxu0 %v4180
      %4258 = vmatpush2.bf16.msra.mxu0 %v4179
      %4259 = vmatprep.mubr.bf16.mxu0 %v4064
      %4260 = vmatmul.mubr.bf16.gmra.mxu0 %v4057
      %v4261 = vpop.f32.mrf.mxu0
      %v4262 = vadd.f32 0.0, %v4261
      %v4263 = vpop.f32.mrf.mxu0
      %v4264 = vadd.f32 0.0, %v4263
      %v4265 = vpop.f32.mrf.mxu0
      %v4266 = vpop.f32.mrf.mxu0
      %4267 = vdwg.mxu0
      %v4268 = vadd.f32 %v4012, %v4262
      %v4269 = vadd.f32 %v4014, %v4264
      %s4270 = scalar_lea.vmem %s4, 768
      %v4271 = vld [vmem:[%s4270] sm:$0xff]
      %v4272 = vld [vmem:[%s4270 + $0x8] sm:$0xff]
      %v4273 = vld [vmem:[%s4270 + $0x10] sm:$0xff]
      %v4274 = vld [vmem:[%s4270 + $0x18] sm:$0xff]
      %v4275 = vld [vmem:[%s4270 + $0x20] sm:$0xff]
      %v4276 = vld [vmem:[%s4270 + $0x28] sm:$0xff]
      %v4277 = vld [vmem:[%s4270 + $0x30] sm:$0xff]
      %v4278 = vld [vmem:[%s4270 + $0x38] sm:$0xff]
      %v4279 = vld [vmem:[%s4270 + $0x40] sm:$0xff]
      %v4280 = vld [vmem:[%s4270 + $0x48] sm:$0xff]
      %v4281 = vld [vmem:[%s4270 + $0x50] sm:$0xff]
      %v4282 = vld [vmem:[%s4270 + $0x58] sm:$0xff]
      %v4283 = vld [vmem:[%s4270 + $0x60] sm:$0xff]
      %v4284 = vld [vmem:[%s4270 + $0x68] sm:$0xff]
      %v4285 = vld [vmem:[%s4270 + $0x70] sm:$0xff]
      %v4286 = vld [vmem:[%s4270 + $0x78] sm:$0xff]
      %v4287 = vld [vmem:[%s4270 + $0x80] sm:$0xff]
      %v4288 = vld [vmem:[%s4270 + $0x88] sm:$0xff]
      %v4289 = vld [vmem:[%s4270 + $0x90] sm:$0xff]
      %v4290 = vld [vmem:[%s4270 + $0x98] sm:$0xff]
      %v4291 = vld [vmem:[%s4270 + $0xa0] sm:$0xff]
      %v4292 = vld [vmem:[%s4270 + $0xa8] sm:$0xff]
      %v4293 = vld [vmem:[%s4270 + $0xb0] sm:$0xff]
      %v4294 = vld [vmem:[%s4270 + $0xb8] sm:$0xff]
      %v4295 = vld [vmem:[%s4270 + $0xc0] sm:$0xff]
      %v4296 = vld [vmem:[%s4270 + $0xc8] sm:$0xff]
      %v4297 = vld [vmem:[%s4270 + $0xd0] sm:$0xff]
      %v4298 = vld [vmem:[%s4270 + $0xd8] sm:$0xff]
      %v4299 = vld [vmem:[%s4270 + $0xe0] sm:$0xff]
      %v4300 = vld [vmem:[%s4270 + $0xe8] sm:$0xff]
      %v4301 = vld [vmem:[%s4270 + $0xf0] sm:$0xff]
      %v4302 = vld [vmem:[%s4270 + $0xf8] sm:$0xff]
      %v4304 = vshrl.u32 %v3581, 16
      %v4306 = vshll.u32 %v3581, 16
      %v4308 = vrot.slane %v4306, 1
      %v4309 = vor.u32 %v4304, %v4308
      %v4311 = vshrl.u32 %v3582, 16
      %v4313 = vshll.u32 %v3582, 16
      %v4315 = vrot.slane %v4313, 1
      %v4316 = vor.u32 %v4311, %v4315
      %v4351 = vunpack.c.l.b16 %v4271
      %v4352 = vunpack.c.h.b16 %v4271
      %v4353 = vunpack.c.l.b16 %v4272
      %v4354 = vunpack.c.h.b16 %v4272
      %v4355 = vunpack.c.l.b16 %v4273
      %v4356 = vunpack.c.h.b16 %v4273
      %v4357 = vunpack.c.l.b16 %v4274
      %v4358 = vunpack.c.h.b16 %v4274
      %v4359 = vunpack.c.l.b16 %v4275
      %v4360 = vunpack.c.h.b16 %v4275
      %v4361 = vunpack.c.l.b16 %v4276
      %v4362 = vunpack.c.h.b16 %v4276
      %v4363 = vunpack.c.l.b16 %v4277
      %v4364 = vunpack.c.h.b16 %v4277
      %v4365 = vunpack.c.l.b16 %v4278
      %v4366 = vunpack.c.h.b16 %v4278
      %v4367 = vunpack.c.l.b16 %v4279
      %v4368 = vunpack.c.h.b16 %v4279
      %v4369 = vunpack.c.l.b16 %v4280
      %v4370 = vunpack.c.h.b16 %v4280
      %v4371 = vunpack.c.l.b16 %v4281
      %v4372 = vunpack.c.h.b16 %v4281
      %v4373 = vunpack.c.l.b16 %v4282
      %v4374 = vunpack.c.h.b16 %v4282
      %v4375 = vunpack.c.l.b16 %v4283
      %v4376 = vunpack.c.h.b16 %v4283
      %v4377 = vunpack.c.l.b16 %v4284
      %v4378 = vunpack.c.h.b16 %v4284
      %v4379 = vunpack.c.l.b16 %v4285
      %v4380 = vunpack.c.h.b16 %v4285
      %v4381 = vunpack.c.l.b16 %v4286
      %v4382 = vunpack.c.h.b16 %v4286
      %v4383 = vunpack.c.l.b16 %v4287
      %v4384 = vunpack.c.h.b16 %v4287
      %v4385 = vunpack.c.l.b16 %v4288
      %v4386 = vunpack.c.h.b16 %v4288
      %v4387 = vunpack.c.l.b16 %v4289
      %v4388 = vunpack.c.h.b16 %v4289
      %v4389 = vunpack.c.l.b16 %v4290
      %v4390 = vunpack.c.h.b16 %v4290
      %v4391 = vunpack.c.l.b16 %v4291
      %v4392 = vunpack.c.h.b16 %v4291
      %v4393 = vunpack.c.l.b16 %v4292
      %v4394 = vunpack.c.h.b16 %v4292
      %v4395 = vunpack.c.l.b16 %v4293
      %v4396 = vunpack.c.h.b16 %v4293
      %v4397 = vunpack.c.l.b16 %v4294
      %v4398 = vunpack.c.h.b16 %v4294
      %v4399 = vunpack.c.l.b16 %v4295
      %v4400 = vunpack.c.h.b16 %v4295
      %v4401 = vunpack.c.l.b16 %v4296
      %v4402 = vunpack.c.h.b16 %v4296
      %v4403 = vunpack.c.l.b16 %v4297
      %v4404 = vunpack.c.h.b16 %v4297
      %v4405 = vunpack.c.l.b16 %v4298
      %v4406 = vunpack.c.h.b16 %v4298
      %v4407 = vunpack.c.l.b16 %v4299
      %v4408 = vunpack.c.h.b16 %v4299
      %v4409 = vunpack.c.l.b16 %v4300
      %v4410 = vunpack.c.h.b16 %v4300
      %v4411 = vunpack.c.l.b16 %v4301
      %v4412 = vunpack.c.h.b16 %v4301
      %v4413 = vunpack.c.l.b16 %v4302
      %v4414 = vunpack.c.h.b16 %v4302
      %v4415 = vpack.c.b16 %v4353, %v4351
      %v4416 = vpack.c.b16 %v4354, %v4352
      %v4417 = vpack.c.b16 %v4357, %v4355
      %v4418 = vpack.c.b16 %v4358, %v4356
      %v4419 = vpack.c.b16 %v4361, %v4359
      %v4420 = vpack.c.b16 %v4362, %v4360
      %v4421 = vpack.c.b16 %v4365, %v4363
      %v4422 = vpack.c.b16 %v4366, %v4364
      %v4423 = vpack.c.b16 %v4369, %v4367
      %v4424 = vpack.c.b16 %v4370, %v4368
      %v4425 = vpack.c.b16 %v4373, %v4371
      %v4426 = vpack.c.b16 %v4374, %v4372
      %v4427 = vpack.c.b16 %v4377, %v4375
      %v4428 = vpack.c.b16 %v4378, %v4376
      %v4429 = vpack.c.b16 %v4381, %v4379
      %v4430 = vpack.c.b16 %v4382, %v4380
      %v4431 = vpack.c.b16 %v4385, %v4383
      %v4432 = vpack.c.b16 %v4386, %v4384
      %v4433 = vpack.c.b16 %v4389, %v4387
      %v4434 = vpack.c.b16 %v4390, %v4388
      %v4435 = vpack.c.b16 %v4393, %v4391
      %v4436 = vpack.c.b16 %v4394, %v4392
      %v4437 = vpack.c.b16 %v4397, %v4395
      %v4438 = vpack.c.b16 %v4398, %v4396
      %v4439 = vpack.c.b16 %v4401, %v4399
      %v4440 = vpack.c.b16 %v4402, %v4400
      %v4441 = vpack.c.b16 %v4405, %v4403
      %v4442 = vpack.c.b16 %v4406, %v4404
      %v4443 = vpack.c.b16 %v4409, %v4407
      %v4444 = vpack.c.b16 %v4410, %v4408
      %v4445 = vpack.c.b16 %v4413, %v4411
      %v4446 = vpack.c.b16 %v4414, %v4412
      %4479 = vmatprep.subr.bf16.mxu0 %v4430
      %4480 = vmatpush1.bf16.msra.mxu0 %v4429
      %4481 = vmatprep.subr.bf16.mxu0 %v4428
      %4482 = vmatpush1.bf16.msra.mxu0 %v4427
      %4483 = vmatprep.subr.bf16.mxu0 %v4426
      %4484 = vmatpush1.bf16.msra.mxu0 %v4425
      %4485 = vmatprep.subr.bf16.mxu0 %v4424
      %4486 = vmatpush1.bf16.msra.mxu0 %v4423
      %4487 = vmatprep.subr.bf16.mxu0 %v4422
      %4488 = vmatpush1.bf16.msra.mxu0 %v4421
      %4489 = vmatprep.subr.bf16.mxu0 %v4420
      %4490 = vmatpush1.bf16.msra.mxu0 %v4419
      %4491 = vmatprep.subr.bf16.mxu0 %v4418
      %4492 = vmatpush1.bf16.msra.mxu0 %v4417
      %4493 = vmatprep.subr.bf16.mxu0 %v4416
      %4494 = vmatpush1.bf16.msra.mxu0 %v4415
      %4495 = vmatprep.subr.bf16.mxu0 %v4446
      %4496 = vmatpush2.bf16.msra.mxu0 %v4445
      %4497 = vmatprep.subr.bf16.mxu0 %v4444
      %4498 = vmatpush2.bf16.msra.mxu0 %v4443
      %4499 = vmatprep.subr.bf16.mxu0 %v4442
      %4500 = vmatpush2.bf16.msra.mxu0 %v4441
      %4501 = vmatprep.subr.bf16.mxu0 %v4440
      %4502 = vmatpush2.bf16.msra.mxu0 %v4439
      %4503 = vmatprep.subr.bf16.mxu0 %v4438
      %4504 = vmatpush2.bf16.msra.mxu0 %v4437
      %4505 = vmatprep.subr.bf16.mxu0 %v4436
      %4506 = vmatpush2.bf16.msra.mxu0 %v4435
      %4507 = vmatprep.subr.bf16.mxu0 %v4434
      %4508 = vmatpush2.bf16.msra.mxu0 %v4433
      %4509 = vmatprep.subr.bf16.mxu0 %v4432
      %4510 = vmatpush2.bf16.msra.mxu0 %v4431
      %4511 = vmatprep.mubr.bf16.mxu0 %v4316
      %4512 = vmatmul.mubr.bf16.gmra.mxu0 %v4309
      %v4513 = vpop.f32.mrf.mxu0
      %v4514 = vadd.f32 0.0, %v4513
      %v4515 = vpop.f32.mrf.mxu0
      %v4516 = vadd.f32 0.0, %v4515
      %v4517 = vpop.f32.mrf.mxu0
      %v4518 = vpop.f32.mrf.mxu0
      %4519 = vdwg.mxu0
      %v4520 = vadd.f32 %v4268, %v4514
      %v4521 = vadd.f32 %v4269, %v4516
      %v4522 = vld [vmem:[%s9] sm:$0x3]
      %v4524 = vlaneseq
      %v4525 = vshrl.u32 %v4524, 7
      %v4526 = vsub.s32 0, %v4525
      %v4527 = vrot.slane %v4522, %v4526
      %v4528 = vlaneseq
      %v4529 = vshrl.u32 %v4528, 7
      %v4530 = vsub.s32 1, %v4529
      %v4531 = vrot.slane %v4522, %v4530
      %v4534 = vadd.f32 %v4520, %v4527
      %v4535 = vadd.f32 %v4521, %v4531
      %vm4536 = vcmp.gt.f32.partialorder %v4534, 0.0
      %vm4537 = vcmp.gt.f32.partialorder %v4535, 0.0
      %v4538 = vmul.f32 %v4534, 0.01
      %v4539 = vmul.f32 %v4535, 0.01
      %v4540 = vsel %vm4536, %v4534, %v4538
      %v4541 = vsel %vm4537, %v4535, %v4539
      %vm4542 = vcmp.lt.s32.totalorder %v416, 1
      %vm4543 = vmand %vm4542, %vm442
      %v4544 = vsel %vm4543, 1.0, 0.0
      %vm4545 = vcmask 15360
      %v4546 = vsel %vm4545, %v436, 0
      %vm4548 = vcmask 1041408
      %v4550 = vsel %vm4548, %v4540, 0
      %v4553 = vsel %vm4548, %v4541, 0
      %4555 = vmatprep.subr.mxu0 0.0
      %4556 = vmatpush1.msra.mxu0 0.0
      %4557 = vmatprep.subr.mxu0 0.0
      %4558 = vmatpush1.msra.mxu0 0.0
      %4559 = vmatprep.subr.mxu0 0.0
      %4560 = vmatpush1.msra.mxu0 0.0
      %4561 = vmatprep.subr.mxu0 0.0
      %4562 = vmatpush1.msra.mxu0 0.0
      %4563 = vmatprep.subr.mxu0 0.0
      %4564 = vmatpush1.msra.mxu0 0.0
      %4565 = vmatprep.subr.mxu0 0.0
      %4566 = vmatpush1.msra.mxu0 0.0
      %4567 = vmatprep.subr.mxu0 0.0
      %4568 = vmatpush1.msra.mxu0 0.0
      %4569 = vmatprep.subr.mxu0 0.0
      %4570 = vmatpush1.msra.mxu0 0.0
      %4571 = vmatprep.subr.mxu0 0.0
      %4572 = vmatpush1.msra.mxu0 0.0
      %4573 = vmatprep.subr.mxu0 0.0
      %4574 = vmatpush1.msra.mxu0 0.0
      %4575 = vmatprep.subr.mxu0 0.0
      %4576 = vmatpush1.msra.mxu0 0.0
      %4577 = vmatprep.subr.mxu0 0.0
      %4578 = vmatpush1.msra.mxu0 0.0
      %4579 = vmatprep.subr.mxu0 0.0
      %4580 = vmatpush1.msra.mxu0 0.0
      %4581 = vmatprep.subr.mxu0 0.0
      %4582 = vmatpush1.msra.mxu0 0.0
      %4583 = vmatprep.subr.mxu0 0.0
      %4584 = vmatpush1.msra.mxu0 0.0
      %4585 = vmatprep.subr.mxu0 %v4553
      %4586 = vmatpush1.msra.mxu0 %v4550
      %4587 = vmatprep.subr.mxu0 0.0
      %4588 = vmatpush2.msra.mxu0 0.0
      %4589 = vmatprep.subr.mxu0 0.0
      %4590 = vmatpush2.msra.mxu0 0.0
      %4591 = vmatprep.subr.mxu0 0.0
      %4592 = vmatpush2.msra.mxu0 0.0
      %4593 = vmatprep.subr.mxu0 0.0
      %4594 = vmatpush2.msra.mxu0 0.0
      %4595 = vmatprep.subr.mxu0 0.0
      %4596 = vmatpush2.msra.mxu0 0.0
      %4597 = vmatprep.subr.mxu0 0.0
      %4598 = vmatpush2.msra.mxu0 0.0
      %4599 = vmatprep.subr.mxu0 0.0
      %4600 = vmatpush2.msra.mxu0 0.0
      %4601 = vmatprep.subr.mxu0 0.0
      %4602 = vmatpush2.msra.mxu0 0.0
      %4603 = vmatprep.subr.mxu0 0.0
      %4604 = vmatpush2.msra.mxu0 0.0
      %4605 = vmatprep.subr.mxu0 0.0
      %4606 = vmatpush2.msra.mxu0 0.0
      %4607 = vmatprep.subr.mxu0 0.0
      %4608 = vmatpush2.msra.mxu0 0.0
      %4609 = vmatprep.subr.mxu0 0.0
      %4610 = vmatpush2.msra.mxu0 0.0
      %4611 = vmatprep.subr.mxu0 0.0
      %4612 = vmatpush2.msra.mxu0 0.0
      %4613 = vmatprep.subr.mxu0 0.0
      %4614 = vmatpush2.msra.mxu0 0.0
      %4615 = vmatprep.subr.mxu0 0.0
      %4616 = vmatpush2.msra.mxu0 0.0
      %4617 = vmatprep.subr.mxu0 0.0
      %4618 = vmatpush2.msra.mxu0 0.0
      %4619 = vmatprep.mubr.f32.mxu0 0.0
      %4620 = vmatmul.mubr.f32.gmra.mxu0 %v4546
      %v4621 = vpop.f32.mrf.mxu0
      %v4622 = vadd.f32 0.0, %v4621
      %v4623 = vpop.f32.mrf.mxu0
      %v4624 = vadd.f32 0.0, %v4623
      %4625 = vdwg.mxu0
      %v4627 = vsel %vm4545, %v4544, 0
      %4629 = vmatprep.subr.mxu0 0.0
      %4630 = vmatpush1.msra.mxu0 0.0
      %4631 = vmatprep.subr.mxu0 0.0
      %4632 = vmatpush1.msra.mxu0 0.0
      %4633 = vmatprep.subr.mxu0 0.0
      %4634 = vmatpush1.msra.mxu0 0.0
      %4635 = vmatprep.subr.mxu0 0.0
      %4636 = vmatpush1.msra.mxu0 0.0
      %4637 = vmatprep.subr.mxu0 0.0
      %4638 = vmatpush1.msra.mxu0 0.0
      %4639 = vmatprep.subr.mxu0 0.0
      %4640 = vmatpush1.msra.mxu0 0.0
      %4641 = vmatprep.subr.mxu0 0.0
      %4642 = vmatpush1.msra.mxu0 0.0
      %4643 = vmatprep.subr.mxu0 0.0
      %4644 = vmatpush1.msra.mxu0 0.0
      %4645 = vmatprep.subr.mxu0 0.0
      %4646 = vmatpush1.msra.mxu0 0.0
      %4647 = vmatprep.subr.mxu0 0.0
      %4648 = vmatpush1.msra.mxu0 0.0
      %4649 = vmatprep.subr.mxu0 0.0
      %4650 = vmatpush1.msra.mxu0 0.0
      %4651 = vmatprep.subr.mxu0 0.0
      %4652 = vmatpush1.msra.mxu0 0.0
      %4653 = vmatprep.subr.mxu0 0.0
      %4654 = vmatpush1.msra.mxu0 0.0
      %4655 = vmatprep.subr.mxu0 0.0
      %4656 = vmatpush1.msra.mxu0 0.0
      %4657 = vmatprep.subr.mxu0 0.0
      %4658 = vmatpush1.msra.mxu0 0.0
      %4659 = vmatprep.subr.mxu0 %v4553
      %4660 = vmatpush1.msra.mxu0 %v4550
      %4661 = vmatprep.subr.mxu0 0.0
      %4662 = vmatpush2.msra.mxu0 0.0
      %4663 = vmatprep.subr.mxu0 0.0
      %4664 = vmatpush2.msra.mxu0 0.0
      %4665 = vmatprep.subr.mxu0 0.0
      %4666 = vmatpush2.msra.mxu0 0.0
      %4667 = vmatprep.subr.mxu0 0.0
      %4668 = vmatpush2.msra.mxu0 0.0
      %4669 = vmatprep.subr.mxu0 0.0
      %4670 = vmatpush2.msra.mxu0 0.0
      %4671 = vmatprep.subr.mxu0 0.0
      %4672 = vmatpush2.msra.mxu0 0.0
      %4673 = vmatprep.subr.mxu0 0.0
      %4674 = vmatpush2.msra.mxu0 0.0
      %4675 = vmatprep.subr.mxu0 0.0
      %4676 = vmatpush2.msra.mxu0 0.0
      %4677 = vmatprep.subr.mxu0 0.0
      %4678 = vmatpush2.msra.mxu0 0.0
      %4679 = vmatprep.subr.mxu0 0.0
      %4680 = vmatpush2.msra.mxu0 0.0
      %4681 = vmatprep.subr.mxu0 0.0
      %4682 = vmatpush2.msra.mxu0 0.0
      %4683 = vmatprep.subr.mxu0 0.0
      %4684 = vmatpush2.msra.mxu0 0.0
      %4685 = vmatprep.subr.mxu0 0.0
      %4686 = vmatpush2.msra.mxu0 0.0
      %4687 = vmatprep.subr.mxu0 0.0
      %4688 = vmatpush2.msra.mxu0 0.0
      %4689 = vmatprep.subr.mxu0 0.0
      %4690 = vmatpush2.msra.mxu0 0.0
      %4691 = vmatprep.subr.mxu0 0.0
      %4692 = vmatpush2.msra.mxu0 0.0
      %4693 = vmatprep.mubr.f32.mxu0 0.0
      %4694 = vmatmul.mubr.f32.gmra.mxu0 %v4627
      %v4695 = vpop.f32.mrf.mxu0
      %v4696 = vadd.f32 0.0, %v4695
      %v4697 = vpop.f32.mrf.mxu0
      %v4698 = vadd.f32 0.0, %v4697
      %4699 = vdwg.mxu0
      %v4700 = vpack.c.bf16 %v4622, %v4622
      %v4701 = vpack.c.bf16 %v4624, %v4624
      %v4702 = vld [vmem:[%s5] sm:$0xff]
      %v4703 = vld [vmem:[%s5 + $0x8] sm:$0xff]
      %v4704 = vld [vmem:[%s5 + $0x10] sm:$0xff]
      %v4705 = vld [vmem:[%s5 + $0x18] sm:$0xff]
      %v4706 = vld [vmem:[%s5 + $0x20] sm:$0xff]
      %v4707 = vld [vmem:[%s5 + $0x28] sm:$0xff]
      %v4708 = vld [vmem:[%s5 + $0x30] sm:$0xff]
      %v4709 = vld [vmem:[%s5 + $0x38] sm:$0xff]
      %v4710 = vld [vmem:[%s5 + $0x40] sm:$0xff]
      %v4711 = vld [vmem:[%s5 + $0x48] sm:$0xff]
      %v4712 = vld [vmem:[%s5 + $0x50] sm:$0xff]
      %v4713 = vld [vmem:[%s5 + $0x58] sm:$0xff]
      %v4714 = vld [vmem:[%s5 + $0x60] sm:$0xff]
      %v4715 = vld [vmem:[%s5 + $0x68] sm:$0xff]
      %v4716 = vld [vmem:[%s5 + $0x70] sm:$0xff]
      %v4717 = vld [vmem:[%s5 + $0x78] sm:$0xff]
      %v4718 = vld [vmem:[%s5 + $0x80] sm:$0xff]
      %v4719 = vld [vmem:[%s5 + $0x88] sm:$0xff]
      %v4720 = vld [vmem:[%s5 + $0x90] sm:$0xff]
      %v4721 = vld [vmem:[%s5 + $0x98] sm:$0xff]
      %v4722 = vld [vmem:[%s5 + $0xa0] sm:$0xff]
      %v4723 = vld [vmem:[%s5 + $0xa8] sm:$0xff]
      %v4724 = vld [vmem:[%s5 + $0xb0] sm:$0xff]
      %v4725 = vld [vmem:[%s5 + $0xb8] sm:$0xff]
      %v4726 = vld [vmem:[%s5 + $0xc0] sm:$0xff]
      %v4727 = vld [vmem:[%s5 + $0xc8] sm:$0xff]
      %v4728 = vld [vmem:[%s5 + $0xd0] sm:$0xff]
      %v4729 = vld [vmem:[%s5 + $0xd8] sm:$0xff]
      %v4730 = vld [vmem:[%s5 + $0xe0] sm:$0xff]
      %v4731 = vld [vmem:[%s5 + $0xe8] sm:$0xff]
      %v4732 = vld [vmem:[%s5 + $0xf0] sm:$0xff]
      %v4733 = vld [vmem:[%s5 + $0xf8] sm:$0xff]
      %v4734 = vpack.c.bf16 %v4696, %v4696
      %v4735 = vpack.c.bf16 %v4698, %v4698
      %s4736 = scalar_lea.vmem %s5, 256
      %v4737 = vld [vmem:[%s4736] sm:$0xff]
      %v4738 = vld [vmem:[%s4736 + $0x8] sm:$0xff]
      %v4739 = vld [vmem:[%s4736 + $0x10] sm:$0xff]
      %v4740 = vld [vmem:[%s4736 + $0x18] sm:$0xff]
      %v4741 = vld [vmem:[%s4736 + $0x20] sm:$0xff]
      %v4742 = vld [vmem:[%s4736 + $0x28] sm:$0xff]
      %v4743 = vld [vmem:[%s4736 + $0x30] sm:$0xff]
      %v4744 = vld [vmem:[%s4736 + $0x38] sm:$0xff]
      %v4745 = vld [vmem:[%s4736 + $0x40] sm:$0xff]
      %v4746 = vld [vmem:[%s4736 + $0x48] sm:$0xff]
      %v4747 = vld [vmem:[%s4736 + $0x50] sm:$0xff]
      %v4748 = vld [vmem:[%s4736 + $0x58] sm:$0xff]
      %v4749 = vld [vmem:[%s4736 + $0x60] sm:$0xff]
      %v4750 = vld [vmem:[%s4736 + $0x68] sm:$0xff]
      %v4751 = vld [vmem:[%s4736 + $0x70] sm:$0xff]
      %v4752 = vld [vmem:[%s4736 + $0x78] sm:$0xff]
      %v4753 = vld [vmem:[%s4736 + $0x80] sm:$0xff]
      %v4754 = vld [vmem:[%s4736 + $0x88] sm:$0xff]
      %v4755 = vld [vmem:[%s4736 + $0x90] sm:$0xff]
      %v4756 = vld [vmem:[%s4736 + $0x98] sm:$0xff]
      %v4757 = vld [vmem:[%s4736 + $0xa0] sm:$0xff]
      %v4758 = vld [vmem:[%s4736 + $0xa8] sm:$0xff]
      %v4759 = vld [vmem:[%s4736 + $0xb0] sm:$0xff]
      %v4760 = vld [vmem:[%s4736 + $0xb8] sm:$0xff]
      %v4761 = vld [vmem:[%s4736 + $0xc0] sm:$0xff]
      %v4762 = vld [vmem:[%s4736 + $0xc8] sm:$0xff]
      %v4763 = vld [vmem:[%s4736 + $0xd0] sm:$0xff]
      %v4764 = vld [vmem:[%s4736 + $0xd8] sm:$0xff]
      %v4765 = vld [vmem:[%s4736 + $0xe0] sm:$0xff]
      %v4766 = vld [vmem:[%s4736 + $0xe8] sm:$0xff]
      %v4767 = vld [vmem:[%s4736 + $0xf0] sm:$0xff]
      %v4768 = vld [vmem:[%s4736 + $0xf8] sm:$0xff]
      %v4801 = vunpack.c.l.b16 %v4737
      %v4802 = vunpack.c.h.b16 %v4737
      %v4803 = vunpack.c.l.b16 %v4738
      %v4804 = vunpack.c.h.b16 %v4738
      %v4805 = vunpack.c.l.b16 %v4739
      %v4806 = vunpack.c.h.b16 %v4739
      %v4807 = vunpack.c.l.b16 %v4740
      %v4808 = vunpack.c.h.b16 %v4740
      %v4809 = vunpack.c.l.b16 %v4741
      %v4810 = vunpack.c.h.b16 %v4741
      %v4811 = vunpack.c.l.b16 %v4742
      %v4812 = vunpack.c.h.b16 %v4742
      %v4813 = vunpack.c.l.b16 %v4743
      %v4814 = vunpack.c.h.b16 %v4743
      %v4815 = vunpack.c.l.b16 %v4744
      %v4816 = vunpack.c.h.b16 %v4744
      %v4817 = vunpack.c.l.b16 %v4745
      %v4818 = vunpack.c.h.b16 %v4745
      %v4819 = vunpack.c.l.b16 %v4746
      %v4820 = vunpack.c.h.b16 %v4746
      %v4821 = vunpack.c.l.b16 %v4747
      %v4822 = vunpack.c.h.b16 %v4747
      %v4823 = vunpack.c.l.b16 %v4748
      %v4824 = vunpack.c.h.b16 %v4748
      %v4825 = vunpack.c.l.b16 %v4749
      %v4826 = vunpack.c.h.b16 %v4749
      %v4827 = vunpack.c.l.b16 %v4750
      %v4828 = vunpack.c.h.b16 %v4750
      %v4829 = vunpack.c.l.b16 %v4751
      %v4830 = vunpack.c.h.b16 %v4751
      %v4831 = vunpack.c.l.b16 %v4752
      %v4832 = vunpack.c.h.b16 %v4752
      %v4833 = vunpack.c.l.b16 %v4753
      %v4834 = vunpack.c.h.b16 %v4753
      %v4835 = vunpack.c.l.b16 %v4754
      %v4836 = vunpack.c.h.b16 %v4754
      %v4837 = vunpack.c.l.b16 %v4755
      %v4838 = vunpack.c.h.b16 %v4755
      %v4839 = vunpack.c.l.b16 %v4756
      %v4840 = vunpack.c.h.b16 %v4756
      %v4841 = vunpack.c.l.b16 %v4757
      %v4842 = vunpack.c.h.b16 %v4757
      %v4843 = vunpack.c.l.b16 %v4758
      %v4844 = vunpack.c.h.b16 %v4758
      %v4845 = vunpack.c.l.b16 %v4759
      %v4846 = vunpack.c.h.b16 %v4759
      %v4847 = vunpack.c.l.b16 %v4760
      %v4848 = vunpack.c.h.b16 %v4760
      %v4849 = vunpack.c.l.b16 %v4761
      %v4850 = vunpack.c.h.b16 %v4761
      %v4851 = vunpack.c.l.b16 %v4762
      %v4852 = vunpack.c.h.b16 %v4762
      %v4853 = vunpack.c.l.b16 %v4763
      %v4854 = vunpack.c.h.b16 %v4763
      %v4855 = vunpack.c.l.b16 %v4764
      %v4856 = vunpack.c.h.b16 %v4764
      %v4857 = vunpack.c.l.b16 %v4765
      %v4858 = vunpack.c.h.b16 %v4765
      %v4859 = vunpack.c.l.b16 %v4766
      %v4860 = vunpack.c.h.b16 %v4766
      %v4861 = vunpack.c.l.b16 %v4767
      %v4862 = vunpack.c.h.b16 %v4767
      %v4863 = vunpack.c.l.b16 %v4768
      %v4864 = vunpack.c.h.b16 %v4768
      %v4865 = vpack.c.b16 %v4803, %v4801
      %v4866 = vpack.c.b16 %v4804, %v4802
      %v4867 = vpack.c.b16 %v4807, %v4805
      %v4868 = vpack.c.b16 %v4808, %v4806
      %v4869 = vpack.c.b16 %v4811, %v4809
      %v4870 = vpack.c.b16 %v4812, %v4810
      %v4871 = vpack.c.b16 %v4815, %v4813
      %v4872 = vpack.c.b16 %v4816, %v4814
      %v4873 = vpack.c.b16 %v4819, %v4817
      %v4874 = vpack.c.b16 %v4820, %v4818
      %v4875 = vpack.c.b16 %v4823, %v4821
      %v4876 = vpack.c.b16 %v4824, %v4822
      %v4877 = vpack.c.b16 %v4827, %v4825
      %v4878 = vpack.c.b16 %v4828, %v4826
      %v4879 = vpack.c.b16 %v4831, %v4829
      %v4880 = vpack.c.b16 %v4832, %v4830
      %v4881 = vpack.c.b16 %v4835, %v4833
      %v4882 = vpack.c.b16 %v4836, %v4834
      %v4883 = vpack.c.b16 %v4839, %v4837
      %v4884 = vpack.c.b16 %v4840, %v4838
      %v4885 = vpack.c.b16 %v4843, %v4841
      %v4886 = vpack.c.b16 %v4844, %v4842
      %v4887 = vpack.c.b16 %v4847, %v4845
      %v4888 = vpack.c.b16 %v4848, %v4846
      %v4889 = vpack.c.b16 %v4851, %v4849
      %v4890 = vpack.c.b16 %v4852, %v4850
      %v4891 = vpack.c.b16 %v4855, %v4853
      %v4892 = vpack.c.b16 %v4856, %v4854
      %v4893 = vpack.c.b16 %v4859, %v4857
      %v4894 = vpack.c.b16 %v4860, %v4858
      %v4895 = vpack.c.b16 %v4863, %v4861
      %v4896 = vpack.c.b16 %v4864, %v4862
      %4929 = vmatprep.subr.bf16.mxu0 %v4880
      %4930 = vmatpush1.bf16.msra.mxu0 %v4879
      %4931 = vmatprep.subr.bf16.mxu0 %v4878
      %4932 = vmatpush1.bf16.msra.mxu0 %v4877
      %4933 = vmatprep.subr.bf16.mxu0 %v4876
      %4934 = vmatpush1.bf16.msra.mxu0 %v4875
      %4935 = vmatprep.subr.bf16.mxu0 %v4874
      %4936 = vmatpush1.bf16.msra.mxu0 %v4873
      %4937 = vmatprep.subr.bf16.mxu0 %v4872
      %4938 = vmatpush1.bf16.msra.mxu0 %v4871
      %4939 = vmatprep.subr.bf16.mxu0 %v4870
      %4940 = vmatpush1.bf16.msra.mxu0 %v4869
      %4941 = vmatprep.subr.bf16.mxu0 %v4868
      %4942 = vmatpush1.bf16.msra.mxu0 %v4867
      %4943 = vmatprep.subr.bf16.mxu0 %v4866
      %4944 = vmatpush1.bf16.msra.mxu0 %v4865
      %4945 = vmatprep.subr.bf16.mxu0 %v4896
      %4946 = vmatpush2.bf16.msra.mxu0 %v4895
      %4947 = vmatprep.subr.bf16.mxu0 %v4894
      %4948 = vmatpush2.bf16.msra.mxu0 %v4893
      %4949 = vmatprep.subr.bf16.mxu0 %v4892
      %4950 = vmatpush2.bf16.msra.mxu0 %v4891
      %4951 = vmatprep.subr.bf16.mxu0 %v4890
      %4952 = vmatpush2.bf16.msra.mxu0 %v4889
      %4953 = vmatprep.subr.bf16.mxu0 %v4888
      %4954 = vmatpush2.bf16.msra.mxu0 %v4887
      %4955 = vmatprep.subr.bf16.mxu0 %v4886
      %4956 = vmatpush2.bf16.msra.mxu0 %v4885
      %4957 = vmatprep.subr.bf16.mxu0 %v4884
      %4958 = vmatpush2.bf16.msra.mxu0 %v4883
      %4959 = vmatprep.subr.bf16.mxu0 %v4882
      %4960 = vmatpush2.bf16.msra.mxu0 %v4881
      %4961 = vmatprep.mubr.bf16.mxu0 %v4735
      %4962 = vmatmul.mubr.bf16.gmra.mxu0 %v4734
      %v4963 = vpop.f32.mrf.mxu0
      %v4964 = vadd.f32 0.0, %v4963
      %v4965 = vpop.f32.mrf.mxu0
      %v4966 = vadd.f32 0.0, %v4965
      %v4967 = vpop.f32.mrf.mxu0
      %v4968 = vpop.f32.mrf.mxu0
      %4969 = vdwg.mxu0
      %v5002 = vunpack.c.l.b16 %v4702
      %v5003 = vunpack.c.h.b16 %v4702
      %v5004 = vunpack.c.l.b16 %v4703
      %v5005 = vunpack.c.h.b16 %v4703
      %v5006 = vunpack.c.l.b16 %v4704
      %v5007 = vunpack.c.h.b16 %v4704
      %v5008 = vunpack.c.l.b16 %v4705
      %v5009 = vunpack.c.h.b16 %v4705
      %v5010 = vunpack.c.l.b16 %v4706
      %v5011 = vunpack.c.h.b16 %v4706
      %v5012 = vunpack.c.l.b16 %v4707
      %v5013 = vunpack.c.h.b16 %v4707
      %v5014 = vunpack.c.l.b16 %v4708
      %v5015 = vunpack.c.h.b16 %v4708
      %v5016 = vunpack.c.l.b16 %v4709
      %v5017 = vunpack.c.h.b16 %v4709
      %v5018 = vunpack.c.l.b16 %v4710
      %v5019 = vunpack.c.h.b16 %v4710
      %v5020 = vunpack.c.l.b16 %v4711
      %v5021 = vunpack.c.h.b16 %v4711
      %v5022 = vunpack.c.l.b16 %v4712
      %v5023 = vunpack.c.h.b16 %v4712
      %v5024 = vunpack.c.l.b16 %v4713
      %v5025 = vunpack.c.h.b16 %v4713
      %v5026 = vunpack.c.l.b16 %v4714
      %v5027 = vunpack.c.h.b16 %v4714
      %v5028 = vunpack.c.l.b16 %v4715
      %v5029 = vunpack.c.h.b16 %v4715
      %v5030 = vunpack.c.l.b16 %v4716
      %v5031 = vunpack.c.h.b16 %v4716
      %v5032 = vunpack.c.l.b16 %v4717
      %v5033 = vunpack.c.h.b16 %v4717
      %v5034 = vunpack.c.l.b16 %v4718
      %v5035 = vunpack.c.h.b16 %v4718
      %v5036 = vunpack.c.l.b16 %v4719
      %v5037 = vunpack.c.h.b16 %v4719
      %v5038 = vunpack.c.l.b16 %v4720
      %v5039 = vunpack.c.h.b16 %v4720
      %v5040 = vunpack.c.l.b16 %v4721
      %v5041 = vunpack.c.h.b16 %v4721
      %v5042 = vunpack.c.l.b16 %v4722
      %v5043 = vunpack.c.h.b16 %v4722
      %v5044 = vunpack.c.l.b16 %v4723
      %v5045 = vunpack.c.h.b16 %v4723
      %v5046 = vunpack.c.l.b16 %v4724
      %v5047 = vunpack.c.h.b16 %v4724
      %v5048 = vunpack.c.l.b16 %v4725
      %v5049 = vunpack.c.h.b16 %v4725
      %v5050 = vunpack.c.l.b16 %v4726
      %v5051 = vunpack.c.h.b16 %v4726
      %v5052 = vunpack.c.l.b16 %v4727
      %v5053 = vunpack.c.h.b16 %v4727
      %v5054 = vunpack.c.l.b16 %v4728
      %v5055 = vunpack.c.h.b16 %v4728
      %v5056 = vunpack.c.l.b16 %v4729
      %v5057 = vunpack.c.h.b16 %v4729
      %v5058 = vunpack.c.l.b16 %v4730
      %v5059 = vunpack.c.h.b16 %v4730
      %v5060 = vunpack.c.l.b16 %v4731
      %v5061 = vunpack.c.h.b16 %v4731
      %v5062 = vunpack.c.l.b16 %v4732
      %v5063 = vunpack.c.h.b16 %v4732
      %v5064 = vunpack.c.l.b16 %v4733
      %v5065 = vunpack.c.h.b16 %v4733
      %v5066 = vpack.c.b16 %v5004, %v5002
      %v5067 = vpack.c.b16 %v5005, %v5003
      %v5068 = vpack.c.b16 %v5008, %v5006
      %v5069 = vpack.c.b16 %v5009, %v5007
      %v5070 = vpack.c.b16 %v5012, %v5010
      %v5071 = vpack.c.b16 %v5013, %v5011
      %v5072 = vpack.c.b16 %v5016, %v5014
      %v5073 = vpack.c.b16 %v5017, %v5015
      %v5074 = vpack.c.b16 %v5020, %v5018
      %v5075 = vpack.c.b16 %v5021, %v5019
      %v5076 = vpack.c.b16 %v5024, %v5022
      %v5077 = vpack.c.b16 %v5025, %v5023
      %v5078 = vpack.c.b16 %v5028, %v5026
      %v5079 = vpack.c.b16 %v5029, %v5027
      %v5080 = vpack.c.b16 %v5032, %v5030
      %v5081 = vpack.c.b16 %v5033, %v5031
      %v5082 = vpack.c.b16 %v5036, %v5034
      %v5083 = vpack.c.b16 %v5037, %v5035
      %v5084 = vpack.c.b16 %v5040, %v5038
      %v5085 = vpack.c.b16 %v5041, %v5039
      %v5086 = vpack.c.b16 %v5044, %v5042
      %v5087 = vpack.c.b16 %v5045, %v5043
      %v5088 = vpack.c.b16 %v5048, %v5046
      %v5089 = vpack.c.b16 %v5049, %v5047
      %v5090 = vpack.c.b16 %v5052, %v5050
      %v5091 = vpack.c.b16 %v5053, %v5051
      %v5092 = vpack.c.b16 %v5056, %v5054
      %v5093 = vpack.c.b16 %v5057, %v5055
      %v5094 = vpack.c.b16 %v5060, %v5058
      %v5095 = vpack.c.b16 %v5061, %v5059
      %v5096 = vpack.c.b16 %v5064, %v5062
      %v5097 = vpack.c.b16 %v5065, %v5063
      %5130 = vmatprep.subr.bf16.mxu0 %v5081
      %5131 = vmatpush1.bf16.msra.mxu0 %v5080
      %5132 = vmatprep.subr.bf16.mxu0 %v5079
      %5133 = vmatpush1.bf16.msra.mxu0 %v5078
      %5134 = vmatprep.subr.bf16.mxu0 %v5077
      %5135 = vmatpush1.bf16.msra.mxu0 %v5076
      %5136 = vmatprep.subr.bf16.mxu0 %v5075
      %5137 = vmatpush1.bf16.msra.mxu0 %v5074
      %5138 = vmatprep.subr.bf16.mxu0 %v5073
      %5139 = vmatpush1.bf16.msra.mxu0 %v5072
      %5140 = vmatprep.subr.bf16.mxu0 %v5071
      %5141 = vmatpush1.bf16.msra.mxu0 %v5070
      %5142 = vmatprep.subr.bf16.mxu0 %v5069
      %5143 = vmatpush1.bf16.msra.mxu0 %v5068
      %5144 = vmatprep.subr.bf16.mxu0 %v5067
      %5145 = vmatpush1.bf16.msra.mxu0 %v5066
      %5146 = vmatprep.subr.bf16.mxu0 %v5097
      %5147 = vmatpush2.bf16.msra.mxu0 %v5096
      %5148 = vmatprep.subr.bf16.mxu0 %v5095
      %5149 = vmatpush2.bf16.msra.mxu0 %v5094
      %5150 = vmatprep.subr.bf16.mxu0 %v5093
      %5151 = vmatpush2.bf16.msra.mxu0 %v5092
      %5152 = vmatprep.subr.bf16.mxu0 %v5091
      %5153 = vmatpush2.bf16.msra.mxu0 %v5090
      %5154 = vmatprep.subr.bf16.mxu0 %v5089
      %5155 = vmatpush2.bf16.msra.mxu0 %v5088
      %5156 = vmatprep.subr.bf16.mxu0 %v5087
      %5157 = vmatpush2.bf16.msra.mxu0 %v5086
      %5158 = vmatprep.subr.bf16.mxu0 %v5085
      %5159 = vmatpush2.bf16.msra.mxu0 %v5084
      %5160 = vmatprep.subr.bf16.mxu0 %v5083
      %5161 = vmatpush2.bf16.msra.mxu0 %v5082
      %5162 = vmatprep.mubr.bf16.mxu0 %v4701
      %5163 = vmatmul.mubr.bf16.gmra.mxu0 %v4700
      %v5164 = vpop.f32.mrf.mxu0
      %v5165 = vadd.f32 %v4964, %v5164
      %v5166 = vpop.f32.mrf.mxu0
      %v5167 = vadd.f32 %v4966, %v5166
      %v5168 = vpop.f32.mrf.mxu0
      %v5169 = vpop.f32.mrf.mxu0
      %5170 = vdwg.mxu0
      %s5171 = scalar_lea.vmem %s5, 512
      %v5172 = vld [vmem:[%s5171] sm:$0xff]
      %v5173 = vld [vmem:[%s5171 + $0x8] sm:$0xff]
      %v5174 = vld [vmem:[%s5171 + $0x10] sm:$0xff]
      %v5175 = vld [vmem:[%s5171 + $0x18] sm:$0xff]
      %v5176 = vld [vmem:[%s5171 + $0x20] sm:$0xff]
      %v5177 = vld [vmem:[%s5171 + $0x28] sm:$0xff]
      %v5178 = vld [vmem:[%s5171 + $0x30] sm:$0xff]
      %v5179 = vld [vmem:[%s5171 + $0x38] sm:$0xff]
      %v5180 = vld [vmem:[%s5171 + $0x40] sm:$0xff]
      %v5181 = vld [vmem:[%s5171 + $0x48] sm:$0xff]
      %v5182 = vld [vmem:[%s5171 + $0x50] sm:$0xff]
      %v5183 = vld [vmem:[%s5171 + $0x58] sm:$0xff]
      %v5184 = vld [vmem:[%s5171 + $0x60] sm:$0xff]
      %v5185 = vld [vmem:[%s5171 + $0x68] sm:$0xff]
      %v5186 = vld [vmem:[%s5171 + $0x70] sm:$0xff]
      %v5187 = vld [vmem:[%s5171 + $0x78] sm:$0xff]
      %v5188 = vld [vmem:[%s5171 + $0x80] sm:$0xff]
      %v5189 = vld [vmem:[%s5171 + $0x88] sm:$0xff]
      %v5190 = vld [vmem:[%s5171 + $0x90] sm:$0xff]
      %v5191 = vld [vmem:[%s5171 + $0x98] sm:$0xff]
      %v5192 = vld [vmem:[%s5171 + $0xa0] sm:$0xff]
      %v5193 = vld [vmem:[%s5171 + $0xa8] sm:$0xff]
      %v5194 = vld [vmem:[%s5171 + $0xb0] sm:$0xff]
      %v5195 = vld [vmem:[%s5171 + $0xb8] sm:$0xff]
      %v5196 = vld [vmem:[%s5171 + $0xc0] sm:$0xff]
      %v5197 = vld [vmem:[%s5171 + $0xc8] sm:$0xff]
      %v5198 = vld [vmem:[%s5171 + $0xd0] sm:$0xff]
      %v5199 = vld [vmem:[%s5171 + $0xd8] sm:$0xff]
      %v5200 = vld [vmem:[%s5171 + $0xe0] sm:$0xff]
      %v5201 = vld [vmem:[%s5171 + $0xe8] sm:$0xff]
      %v5202 = vld [vmem:[%s5171 + $0xf0] sm:$0xff]
      %v5203 = vld [vmem:[%s5171 + $0xf8] sm:$0xff]
      %v5205 = vshrl.u32 %v4700, 16
      %v5208 = vshrl.u32 %v4701, 16
      %v5244 = vunpack.c.l.b16 %v5172
      %v5245 = vunpack.c.h.b16 %v5172
      %v5246 = vunpack.c.l.b16 %v5173
      %v5247 = vunpack.c.h.b16 %v5173
      %v5248 = vunpack.c.l.b16 %v5174
      %v5249 = vunpack.c.h.b16 %v5174
      %v5250 = vunpack.c.l.b16 %v5175
      %v5251 = vunpack.c.h.b16 %v5175
      %v5252 = vunpack.c.l.b16 %v5176
      %v5253 = vunpack.c.h.b16 %v5176
      %v5254 = vunpack.c.l.b16 %v5177
      %v5255 = vunpack.c.h.b16 %v5177
      %v5256 = vunpack.c.l.b16 %v5178
      %v5257 = vunpack.c.h.b16 %v5178
      %v5258 = vunpack.c.l.b16 %v5179
      %v5259 = vunpack.c.h.b16 %v5179
      %v5260 = vunpack.c.l.b16 %v5180
      %v5261 = vunpack.c.h.b16 %v5180
      %v5262 = vunpack.c.l.b16 %v5181
      %v5263 = vunpack.c.h.b16 %v5181
      %v5264 = vunpack.c.l.b16 %v5182
      %v5265 = vunpack.c.h.b16 %v5182
      %v5266 = vunpack.c.l.b16 %v5183
      %v5267 = vunpack.c.h.b16 %v5183
      %v5268 = vunpack.c.l.b16 %v5184
      %v5269 = vunpack.c.h.b16 %v5184
      %v5270 = vunpack.c.l.b16 %v5185
      %v5271 = vunpack.c.h.b16 %v5185
      %v5272 = vunpack.c.l.b16 %v5186
      %v5273 = vunpack.c.h.b16 %v5186
      %v5274 = vunpack.c.l.b16 %v5187
      %v5275 = vunpack.c.h.b16 %v5187
      %v5276 = vunpack.c.l.b16 %v5188
      %v5277 = vunpack.c.h.b16 %v5188
      %v5278 = vunpack.c.l.b16 %v5189
      %v5279 = vunpack.c.h.b16 %v5189
      %v5280 = vunpack.c.l.b16 %v5190
      %v5281 = vunpack.c.h.b16 %v5190
      %v5282 = vunpack.c.l.b16 %v5191
      %v5283 = vunpack.c.h.b16 %v5191
      %v5284 = vunpack.c.l.b16 %v5192
      %v5285 = vunpack.c.h.b16 %v5192
      %v5286 = vunpack.c.l.b16 %v5193
      %v5287 = vunpack.c.h.b16 %v5193
      %v5288 = vunpack.c.l.b16 %v5194
      %v5289 = vunpack.c.h.b16 %v5194
      %v5290 = vunpack.c.l.b16 %v5195
      %v5291 = vunpack.c.h.b16 %v5195
      %v5292 = vunpack.c.l.b16 %v5196
      %v5293 = vunpack.c.h.b16 %v5196
      %v5294 = vunpack.c.l.b16 %v5197
      %v5295 = vunpack.c.h.b16 %v5197
      %v5296 = vunpack.c.l.b16 %v5198
      %v5297 = vunpack.c.h.b16 %v5198
      %v5298 = vunpack.c.l.b16 %v5199
      %v5299 = vunpack.c.h.b16 %v5199
      %v5300 = vunpack.c.l.b16 %v5200
      %v5301 = vunpack.c.h.b16 %v5200
      %v5302 = vunpack.c.l.b16 %v5201
      %v5303 = vunpack.c.h.b16 %v5201
      %v5304 = vunpack.c.l.b16 %v5202
      %v5305 = vunpack.c.h.b16 %v5202
      %v5306 = vunpack.c.l.b16 %v5203
      %v5307 = vunpack.c.h.b16 %v5203
      %v5308 = vpack.c.b16 %v5246, %v5244
      %v5309 = vpack.c.b16 %v5247, %v5245
      %v5310 = vpack.c.b16 %v5250, %v5248
      %v5311 = vpack.c.b16 %v5251, %v5249
      %v5312 = vpack.c.b16 %v5254, %v5252
      %v5313 = vpack.c.b16 %v5255, %v5253
      %v5314 = vpack.c.b16 %v5258, %v5256
      %v5315 = vpack.c.b16 %v5259, %v5257
      %v5316 = vpack.c.b16 %v5262, %v5260
      %v5317 = vpack.c.b16 %v5263, %v5261
      %v5318 = vpack.c.b16 %v5266, %v5264
      %v5319 = vpack.c.b16 %v5267, %v5265
      %v5320 = vpack.c.b16 %v5270, %v5268
      %v5321 = vpack.c.b16 %v5271, %v5269
      %v5322 = vpack.c.b16 %v5274, %v5272
      %v5323 = vpack.c.b16 %v5275, %v5273
      %v5324 = vpack.c.b16 %v5278, %v5276
      %v5325 = vpack.c.b16 %v5279, %v5277
      %v5326 = vpack.c.b16 %v5282, %v5280
      %v5327 = vpack.c.b16 %v5283, %v5281
      %v5328 = vpack.c.b16 %v5286, %v5284
      %v5329 = vpack.c.b16 %v5287, %v5285
      %v5330 = vpack.c.b16 %v5290, %v5288
      %v5331 = vpack.c.b16 %v5291, %v5289
      %v5332 = vpack.c.b16 %v5294, %v5292
      %v5333 = vpack.c.b16 %v5295, %v5293
      %v5334 = vpack.c.b16 %v5298, %v5296
      %v5335 = vpack.c.b16 %v5299, %v5297
      %v5336 = vpack.c.b16 %v5302, %v5300
      %v5337 = vpack.c.b16 %v5303, %v5301
      %v5338 = vpack.c.b16 %v5306, %v5304
      %v5339 = vpack.c.b16 %v5307, %v5305
      %5372 = vmatprep.subr.bf16.mxu0 %v5323
      %5373 = vmatpush1.bf16.msra.mxu0 %v5322
      %5374 = vmatprep.subr.bf16.mxu0 %v5321
      %5375 = vmatpush1.bf16.msra.mxu0 %v5320
      %5376 = vmatprep.subr.bf16.mxu0 %v5319
      %5377 = vmatpush1.bf16.msra.mxu0 %v5318
      %5378 = vmatprep.subr.bf16.mxu0 %v5317
      %5379 = vmatpush1.bf16.msra.mxu0 %v5316
      %5380 = vmatprep.subr.bf16.mxu0 %v5315
      %5381 = vmatpush1.bf16.msra.mxu0 %v5314
      %5382 = vmatprep.subr.bf16.mxu0 %v5313
      %5383 = vmatpush1.bf16.msra.mxu0 %v5312
      %5384 = vmatprep.subr.bf16.mxu0 %v5311
      %5385 = vmatpush1.bf16.msra.mxu0 %v5310
      %5386 = vmatprep.subr.bf16.mxu0 %v5309
      %5387 = vmatpush1.bf16.msra.mxu0 %v5308
      %5388 = vmatprep.subr.bf16.mxu0 %v5339
      %5389 = vmatpush2.bf16.msra.mxu0 %v5338
      %5390 = vmatprep.subr.bf16.mxu0 %v5337
      %5391 = vmatpush2.bf16.msra.mxu0 %v5336
      %5392 = vmatprep.subr.bf16.mxu0 %v5335
      %5393 = vmatpush2.bf16.msra.mxu0 %v5334
      %5394 = vmatprep.subr.bf16.mxu0 %v5333
      %5395 = vmatpush2.bf16.msra.mxu0 %v5332
      %5396 = vmatprep.subr.bf16.mxu0 %v5331
      %5397 = vmatpush2.bf16.msra.mxu0 %v5330
      %5398 = vmatprep.subr.bf16.mxu0 %v5329
      %5399 = vmatpush2.bf16.msra.mxu0 %v5328
      %5400 = vmatprep.subr.bf16.mxu0 %v5327
      %5401 = vmatpush2.bf16.msra.mxu0 %v5326
      %5402 = vmatprep.subr.bf16.mxu0 %v5325
      %5403 = vmatpush2.bf16.msra.mxu0 %v5324
      %5404 = vmatprep.mubr.bf16.mxu0 %v5208
      %5405 = vmatmul.mubr.bf16.gmra.mxu0 %v5205
      %v5406 = vpop.f32.mrf.mxu0
      %v5407 = vadd.f32 0.0, %v5406
      %v5408 = vpop.f32.mrf.mxu0
      %v5409 = vadd.f32 0.0, %v5408
      %v5410 = vpop.f32.mrf.mxu0
      %v5411 = vpop.f32.mrf.mxu0
      %5412 = vdwg.mxu0
      %v5413 = vadd.f32 %v5165, %v5407
      %v5414 = vadd.f32 %v5167, %v5409
      %s5415 = scalar_lea.vmem %s5, 768
      %v5416 = vld [vmem:[%s5415] sm:$0xff]
      %v5417 = vld [vmem:[%s5415 + $0x8] sm:$0xff]
      %v5418 = vld [vmem:[%s5415 + $0x10] sm:$0xff]
      %v5419 = vld [vmem:[%s5415 + $0x18] sm:$0xff]
      %v5420 = vld [vmem:[%s5415 + $0x20] sm:$0xff]
      %v5421 = vld [vmem:[%s5415 + $0x28] sm:$0xff]
      %v5422 = vld [vmem:[%s5415 + $0x30] sm:$0xff]
      %v5423 = vld [vmem:[%s5415 + $0x38] sm:$0xff]
      %v5424 = vld [vmem:[%s5415 + $0x40] sm:$0xff]
      %v5425 = vld [vmem:[%s5415 + $0x48] sm:$0xff]
      %v5426 = vld [vmem:[%s5415 + $0x50] sm:$0xff]
      %v5427 = vld [vmem:[%s5415 + $0x58] sm:$0xff]
      %v5428 = vld [vmem:[%s5415 + $0x60] sm:$0xff]
      %v5429 = vld [vmem:[%s5415 + $0x68] sm:$0xff]
      %v5430 = vld [vmem:[%s5415 + $0x70] sm:$0xff]
      %v5431 = vld [vmem:[%s5415 + $0x78] sm:$0xff]
      %v5432 = vld [vmem:[%s5415 + $0x80] sm:$0xff]
      %v5433 = vld [vmem:[%s5415 + $0x88] sm:$0xff]
      %v5434 = vld [vmem:[%s5415 + $0x90] sm:$0xff]
      %v5435 = vld [vmem:[%s5415 + $0x98] sm:$0xff]
      %v5436 = vld [vmem:[%s5415 + $0xa0] sm:$0xff]
      %v5437 = vld [vmem:[%s5415 + $0xa8] sm:$0xff]
      %v5438 = vld [vmem:[%s5415 + $0xb0] sm:$0xff]
      %v5439 = vld [vmem:[%s5415 + $0xb8] sm:$0xff]
      %v5440 = vld [vmem:[%s5415 + $0xc0] sm:$0xff]
      %v5441 = vld [vmem:[%s5415 + $0xc8] sm:$0xff]
      %v5442 = vld [vmem:[%s5415 + $0xd0] sm:$0xff]
      %v5443 = vld [vmem:[%s5415 + $0xd8] sm:$0xff]
      %v5444 = vld [vmem:[%s5415 + $0xe0] sm:$0xff]
      %v5445 = vld [vmem:[%s5415 + $0xe8] sm:$0xff]
      %v5446 = vld [vmem:[%s5415 + $0xf0] sm:$0xff]
      %v5447 = vld [vmem:[%s5415 + $0xf8] sm:$0xff]
      %v5449 = vshrl.u32 %v4734, 16
      %v5452 = vshrl.u32 %v4735, 16
      %v5488 = vunpack.c.l.b16 %v5416
      %v5489 = vunpack.c.h.b16 %v5416
      %v5490 = vunpack.c.l.b16 %v5417
      %v5491 = vunpack.c.h.b16 %v5417
      %v5492 = vunpack.c.l.b16 %v5418
      %v5493 = vunpack.c.h.b16 %v5418
      %v5494 = vunpack.c.l.b16 %v5419
      %v5495 = vunpack.c.h.b16 %v5419
      %v5496 = vunpack.c.l.b16 %v5420
      %v5497 = vunpack.c.h.b16 %v5420
      %v5498 = vunpack.c.l.b16 %v5421
      %v5499 = vunpack.c.h.b16 %v5421
      %v5500 = vunpack.c.l.b16 %v5422
      %v5501 = vunpack.c.h.b16 %v5422
      %v5502 = vunpack.c.l.b16 %v5423
      %v5503 = vunpack.c.h.b16 %v5423
      %v5504 = vunpack.c.l.b16 %v5424
      %v5505 = vunpack.c.h.b16 %v5424
      %v5506 = vunpack.c.l.b16 %v5425
      %v5507 = vunpack.c.h.b16 %v5425
      %v5508 = vunpack.c.l.b16 %v5426
      %v5509 = vunpack.c.h.b16 %v5426
      %v5510 = vunpack.c.l.b16 %v5427
      %v5511 = vunpack.c.h.b16 %v5427
      %v5512 = vunpack.c.l.b16 %v5428
      %v5513 = vunpack.c.h.b16 %v5428
      %v5514 = vunpack.c.l.b16 %v5429
      %v5515 = vunpack.c.h.b16 %v5429
      %v5516 = vunpack.c.l.b16 %v5430
      %v5517 = vunpack.c.h.b16 %v5430
      %v5518 = vunpack.c.l.b16 %v5431
      %v5519 = vunpack.c.h.b16 %v5431
      %v5520 = vunpack.c.l.b16 %v5432
      %v5521 = vunpack.c.h.b16 %v5432
      %v5522 = vunpack.c.l.b16 %v5433
      %v5523 = vunpack.c.h.b16 %v5433
      %v5524 = vunpack.c.l.b16 %v5434
      %v5525 = vunpack.c.h.b16 %v5434
      %v5526 = vunpack.c.l.b16 %v5435
      %v5527 = vunpack.c.h.b16 %v5435
      %v5528 = vunpack.c.l.b16 %v5436
      %v5529 = vunpack.c.h.b16 %v5436
      %v5530 = vunpack.c.l.b16 %v5437
      %v5531 = vunpack.c.h.b16 %v5437
      %v5532 = vunpack.c.l.b16 %v5438
      %v5533 = vunpack.c.h.b16 %v5438
      %v5534 = vunpack.c.l.b16 %v5439
      %v5535 = vunpack.c.h.b16 %v5439
      %v5536 = vunpack.c.l.b16 %v5440
      %v5537 = vunpack.c.h.b16 %v5440
      %v5538 = vunpack.c.l.b16 %v5441
      %v5539 = vunpack.c.h.b16 %v5441
      %v5540 = vunpack.c.l.b16 %v5442
      %v5541 = vunpack.c.h.b16 %v5442
      %v5542 = vunpack.c.l.b16 %v5443
      %v5543 = vunpack.c.h.b16 %v5443
      %v5544 = vunpack.c.l.b16 %v5444
      %v5545 = vunpack.c.h.b16 %v5444
      %v5546 = vunpack.c.l.b16 %v5445
      %v5547 = vunpack.c.h.b16 %v5445
      %v5548 = vunpack.c.l.b16 %v5446
      %v5549 = vunpack.c.h.b16 %v5446
      %v5550 = vunpack.c.l.b16 %v5447
      %v5551 = vunpack.c.h.b16 %v5447
      %v5552 = vpack.c.b16 %v5490, %v5488
      %v5553 = vpack.c.b16 %v5491, %v5489
      %v5554 = vpack.c.b16 %v5494, %v5492
      %v5555 = vpack.c.b16 %v5495, %v5493
      %v5556 = vpack.c.b16 %v5498, %v5496
      %v5557 = vpack.c.b16 %v5499, %v5497
      %v5558 = vpack.c.b16 %v5502, %v5500
      %v5559 = vpack.c.b16 %v5503, %v5501
      %v5560 = vpack.c.b16 %v5506, %v5504
      %v5561 = vpack.c.b16 %v5507, %v5505
      %v5562 = vpack.c.b16 %v5510, %v5508
      %v5563 = vpack.c.b16 %v5511, %v5509
      %v5564 = vpack.c.b16 %v5514, %v5512
      %v5565 = vpack.c.b16 %v5515, %v5513
      %v5566 = vpack.c.b16 %v5518, %v5516
      %v5567 = vpack.c.b16 %v5519, %v5517
      %v5568 = vpack.c.b16 %v5522, %v5520
      %v5569 = vpack.c.b16 %v5523, %v5521
      %v5570 = vpack.c.b16 %v5526, %v5524
      %v5571 = vpack.c.b16 %v5527, %v5525
      %v5572 = vpack.c.b16 %v5530, %v5528
      %v5573 = vpack.c.b16 %v5531, %v5529
      %v5574 = vpack.c.b16 %v5534, %v5532
      %v5575 = vpack.c.b16 %v5535, %v5533
      %v5576 = vpack.c.b16 %v5538, %v5536
      %v5577 = vpack.c.b16 %v5539, %v5537
      %v5578 = vpack.c.b16 %v5542, %v5540
      %v5579 = vpack.c.b16 %v5543, %v5541
      %v5580 = vpack.c.b16 %v5546, %v5544
      %v5581 = vpack.c.b16 %v5547, %v5545
      %v5582 = vpack.c.b16 %v5550, %v5548
      %v5583 = vpack.c.b16 %v5551, %v5549
      %5616 = vmatprep.subr.bf16.mxu0 %v5567
      %5617 = vmatpush1.bf16.msra.mxu0 %v5566
      %5618 = vmatprep.subr.bf16.mxu0 %v5565
      %5619 = vmatpush1.bf16.msra.mxu0 %v5564
      %5620 = vmatprep.subr.bf16.mxu0 %v5563
      %5621 = vmatpush1.bf16.msra.mxu0 %v5562
      %5622 = vmatprep.subr.bf16.mxu0 %v5561
      %5623 = vmatpush1.bf16.msra.mxu0 %v5560
      %5624 = vmatprep.subr.bf16.mxu0 %v5559
      %5625 = vmatpush1.bf16.msra.mxu0 %v5558
      %5626 = vmatprep.subr.bf16.mxu0 %v5557
      %5627 = vmatpush1.bf16.msra.mxu0 %v5556
      %5628 = vmatprep.subr.bf16.mxu0 %v5555
      %5629 = vmatpush1.bf16.msra.mxu0 %v5554
      %5630 = vmatprep.subr.bf16.mxu0 %v5553
      %5631 = vmatpush1.bf16.msra.mxu0 %v5552
      %5632 = vmatprep.subr.bf16.mxu0 %v5583
      %5633 = vmatpush2.bf16.msra.mxu0 %v5582
      %5634 = vmatprep.subr.bf16.mxu0 %v5581
      %5635 = vmatpush2.bf16.msra.mxu0 %v5580
      %5636 = vmatprep.subr.bf16.mxu0 %v5579
      %5637 = vmatpush2.bf16.msra.mxu0 %v5578
      %5638 = vmatprep.subr.bf16.mxu0 %v5577
      %5639 = vmatpush2.bf16.msra.mxu0 %v5576
      %5640 = vmatprep.subr.bf16.mxu0 %v5575
      %5641 = vmatpush2.bf16.msra.mxu0 %v5574
      %5642 = vmatprep.subr.bf16.mxu0 %v5573
      %5643 = vmatpush2.bf16.msra.mxu0 %v5572
      %5644 = vmatprep.subr.bf16.mxu0 %v5571
      %5645 = vmatpush2.bf16.msra.mxu0 %v5570
      %5646 = vmatprep.subr.bf16.mxu0 %v5569
      %5647 = vmatpush2.bf16.msra.mxu0 %v5568
      %5648 = vmatprep.mubr.bf16.mxu0 %v5452
      %5649 = vmatmul.mubr.bf16.gmra.mxu0 %v5449
      %v5650 = vpop.f32.mrf.mxu0
      %v5651 = vadd.f32 0.0, %v5650
      %v5652 = vpop.f32.mrf.mxu0
      %v5653 = vadd.f32 0.0, %v5652
      %v5654 = vpop.f32.mrf.mxu0
      %v5655 = vpop.f32.mrf.mxu0
      %5656 = vdwg.mxu0
      %v5657 = vadd.f32 %v5413, %v5651
      %v5658 = vadd.f32 %v5414, %v5653
      %v5659 = vld [vmem:[%s10] sm:$0x3]
      %v5661 = vlaneseq
      %v5662 = vshrl.u32 %v5661, 7
      %v5663 = vsub.s32 0, %v5662
      %v5664 = vrot.slane %v5659, %v5663
      %v5665 = vlaneseq
      %v5666 = vshrl.u32 %v5665, 7
      %v5667 = vsub.s32 1, %v5666
      %v5668 = vrot.slane %v5659, %v5667
      %v5671 = vadd.f32 %v5657, %v5664
      %v5672 = vadd.f32 %v5658, %v5668
      %vm5673 = vcmp.gt.f32.partialorder %v5671, 0.0
      %vm5674 = vcmp.gt.f32.partialorder %v5672, 0.0
      %v5675 = vmul.f32 %v5671, 0.01
      %v5676 = vmul.f32 %v5672, 0.01
      %v5677 = vsel %vm5673, %v5671, %v5675
      %v5678 = vsel %vm5674, %v5672, %v5676
      %v5679 = vpack.c.bf16 %v5677, %v5677
      %v5680 = vpack.c.bf16 %v5678, %v5678
      %v5681 = vld [vmem:[%s11] sm:$0xf]
      %v5682 = vld [vmem:[%s11 + $0x4] sm:$0xf]
      %v5683 = vld [vmem:[%s11 + $0x8] sm:$0xf]
      %v5684 = vld [vmem:[%s11 + $0xc] sm:$0xf]
      %v5685 = vld [vmem:[%s11 + $0x10] sm:$0xf]
      %v5686 = vld [vmem:[%s11 + $0x14] sm:$0xf]
      %v5687 = vld [vmem:[%s11 + $0x18] sm:$0xf]
      %v5688 = vld [vmem:[%s11 + $0x1c] sm:$0xf]
      %v5689 = vld [vmem:[%s11 + $0x20] sm:$0xf]
      %v5690 = vld [vmem:[%s11 + $0x24] sm:$0xf]
      %v5691 = vld [vmem:[%s11 + $0x28] sm:$0xf]
      %v5692 = vld [vmem:[%s11 + $0x2c] sm:$0xf]
      %v5693 = vld [vmem:[%s11 + $0x30] sm:$0xf]
      %v5694 = vld [vmem:[%s11 + $0x34] sm:$0xf]
      %v5695 = vld [vmem:[%s11 + $0x38] sm:$0xf]
      %v5696 = vld [vmem:[%s11 + $0x3c] sm:$0xf]
      %v5697 = vld [vmem:[%s11 + $0x40] sm:$0xf]
      %v5698 = vld [vmem:[%s11 + $0x44] sm:$0xf]
      %v5699 = vld [vmem:[%s11 + $0x48] sm:$0xf]
      %v5700 = vld [vmem:[%s11 + $0x4c] sm:$0xf]
      %v5701 = vld [vmem:[%s11 + $0x50] sm:$0xf]
      %v5702 = vld [vmem:[%s11 + $0x54] sm:$0xf]
      %v5703 = vld [vmem:[%s11 + $0x58] sm:$0xf]
      %v5704 = vld [vmem:[%s11 + $0x5c] sm:$0xf]
      %v5705 = vld [vmem:[%s11 + $0x60] sm:$0xf]
      %v5706 = vld [vmem:[%s11 + $0x64] sm:$0xf]
      %v5707 = vld [vmem:[%s11 + $0x68] sm:$0xf]
      %v5708 = vld [vmem:[%s11 + $0x6c] sm:$0xf]
      %v5709 = vld [vmem:[%s11 + $0x70] sm:$0xf]
      %v5710 = vld [vmem:[%s11 + $0x74] sm:$0xf]
      %v5711 = vld [vmem:[%s11 + $0x78] sm:$0xf]
      %v5712 = vld [vmem:[%s11 + $0x7c] sm:$0xf]
      %v5745 = vunpack.c.l.b16 %v5681
      %v5746 = vunpack.c.l.b16 %v5682
      %v5747 = vunpack.c.l.b16 %v5683
      %v5748 = vunpack.c.l.b16 %v5684
      %v5749 = vunpack.c.l.b16 %v5685
      %v5750 = vunpack.c.l.b16 %v5686
      %v5751 = vunpack.c.l.b16 %v5687
      %v5752 = vunpack.c.l.b16 %v5688
      %v5753 = vunpack.c.l.b16 %v5689
      %v5754 = vunpack.c.l.b16 %v5690
      %v5755 = vunpack.c.l.b16 %v5691
      %v5756 = vunpack.c.l.b16 %v5692
      %v5757 = vunpack.c.l.b16 %v5693
      %v5758 = vunpack.c.l.b16 %v5694
      %v5759 = vunpack.c.l.b16 %v5695
      %v5760 = vunpack.c.l.b16 %v5696
      %v5761 = vunpack.c.l.b16 %v5697
      %v5762 = vunpack.c.l.b16 %v5698
      %v5763 = vunpack.c.l.b16 %v5699
      %v5764 = vunpack.c.l.b16 %v5700
      %v5765 = vunpack.c.l.b16 %v5701
      %v5766 = vunpack.c.l.b16 %v5702
      %v5767 = vunpack.c.l.b16 %v5703
      %v5768 = vunpack.c.l.b16 %v5704
      %v5769 = vunpack.c.l.b16 %v5705
      %v5770 = vunpack.c.l.b16 %v5706
      %v5771 = vunpack.c.l.b16 %v5707
      %v5772 = vunpack.c.l.b16 %v5708
      %v5773 = vunpack.c.l.b16 %v5709
      %v5774 = vunpack.c.l.b16 %v5710
      %v5775 = vunpack.c.l.b16 %v5711
      %v5776 = vunpack.c.l.b16 %v5712
      %v5777 = vpack.c.b16 %v5746, %v5745
      %v5778 = vpack.c.b16 %v5748, %v5747
      %v5779 = vpack.c.b16 %v5750, %v5749
      %v5780 = vpack.c.b16 %v5752, %v5751
      %v5781 = vpack.c.b16 %v5754, %v5753
      %v5782 = vpack.c.b16 %v5756, %v5755
      %v5783 = vpack.c.b16 %v5758, %v5757
      %v5784 = vpack.c.b16 %v5760, %v5759
      %v5785 = vpack.c.b16 %v5762, %v5761
      %v5786 = vpack.c.b16 %v5764, %v5763
      %v5787 = vpack.c.b16 %v5766, %v5765
      %v5788 = vpack.c.b16 %v5768, %v5767
      %v5789 = vpack.c.b16 %v5770, %v5769
      %v5790 = vpack.c.b16 %v5772, %v5771
      %v5791 = vpack.c.b16 %v5774, %v5773
      %v5792 = vpack.c.b16 %v5776, %v5775
      %5809 = vmatprep.subr.bf16.mxu0 0
      %5810 = vmatpush1.bf16.msra.mxu0 %v5784
      %5811 = vmatprep.subr.bf16.mxu0 0
      %5812 = vmatpush1.bf16.msra.mxu0 %v5783
      %5813 = vmatprep.subr.bf16.mxu0 0
      %5814 = vmatpush1.bf16.msra.mxu0 %v5782
      %5815 = vmatprep.subr.bf16.mxu0 0
      %5816 = vmatpush1.bf16.msra.mxu0 %v5781
      %5817 = vmatprep.subr.bf16.mxu0 0
      %5818 = vmatpush1.bf16.msra.mxu0 %v5780
      %5819 = vmatprep.subr.bf16.mxu0 0
      %5820 = vmatpush1.bf16.msra.mxu0 %v5779
      %5821 = vmatprep.subr.bf16.mxu0 0
      %5822 = vmatpush1.bf16.msra.mxu0 %v5778
      %5823 = vmatprep.subr.bf16.mxu0 0
      %5824 = vmatpush1.bf16.msra.mxu0 %v5777
      %5825 = vmatprep.subr.bf16.mxu0 0
      %5826 = vmatpush2.bf16.msra.mxu0 %v5792
      %5827 = vmatprep.subr.bf16.mxu0 0
      %5828 = vmatpush2.bf16.msra.mxu0 %v5791
      %5829 = vmatprep.subr.bf16.mxu0 0
      %5830 = vmatpush2.bf16.msra.mxu0 %v5790
      %5831 = vmatprep.subr.bf16.mxu0 0
      %5832 = vmatpush2.bf16.msra.mxu0 %v5789
      %5833 = vmatprep.subr.bf16.mxu0 0
      %5834 = vmatpush2.bf16.msra.mxu0 %v5788
      %5835 = vmatprep.subr.bf16.mxu0 0
      %5836 = vmatpush2.bf16.msra.mxu0 %v5787
      %5837 = vmatprep.subr.bf16.mxu0 0
      %5838 = vmatpush2.bf16.msra.mxu0 %v5786
      %5839 = vmatprep.subr.bf16.mxu0 0
      %5840 = vmatpush2.bf16.msra.mxu0 %v5785
      %5841 = vmatprep.mubr.bf16.mxu0 %v5680
      %5842 = vmatmul.mubr.bf16.gmra.mxu0 %v5679
      %v5843 = vpop.f32.mrf.mxu0
      %v5844 = vadd.f32 0.0, %v5843
      %v5845 = vpop.f32.mrf.mxu0
      %v5846 = vpop.f32.mrf.mxu0
      %v5847 = vpop.f32.mrf.mxu0
      %5848 = vdwg.mxu0
      %vm5849 = vcmask 81920
      %5850 = vst.msk [vmem:[%s409] sm:$0x1] %vm5849, %v5844
      %p5851 = scmp.lt.s32.totalorder %s23, 1
      %s5852 = scalar_select %p5851, %s23, 1
      %s5853 = scalar_lea.vmem %s12, %s5852
      // Predicated region
      $region69: #{discriminator_forward.1} parent=67 // pred_check
        %p5854 = pneg %p298
      $region70: #{discriminator_forward.1} parent=67 // pred_check_branch
        %5856 = sbr.rel (%p5854) target = $region72
      $region71: #{discriminator_forward.1} parent=67 // pred_region
        _
      $region72: #{discriminator_forward.1} parent=67 // pred_fallthru
        _
    $region68: #{discriminator_forward.1} parent=5 // pred_fallthru
      _
    %p5857 = scmp.le.s32.totalorder 2, %s18
    // Predicated region
    $region73: #{discriminator_forward.1} parent=5 // pred_check
      %p5858 = pneg %p5857
    $region74: #{discriminator_forward.1} parent=5 // pred_check_branch
      %5860 = sbr.rel (%p5858) target = $region76
    $region75: #{discriminator_forward.1} parent=5 // pred_region
      %s5861 = ssub.s32 %s18, 2
      // Predicated region
      $region77: #{discriminator_forward.1} parent=75 // pred_check
        %p5862 = pneg %p304
      $region78: #{discriminator_forward.1} parent=75 // pred_check_branch
        %5864 = sbr.rel (%p5862) target = $region80
      $region79: #{discriminator_forward.1} parent=75 // pred_region
        %p5865 = scmp.lt.s32.totalorder %s24, 1
        %s5866 = scalar_select %p5865, %s24, 1
        %s5867 = scalar_lea.vmem %s12, %s5866
      $region80: #{discriminator_forward.1} parent=75 // pred_fallthru
        _
    $region76: #{discriminator_forward.1} parent=5 // pred_fallthru
      _
  $region6: #{discriminator_forward.1} parent=0 // loop_footer
    %s22 = sadd.s32 1, %s18
  $region7: #{discriminator_forward.1} parent=0 // loop_footer_branch
    %17 = sbr.rel target = $region3
  $region8: #{discriminator_forward.1} parent=0 // loop_exit
    _

</llo_original>
